<compile_context>
chip_gen: v5e
topology: v5e:2x2
jax: 0.10.0
libtpu: 0.0.40
codegen_flags: <defaults>
</compile_context>

<pallas_src>
import math
import functools

import jax
import jax.numpy as jnp
from jax.experimental import pallas as pl
from jax.experimental.pallas import tpu as pltpu  # noqa: F401  (kept for TPU backend)

LN_EPS = 1e-5       # PyTorch LayerNorm default
SLAB_LANES = 128    # lane width of the packed parameter slabs (lane-dense)
NEG_INF = -1e30     # stands in for float('-inf') in the additive causal mask


# --------------------------------------------------------------------------- #
# Fused whole-model kernel (single program; processes only batch element B-1)  #
# --------------------------------------------------------------------------- #

def _fused_transformer_kernel(x_ref, mat_ref, row_ref, out_ref, *,
                              plan_m, plan_r, nhead, num_layers,
                              E, H, S, batch_index, num_classes):
    def mat(name, r, c):
        o = plan_m[name]
        return mat_ref[o:o + r, :c]            # static slice -> cheap view/load

    def rows(name, c, r=1):
        o = plan_r[name]
        return row_ref[o:o + r, :c]

    def layernorm(y, prefix):
        g = rows(prefix + "_w", E)
        b = rows(prefix + "_b", E)
        mu = jnp.mean(y, axis=-1, keepdims=True)
        var = jnp.mean(jnp.square(y - mu), axis=-1, keepdims=True)
        return (y - mu) * jax.lax.rsqrt(var + LN_EPS) * g + b

    def mha(xq, xkv, prefix, msk, self_attn):
        hd = E // nhead
        qkv_w = mat(prefix + "_qkv_w", E, 3 * E)   # in_proj.T, Q block pre-scaled
        qkv_b = rows(prefix + "_qkv_b", 3 * E)     # (1, 3E)
        out_w = mat(prefix + "_out_w", E, E)       # out_proj.weight.T
        out_b = rows(prefix + "_out_b", E)         # (1, E)

        if self_attn:
            qkv = jnp.dot(xq, qkv_w, preferred_element_type=jnp.float32) + qkv_b
            q, k, v = qkv[:, :E], qkv[:, E:2 * E], qkv[:, 2 * E:]
        else:
            q = (jnp.dot(xq, qkv_w[:, :E], preferred_element_type=jnp.float32)
                 + qkv_b[:, :E])
            kv = (jnp.dot(xkv, qkv_w[:, E:], preferred_element_type=jnp.float32)
                  + qkv_b[:, E:])
            k, v = kv[:, :E], kv[:, E:]

        o = None
        for h in range(nhead):                     # static unroll (nhead tiny)
            sl = slice(h * hd, (h + 1) * hd)
            s = jax.lax.dot_general(q[:, sl], k[:, sl], (((1,), (1,)), ((), ())),
                                    preferred_element_type=jnp.float32)
            if msk is not None:
                s = s + msk
            s = s - jnp.max(s, axis=-1, keepdims=True)
            p = jnp.exp(s)
            p = p / jnp.sum(p, axis=-1, keepdims=True)      # exact divide (parity)
            hv = jnp.dot(p, v[:, sl], preferred_element_type=jnp.float32)
            # accumulate directly into the output projection -> no lane concat
            contrib = jnp.dot(hv, out_w[sl, :], preferred_element_type=jnp.float32)
            o = contrib if o is None else o + contrib
        return o + out_b

    def ffn(y, prefix):
        w1 = mat(prefix + "_ff1_w", E, H)
        b1 = rows(prefix + "_ff1_b", H)
        w2 = mat(prefix + "_ff2_w", H, E)
        b2 = rows(prefix + "_ff2_b", E)
        z = jnp.maximum(jnp.dot(y, w1, preferred_element_type=jnp.float32) + b1, 0.0)
        return jnp.dot(z, w2, preferred_element_type=jnp.float32) + b2

    # positional encoding (dropout p=0.1 -> eval-mode identity); only the batch
    # element the literal head x[:, -1, :] consumes is computed.
    x = x_ref[:, batch_index, :] + rows("pe", E, r=S)        # (S, E)
    mask = rows("mask", S, r=S)                              # (S, S) additive causal

    # ---- encoder stack (post-norm, PyTorch defaults); causal mask on self-attn ----
    mem = x
    for l in range(num_layers):                              # static unroll
        a = mha(mem, mem, f"enc{l}_sa", mask, True)
        mem = layernorm(mem + a, f"enc{l}_ln1")
        f = ffn(mem, f"enc{l}")
        mem = layernorm(mem + f, f"enc{l}_ln2")
    mem = layernorm(mem, "enc_norm")

    # ---- decoder stack (no mask, documented reinterpretation of broken reference) ----
    tgt = x
    for l in range(num_layers):
        a = mha(tgt, tgt, f"dec{l}_sa", None, True)
        tgt = layernorm(tgt + a, f"dec{l}_ln1")
        a = mha(tgt, mem, f"dec{l}_ca", None, False)
        tgt = layernorm(tgt + a, f"dec{l}_ln2")
        f = ffn(tgt, f"dec{l}")
        tgt = layernorm(tgt + f, f"dec{l}_ln3")
    tgt = layernorm(tgt, "dec_norm")

    # classifier head: (S, num_classes)
    fc_w = mat("fc_w", E, num_classes)
    fc_b = rows("fc_b", num_classes)
    out_ref[...] = jnp.dot(tgt, fc_w, preferred_element_type=jnp.float32) + fc_b


# --------------------------------------------------------------------------- #
# Wrapper-side: pe / mask tables, parameter init, one-time packing             #
# --------------------------------------------------------------------------- #

def build_pe(S, E):
    pos = jnp.arange(S, dtype=jnp.float32)[:, None]
    div = jnp.exp(jnp.arange(0, E, 2, dtype=jnp.float32) * (-math.log(10000.0) / E))
    pe = jnp.zeros((S, E), jnp.float32)
    pe = pe.at[:, 0::2].set(jnp.sin(pos * div))
    pe = pe.at[:, 1::2].set(jnp.cos(pos * div))
    return pe


def causal_mask(S):
    i = jnp.arange(S)[:, None]
    j = jnp.arange(S)[None, :]
    return jnp.where(j <= i, 0.0, NEG_INF).astype(jnp.float32)


def init_params(key, E, nhead, H, num_layers, num_classes):
    keys = iter(jax.random.split(key, 4096))

    def nk():
        return next(keys)

    def xavier(shape):
        fan_out, fan_in = shape[0], shape[1]
        a = math.sqrt(6.0 / (fan_in + fan_out))
        return jax.random.uniform(nk(), shape, jnp.float32, -a, a)

    def attn():
        return {"in_w": xavier((3 * E, E)),
                "in_b": jnp.zeros((3 * E,), jnp.float32),
                "out_w": xavier((E, E)),
                "out_b": jnp.zeros((E,), jnp.float32)}

    def enc_layer():
        return {"self_attn": attn(),
                "lin1_w": xavier((H, E)), "lin1_b": jnp.zeros((H,), jnp.float32),
                "lin2_w": xavier((E, H)), "lin2_b": jnp.zeros((E,), jnp.float32),
                "ln1_w": jnp.ones((E,), jnp.float32), "ln1_b": jnp.zeros((E,), jnp.float32),
                "ln2_w": jnp.ones((E,), jnp.float32), "ln2_b": jnp.zeros((E,), jnp.float32)}

    def dec_layer():
        d = enc_layer()
        d["cross_attn"] = attn()
        d["ln3_w"] = jnp.ones((E,), jnp.float32)
        d["ln3_b"] = jnp.zeros((E,), jnp.float32)
        return d

    return {
        "enc_layers": [enc_layer() for _ in range(num_layers)],
        "dec_layers": [dec_layer() for _ in range(num_layers)],
        "enc_norm_w": jnp.ones((E,), jnp.float32), "enc_norm_b": jnp.zeros((E,), jnp.float32),
        "dec_norm_w": jnp.ones((E,), jnp.float32), "dec_norm_b": jnp.zeros((E,), jnp.float32),
        "fc_w": xavier((num_classes, E)), "fc_b": jnp.zeros((num_classes,), jnp.float32),
    }


def pack_model(params, *, E, H, nhead, num_layers, num_classes, S):
    """Pack everything ONCE into two lane-dense slabs + static offset plans."""
    hd = E // nhead
    scale = 1.0 / math.sqrt(hd)

    mat_entries = []   # (name, (rows, cols) array) -> matrix slab
    row_entries = []   # (name, (rows, cols) array) -> bias/LN/pe/mask slab

    def add_m(name, a):
        mat_entries.append((name, jnp.asarray(a, jnp.float32)))

    def add_r(name, a):
        a = jnp.asarray(a, jnp.float32)
        if a.ndim == 1:
            a = a.reshape(1, -1)
        row_entries.append((name, a))

    # pe & mask first (multi-row chunks, 8-row-aligned offsets)
    add_r("pe", build_pe(S, E))
    add_r("mask", causal_mask(S))

    def add_attn(prefix, p):
        wt = p["in_w"].T                                  # (E, 3E)
        wt = wt.at[:, :E].multiply(scale)                 # fold 1/sqrt(hd) into Q
        bt = p["in_b"].at[:E].multiply(scale)
        add_m(prefix + "_qkv_w", wt)
        add_r(prefix + "_qkv_b", bt)
        add_m(prefix + "_out_w", p["out_w"].T)
        add_r(prefix + "_out_b", p["out_b"])

    def add_ln(prefix, w, b):
        add_r(prefix + "_w", w)
        add_r(prefix + "_b", b)

    def add_ffn(prefix, lp):
        add_m(prefix + "_ff1_w", lp["lin1_w"].T)
        add_r(prefix + "_ff1_b", lp["lin1_b"])
        add_m(prefix + "_ff2_w", lp["lin2_w"].T)
        add_r(prefix + "_ff2_b", lp["lin2_b"])

    for l, lp in enumerate(params["enc_layers"]):
        add_attn(f"enc{l}_sa", lp["self_attn"])
        add_ln(f"enc{l}_ln1", lp["ln1_w"], lp["ln1_b"])
        add_ffn(f"enc{l}", lp)
        add_ln(f"enc{l}_ln2", lp["ln2_w"], lp["ln2_b"])
    add_ln("enc_norm", params["enc_norm_w"], params["enc_norm_b"])

    for l, lp in enumerate(params["dec_layers"]):
        add_attn(f"dec{l}_sa", lp["self_attn"])
        add_ln(f"dec{l}_ln1", lp["ln1_w"], lp["ln1_b"])
        add_attn(f"dec{l}_ca", lp["cross_attn"])
        add_ln(f"dec{l}_ln2", lp["ln2_w"], lp["ln2_b"])
        add_ffn(f"dec{l}", lp)
        add_ln(f"dec{l}_ln3", lp["ln3_w"], lp["ln3_b"])
    add_ln("dec_norm", params["dec_norm_w"], params["dec_norm_b"])

    add_m("fc_w", params["fc_w"].T)
    add_r("fc_b", params["fc_b"])

    def build_slab(entries):
        offs, nrows = {}, 0
        for name, a in entries:
            offs[name] = nrows
            nrows += a.shape[0]
        nrows = ((nrows + 7) // 8) * 8
        slab = jnp.zeros((nrows, SLAB_LANES), jnp.float32)
        for name, a in entries:
            o = offs[name]
            slab = slab.at[o:o + a.shape[0], :a.shape[1]].set(a)
        return slab, offs

    mat_slab, plan_m = build_slab(mat_entries)
    row_slab, plan_r = build_slab(row_entries)
    return mat_slab, row_slab, plan_m, plan_r


# --------------------------------------------------------------------------- #
# Forward: single pallas_call, 3 inputs, no wrapper-side transpose/slice       #
# --------------------------------------------------------------------------- #

def transformer_model_forward(x_sbe, packed, *, nhead, num_layers,
                              hidden_dim, num_classes):
    mat_slab, row_slab, plan_m, plan_r = packed
    S, B, E = x_sbe.shape

    kernel = functools.partial(
        _fused_transformer_kernel,
        plan_m=plan_m, plan_r=plan_r,
        nhead=nhead, num_layers=num_layers,
        E=E, H=hidden_dim, S=S, batch_index=B - 1, num_classes=num_classes)

    return pl.pallas_call(
        kernel,
        grid=(1,),
        in_specs=[
            pl.BlockSpec((S, B, E), lambda i: (0, 0, 0)),       # x in its native layout
            pl.BlockSpec(mat_slab.shape, lambda i: (0, 0)),     # one matrix slab
            pl.BlockSpec(row_slab.shape, lambda i: (0, 0)),     # one rows slab
        ],
        out_specs=pl.BlockSpec((S, num_classes), lambda i: (0, 0)),
        out_shape=jax.ShapeDtypeStruct((S, num_classes), jnp.float32),
    )(x_sbe, mat_slab, row_slab)


# --------------------------------------------------------------------------- #
# main                                                                         #
# --------------------------------------------------------------------------- #

if __name__ == "__main__":
    S, B = 8, 2            # seq len, batch
    input_dim = 32         # d_model
    nhead = 4
    hidden_dim = 64        # feed-forward dim
    num_layers = 2
    num_classes = 10

    key = jax.random.PRNGKey(0)
    kx, kp = jax.random.split(key)
    x = jax.random.normal(kx, (S, B, input_dim), jnp.float32)   # layout (S, B, E)
    params = init_params(kp, input_dim, nhead, hidden_dim, num_layers, num_classes)

    packed = pack_model(params, E=input_dim, H=hidden_dim, nhead=nhead,
                        num_layers=num_layers, num_classes=num_classes, S=S)  # once

    out = transformer_model_forward(x, packed, nhead=nhead, num_layers=num_layers,
                                    hidden_dim=hidden_dim, num_classes=num_classes)
    out = jax.block_until_ready(out)

    assert out.shape == (S, num_classes), out.shape
    assert bool(jnp.all(jnp.isfinite(out)))
    print("KERNEL_OK")
</pallas_src>

<mosaic_0001>
module attributes {stable_mosaic.version = 11 : i64} {
  func.func @_fused_transformer_kernel(%arg0: i32, %arg1: memref<8x2x32xf32, #tpu.memory_space<vmem>>, %arg2: memref<800x128xf32, #tpu.memory_space<vmem>>, %arg3: memref<64x128xf32, #tpu.memory_space<vmem>>, %arg4: memref<8x10xf32, #tpu.memory_space<vmem>>) attributes {dimension_semantics = [#tpu.dimension_semantics<arbitrary>], iteration_bounds = array<i64: 1>, scalar_prefetch = 0 : i64, scratch_operands = 0 : i64, tpu.core_type = #tpu.core_type<tc>, window_params = [{pipeline_mode = #tpu.pipeline_mode<synchronous>, transform_indices = @transform_0, window_bounds = array<i64: 8, 2, 32>}, {pipeline_mode = #tpu.pipeline_mode<synchronous>, transform_indices = @transform_1, window_bounds = array<i64: 800, 128>}, {pipeline_mode = #tpu.pipeline_mode<synchronous>, transform_indices = @transform_2, window_bounds = array<i64: 64, 128>}, {pipeline_mode = #tpu.pipeline_mode<synchronous>, transform_indices = @transform_3, window_bounds = array<i64: 8, 10>}]} {
    %c0 = arith.constant 0 : index
    %c1 = arith.constant 1 : index
    %c0_0 = arith.constant 0 : index
    %0 = vector.load %arg1[%c0, %c1, %c0_0] : memref<8x2x32xf32, #tpu.memory_space<vmem>>, vector<8x1x32xf32>
    %1 = vector.shape_cast %0 : vector<8x1x32xf32> to vector<8x32xf32>
    %c0_1 = arith.constant 0 : index
    %c0_2 = arith.constant 0 : index
    %2 = vector.load %arg3[%c0_1, %c0_2] : memref<64x128xf32, #tpu.memory_space<vmem>>, vector<8x32xf32>
    %3 = arith.addf %1, %2 : vector<8x32xf32>
    %c8 = arith.constant 8 : index
    %c0_3 = arith.constant 0 : index
    %4 = vector.load %arg3[%c8, %c0_3] : memref<64x128xf32, #tpu.memory_space<vmem>>, vector<8x8xf32>
    %c0_4 = arith.constant 0 : index
    %c0_5 = arith.constant 0 : index
    %5 = vector.load %arg2[%c0_4, %c0_5] : memref<800x128xf32, #tpu.memory_space<vmem>>, vector<32x96xf32>
    %c16 = arith.constant 16 : index
    %c0_6 = arith.constant 0 : index
    %6 = vector.load %arg3[%c16, %c0_6] : memref<64x128xf32, #tpu.memory_space<vmem>>, vector<1x96xf32>
    %c32 = arith.constant 32 : index
    %c0_7 = arith.constant 0 : index
    %7 = vector.load %arg2[%c32, %c0_7] : memref<800x128xf32, #tpu.memory_space<vmem>>, vector<32x32xf32>
    %c17 = arith.constant 17 : index
    %c0_8 = arith.constant 0 : index
    %8 = vector.load %arg3[%c17, %c0_8] : memref<64x128xf32, #tpu.memory_space<vmem>>, vector<1x32xf32>
    %cst = arith.constant dense<0.000000e+00> : vector<8x96xf32>
    %9 = tpu.matmul %3, %5, %cst {dimension_numbers = #tpu.dot_dimension_numbers<[1], [0], [0], [1], [0, 0, 1, 1], [], []>} : vector<8x32xf32>, vector<32x96xf32>, vector<8x96xf32> -> vector<8x96xf32>
    %10 = vector.broadcast %6 : vector<1x96xf32> to vector<8x96xf32>
    %11 = arith.addf %9, %10 : vector<8x96xf32>
    %12 = vector.extract_strided_slice %11 {offsets = [0, 0], sizes = [8, 32], strides = [1, 1]} : vector<8x96xf32> to vector<8x32xf32>
    %13 = vector.extract_strided_slice %11 {offsets = [0, 32], sizes = [8, 32], strides = [1, 1]} : vector<8x96xf32> to vector<8x32xf32>
    %14 = vector.extract_strided_slice %11 {offsets = [0, 64], sizes = [8, 32], strides = [1, 1]} : vector<8x96xf32> to vector<8x32xf32>
    %15 = vector.extract_strided_slice %12 {offsets = [0, 0], sizes = [8, 8], strides = [1, 1]} : vector<8x32xf32> to vector<8x8xf32>
    %16 = vector.extract_strided_slice %13 {offsets = [0, 0], sizes = [8, 8], strides = [1, 1]} : vector<8x32xf32> to vector<8x8xf32>
    %cst_9 = arith.constant dense<0.000000e+00> : vector<8x8xf32>
    %17 = tpu.matmul %15, %16, %cst_9 {dimension_numbers = #tpu.dot_dimension_numbers<[1], [1], [0], [0], [0, 0, 1, 0], [], []>} : vector<8x8xf32>, vector<8x8xf32>, vector<8x8xf32> -> vector<8x8xf32>
    %18 = arith.addf %17, %4 : vector<8x8xf32>
    %cst_10 = arith.constant dense<0xFF800000> : vector<8xf32>
    %19 = vector.multi_reduction <maximumf>, %18, %cst_10 [1] : vector<8x8xf32> to vector<8xf32>
    %20 = vector.shape_cast %19 : vector<8xf32> to vector<8x1xf32>
    %21 = vector.broadcast %20 : vector<8x1xf32> to vector<8x8xf32>
    %22 = arith.subf %18, %21 : vector<8x8xf32>
    %23 = math.exp %22 : vector<8x8xf32>
    %cst_11 = arith.constant dense<0.000000e+00> : vector<8xf32>
    %24 = vector.multi_reduction <add>, %23, %cst_11 [1] : vector<8x8xf32> to vector<8xf32>
    %25 = vector.shape_cast %24 : vector<8xf32> to vector<8x1xf32>
    %26 = vector.broadcast %25 : vector<8x1xf32> to vector<8x8xf32>
    %27 = arith.divf %23, %26 : vector<8x8xf32>
    %28 = vector.extract_strided_slice %14 {offsets = [0, 0], sizes = [8, 8], strides = [1, 1]} : vector<8x32xf32> to vector<8x8xf32>
    %cst_12 = arith.constant dense<0.000000e+00> : vector<8x8xf32>
    %29 = tpu.matmul %27, %28, %cst_12 {dimension_numbers = #tpu.dot_dimension_numbers<[1], [0], [0], [1], [0, 0, 1, 1], [], []>} : vector<8x8xf32>, vector<8x8xf32>, vector<8x8xf32> -> vector<8x8xf32>
    %30 = vector.extract_strided_slice %7 {offsets = [0, 0], sizes = [8, 32], strides = [1, 1]} : vector<32x32xf32> to vector<8x32xf32>
    %cst_13 = arith.constant dense<0.000000e+00> : vector<8x32xf32>
    %31 = tpu.matmul %29, %30, %cst_13 {dimension_numbers = #tpu.dot_dimension_numbers<[1], [0], [0], [1], [0, 0, 1, 1], [], []>} : vector<8x8xf32>, vector<8x32xf32>, vector<8x32xf32> -> vector<8x32xf32>
    %32 = vector.extract_strided_slice %12 {offsets = [0, 8], sizes = [8, 8], strides = [1, 1]} : vector<8x32xf32> to vector<8x8xf32>
    %33 = vector.extract_strided_slice %13 {offsets = [0, 8], sizes = [8, 8], strides = [1, 1]} : vector<8x32xf32> to vector<8x8xf32>
    %cst_14 = arith.constant dense<0.000000e+00> : vector<8x8xf32>
    %34 = tpu.matmul %32, %33, %cst_14 {dimension_numbers = #tpu.dot_dimension_numbers<[1], [1], [0], [0], [0, 0, 1, 0], [], []>} : vector<8x8xf32>, vector<8x8xf32>, vector<8x8xf32> -> vector<8x8xf32>
    %35 = arith.addf %34, %4 : vector<8x8xf32>
    %cst_15 = arith.constant dense<0xFF800000> : vector<8xf32>
    %36 = vector.multi_reduction <maximumf>, %35, %cst_15 [1] : vector<8x8xf32> to vector<8xf32>
    %37 = vector.shape_cast %36 : vector<8xf32> to vector<8x1xf32>
    %38 = vector.broadcast %37 : vector<8x1xf32> to vector<8x8xf32>
    %39 = arith.subf %35, %38 : vector<8x8xf32>
    %40 = math.exp %39 : vector<8x8xf32>
    %cst_16 = arith.constant dense<0.000000e+00> : vector<8xf32>
    %41 = vector.multi_reduction <add>, %40, %cst_16 [1] : vector<8x8xf32> to vector<8xf32>
    %42 = vector.shape_cast %41 : vector<8xf32> to vector<8x1xf32>
    %43 = vector.broadcast %42 : vector<8x1xf32> to vector<8x8xf32>
    %44 = arith.divf %40, %43 : vector<8x8xf32>
    %45 = vector.extract_strided_slice %14 {offsets = [0, 8], sizes = [8, 8], strides = [1, 1]} : vector<8x32xf32> to vector<8x8xf32>
    %cst_17 = arith.constant dense<0.000000e+00> : vector<8x8xf32>
    %46 = tpu.matmul %44, %45, %cst_17 {dimension_numbers = #tpu.dot_dimension_numbers<[1], [0], [0], [1], [0, 0, 1, 1], [], []>} : vector<8x8xf32>, vector<8x8xf32>, vector<8x8xf32> -> vector<8x8xf32>
    %47 = vector.extract_strided_slice %7 {offsets = [8, 0], sizes = [8, 32], strides = [1, 1]} : vector<32x32xf32> to vector<8x32xf32>
    %cst_18 = arith.constant dense<0.000000e+00> : vector<8x32xf32>
    %48 = tpu.matmul %46, %47, %cst_18 {dimension_numbers = #tpu.dot_dimension_numbers<[1], [0], [0], [1], [0, 0, 1, 1], [], []>} : vector<8x8xf32>, vector<8x32xf32>, vector<8x32xf32> -> vector<8x32xf32>
    %49 = arith.addf %31, %48 : vector<8x32xf32>
    %50 = vector.extract_strided_slice %12 {offsets = [0, 16], sizes = [8, 8], strides = [1, 1]} : vector<8x32xf32> to vector<8x8xf32>
    %51 = vector.extract_strided_slice %13 {offsets = [0, 16], sizes = [8, 8], strides = [1, 1]} : vector<8x32xf32> to vector<8x8xf32>
    %cst_19 = arith.constant dense<0.000000e+00> : vector<8x8xf32>
    %52 = tpu.matmul %50, %51, %cst_19 {dimension_numbers = #tpu.dot_dimension_numbers<[1], [1], [0], [0], [0, 0, 1, 0], [], []>} : vector<8x8xf32>, vector<8x8xf32>, vector<8x8xf32> -> vector<8x8xf32>
    %53 = arith.addf %52, %4 : vector<8x8xf32>
    %cst_20 = arith.constant dense<0xFF800000> : vector<8xf32>
    %54 = vector.multi_reduction <maximumf>, %53, %cst_20 [1] : vector<8x8xf32> to vector<8xf32>
    %55 = vector.shape_cast %54 : vector<8xf32> to vector<8x1xf32>
    %56 = vector.broadcast %55 : vector<8x1xf32> to vector<8x8xf32>
    %57 = arith.subf %53, %56 : vector<8x8xf32>
    %58 = math.exp %57 : vector<8x8xf32>
    %cst_21 = arith.constant dense<0.000000e+00> : vector<8xf32>
    %59 = vector.multi_reduction <add>, %58, %cst_21 [1] : vector<8x8xf32> to vector<8xf32>
    %60 = vector.shape_cast %59 : vector<8xf32> to vector<8x1xf32>
    %61 = vector.broadcast %60 : vector<8x1xf32> to vector<8x8xf32>
    %62 = arith.divf %58, %61 : vector<8x8xf32>
    %63 = vector.extract_strided_slice %14 {offsets = [0, 16], sizes = [8, 8], strides = [1, 1]} : vector<8x32xf32> to vector<8x8xf32>
    %cst_22 = arith.constant dense<0.000000e+00> : vector<8x8xf32>
    %64 = tpu.matmul %62, %63, %cst_22 {dimension_numbers = #tpu.dot_dimension_numbers<[1], [0], [0], [1], [0, 0, 1, 1], [], []>} : vector<8x8xf32>, vector<8x8xf32>, vector<8x8xf32> -> vector<8x8xf32>
    %65 = vector.extract_strided_slice %7 {offsets = [16, 0], sizes = [8, 32], strides = [1, 1]} : vector<32x32xf32> to vector<8x32xf32>
    %cst_23 = arith.constant dense<0.000000e+00> : vector<8x32xf32>
    %66 = tpu.matmul %64, %65, %cst_23 {dimension_numbers = #tpu.dot_dimension_numbers<[1], [0], [0], [1], [0, 0, 1, 1], [], []>} : vector<8x8xf32>, vector<8x32xf32>, vector<8x32xf32> -> vector<8x32xf32>
    %67 = arith.addf %49, %66 : vector<8x32xf32>
    %68 = vector.extract_strided_slice %12 {offsets = [0, 24], sizes = [8, 8], strides = [1, 1]} : vector<8x32xf32> to vector<8x8xf32>
    %69 = vector.extract_strided_slice %13 {offsets = [0, 24], sizes = [8, 8], strides = [1, 1]} : vector<8x32xf32> to vector<8x8xf32>
    %cst_24 = arith.constant dense<0.000000e+00> : vector<8x8xf32>
    %70 = tpu.matmul %68, %69, %cst_24 {dimension_numbers = #tpu.dot_dimension_numbers<[1], [1], [0], [0], [0, 0, 1, 0], [], []>} : vector<8x8xf32>, vector<8x8xf32>, vector<8x8xf32> -> vector<8x8xf32>
    %71 = arith.addf %70, %4 : vector<8x8xf32>
    %cst_25 = arith.constant dense<0xFF800000> : vector<8xf32>
    %72 = vector.multi_reduction <maximumf>, %71, %cst_25 [1] : vector<8x8xf32> to vector<8xf32>
    %73 = vector.shape_cast %72 : vector<8xf32> to vector<8x1xf32>
    %74 = vector.broadcast %73 : vector<8x1xf32> to vector<8x8xf32>
    %75 = arith.subf %71, %74 : vector<8x8xf32>
    %76 = math.exp %75 : vector<8x8xf32>
    %cst_26 = arith.constant dense<0.000000e+00> : vector<8xf32>
    %77 = vector.multi_reduction <add>, %76, %cst_26 [1] : vector<8x8xf32> to vector<8xf32>
    %78 = vector.shape_cast %77 : vector<8xf32> to vector<8x1xf32>
    %79 = vector.broadcast %78 : vector<8x1xf32> to vector<8x8xf32>
    %80 = arith.divf %76, %79 : vector<8x8xf32>
    %81 = vector.extract_strided_slice %14 {offsets = [0, 24], sizes = [8, 8], strides = [1, 1]} : vector<8x32xf32> to vector<8x8xf32>
    %cst_27 = arith.constant dense<0.000000e+00> : vector<8x8xf32>
    %82 = tpu.matmul %80, %81, %cst_27 {dimension_numbers = #tpu.dot_dimension_numbers<[1], [0], [0], [1], [0, 0, 1, 1], [], []>} : vector<8x8xf32>, vector<8x8xf32>, vector<8x8xf32> -> vector<8x8xf32>
    %83 = vector.extract_strided_slice %7 {offsets = [24, 0], sizes = [8, 32], strides = [1, 1]} : vector<32x32xf32> to vector<8x32xf32>
    %cst_28 = arith.constant dense<0.000000e+00> : vector<8x32xf32>
    %84 = tpu.matmul %82, %83, %cst_28 {dimension_numbers = #tpu.dot_dimension_numbers<[1], [0], [0], [1], [0, 0, 1, 1], [], []>} : vector<8x8xf32>, vector<8x32xf32>, vector<8x32xf32> -> vector<8x32xf32>
    %85 = arith.addf %67, %84 : vector<8x32xf32>
    %86 = vector.broadcast %8 : vector<1x32xf32> to vector<8x32xf32>
    %87 = arith.addf %85, %86 : vector<8x32xf32>
    %88 = arith.addf %3, %87 : vector<8x32xf32>
    %c18 = arith.constant 18 : index
    %c0_29 = arith.constant 0 : index
    %89 = vector.load %arg3[%c18, %c0_29] : memref<64x128xf32, #tpu.memory_space<vmem>>, vector<1x32xf32>
    %c19 = arith.constant 19 : index
    %c0_30 = arith.constant 0 : index
    %90 = vector.load %arg3[%c19, %c0_30] : memref<64x128xf32, #tpu.memory_space<vmem>>, vector<1x32xf32>
    %cst_31 = arith.constant dense<0.000000e+00> : vector<8xf32>
    %91 = vector.multi_reduction <add>, %88, %cst_31 [1] : vector<8x32xf32> to vector<8xf32>
    %92 = vector.shape_cast %91 : vector<8xf32> to vector<8x1xf32>
    %cst_32 = arith.constant 3.200000e+01 : f32
    %93 = vector.broadcast %cst_32 : f32 to vector<8x1xf32>
    %94 = arith.divf %92, %93 : vector<8x1xf32>
    %95 = vector.broadcast %94 : vector<8x1xf32> to vector<8x32xf32>
    %96 = arith.subf %88, %95 : vector<8x32xf32>
    %97 = arith.mulf %96, %96 : vector<8x32xf32>
    %cst_33 = arith.constant dense<0.000000e+00> : vector<8xf32>
    %98 = vector.multi_reduction <add>, %97, %cst_33 [1] : vector<8x32xf32> to vector<8xf32>
    %99 = vector.shape_cast %98 : vector<8xf32> to vector<8x1xf32>
    %cst_34 = arith.constant 3.200000e+01 : f32
    %100 = vector.broadcast %cst_34 : f32 to vector<8x1xf32>
    %101 = arith.divf %99, %100 : vector<8x1xf32>
    %102 = vector.broadcast %94 : vector<8x1xf32> to vector<8x32xf32>
    %103 = arith.subf %88, %102 : vector<8x32xf32>
    %cst_35 = arith.constant 9.99999974E-6 : f32
    %104 = vector.broadcast %cst_35 : f32 to vector<8x1xf32>
    %105 = arith.addf %101, %104 : vector<8x1xf32>
    %106 = math.rsqrt %105 : vector<8x1xf32>
    %107 = vector.broadcast %106 : vector<8x1xf32> to vector<8x32xf32>
    %108 = arith.mulf %103, %107 : vector<8x32xf32>
    %109 = vector.broadcast %89 : vector<1x32xf32> to vector<8x32xf32>
    %110 = arith.mulf %108, %109 : vector<8x32xf32>
    %111 = vector.broadcast %90 : vector<1x32xf32> to vector<8x32xf32>
    %112 = arith.addf %110, %111 : vector<8x32xf32>
    %c64 = arith.constant 64 : index
    %c0_36 = arith.constant 0 : index
    %113 = vector.load %arg2[%c64, %c0_36] : memref<800x128xf32, #tpu.memory_space<vmem>>, vector<32x64xf32>
    %c20 = arith.constant 20 : index
    %c0_37 = arith.constant 0 : index
    %114 = vector.load %arg3[%c20, %c0_37] : memref<64x128xf32, #tpu.memory_space<vmem>>, vector<1x64xf32>
    %c96 = arith.constant 96 : index
    %c0_38 = arith.constant 0 : index
    %115 = vector.load %arg2[%c96, %c0_38] : memref<800x128xf32, #tpu.memory_space<vmem>>, vector<64x32xf32>
    %c21 = arith.constant 21 : index
    %c0_39 = arith.constant 0 : index
    %116 = vector.load %arg3[%c21, %c0_39] : memref<64x128xf32, #tpu.memory_space<vmem>>, vector<1x32xf32>
    %cst_40 = arith.constant dense<0.000000e+00> : vector<8x64xf32>
    %117 = tpu.matmul %112, %113, %cst_40 {dimension_numbers = #tpu.dot_dimension_numbers<[1], [0], [0], [1], [0, 0, 1, 1], [], []>} : vector<8x32xf32>, vector<32x64xf32>, vector<8x64xf32> -> vector<8x64xf32>
    %118 = vector.broadcast %114 : vector<1x64xf32> to vector<8x64xf32>
    %119 = arith.addf %117, %118 : vector<8x64xf32>
    %cst_41 = arith.constant 0.000000e+00 : f32
    %120 = vector.broadcast %cst_41 : f32 to vector<8x64xf32>
    %121 = arith.maximumf %119, %120 : vector<8x64xf32>
    %cst_42 = arith.constant dense<0.000000e+00> : vector<8x32xf32>
    %122 = tpu.matmul %121, %115, %cst_42 {dimension_numbers = #tpu.dot_dimension_numbers<[1], [0], [0], [1], [0, 0, 1, 1], [], []>} : vector<8x64xf32>, vector<64x32xf32>, vector<8x32xf32> -> vector<8x32xf32>
    %123 = vector.broadcast %116 : vector<1x32xf32> to vector<8x32xf32>
    %124 = arith.addf %122, %123 : vector<8x32xf32>
    %125 = arith.addf %112, %124 : vector<8x32xf32>
    %c22 = arith.constant 22 : index
    %c0_43 = arith.constant 0 : index
    %126 = vector.load %arg3[%c22, %c0_43] : memref<64x128xf32, #tpu.memory_space<vmem>>, vector<1x32xf32>
    %c23 = arith.constant 23 : index
    %c0_44 = arith.constant 0 : index
    %127 = vector.load %arg3[%c23, %c0_44] : memref<64x128xf32, #tpu.memory_space<vmem>>, vector<1x32xf32>
    %cst_45 = arith.constant dense<0.000000e+00> : vector<8xf32>
    %128 = vector.multi_reduction <add>, %125, %cst_45 [1] : vector<8x32xf32> to vector<8xf32>
    %129 = vector.shape_cast %128 : vector<8xf32> to vector<8x1xf32>
    %cst_46 = arith.constant 3.200000e+01 : f32
    %130 = vector.broadcast %cst_46 : f32 to vector<8x1xf32>
    %131 = arith.divf %129, %130 : vector<8x1xf32>
    %132 = vector.broadcast %131 : vector<8x1xf32> to vector<8x32xf32>
    %133 = arith.subf %125, %132 : vector<8x32xf32>
    %134 = arith.mulf %133, %133 : vector<8x32xf32>
    %cst_47 = arith.constant dense<0.000000e+00> : vector<8xf32>
    %135 = vector.multi_reduction <add>, %134, %cst_47 [1] : vector<8x32xf32> to vector<8xf32>
    %136 = vector.shape_cast %135 : vector<8xf32> to vector<8x1xf32>
    %cst_48 = arith.constant 3.200000e+01 : f32
    %137 = vector.broadcast %cst_48 : f32 to vector<8x1xf32>
    %138 = arith.divf %136, %137 : vector<8x1xf32>
    %139 = vector.broadcast %131 : vector<8x1xf32> to vector<8x32xf32>
    %140 = arith.subf %125, %139 : vector<8x32xf32>
    %cst_49 = arith.constant 9.99999974E-6 : f32
    %141 = vector.broadcast %cst_49 : f32 to vector<8x1xf32>
    %142 = arith.addf %138, %141 : vector<8x1xf32>
    %143 = math.rsqrt %142 : vector<8x1xf32>
    %144 = vector.broadcast %143 : vector<8x1xf32> to vector<8x32xf32>
    %145 = arith.mulf %140, %144 : vector<8x32xf32>
    %146 = vector.broadcast %126 : vector<1x32xf32> to vector<8x32xf32>
    %147 = arith.mulf %145, %146 : vector<8x32xf32>
    %148 = vector.broadcast %127 : vector<1x32xf32> to vector<8x32xf32>
    %149 = arith.addf %147, %148 : vector<8x32xf32>
    %c160 = arith.constant 160 : index
    %c0_50 = arith.constant 0 : index
    %150 = vector.load %arg2[%c160, %c0_50] : memref<800x128xf32, #tpu.memory_space<vmem>>, vector<32x96xf32>
    %c24 = arith.constant 24 : index
    %c0_51 = arith.constant 0 : index
    %151 = vector.load %arg3[%c24, %c0_51] : memref<64x128xf32, #tpu.memory_space<vmem>>, vector<1x96xf32>
    %c192 = arith.constant 192 : index
    %c0_52 = arith.constant 0 : index
    %152 = vector.load %arg2[%c192, %c0_52] : memref<800x128xf32, #tpu.memory_space<vmem>>, vector<32x32xf32>
    %c25 = arith.constant 25 : index
    %c0_53 = arith.constant 0 : index
    %153 = vector.load %arg3[%c25, %c0_53] : memref<64x128xf32, #tpu.memory_space<vmem>>, vector<1x32xf32>
    %cst_54 = arith.constant dense<0.000000e+00> : vector<8x96xf32>
    %154 = tpu.matmul %149, %150, %cst_54 {dimension_numbers = #tpu.dot_dimension_numbers<[1], [0], [0], [1], [0, 0, 1, 1], [], []>} : vector<8x32xf32>, vector<32x96xf32>, vector<8x96xf32> -> vector<8x96xf32>
    %155 = vector.broadcast %151 : vector<1x96xf32> to vector<8x96xf32>
    %156 = arith.addf %154, %155 : vector<8x96xf32>
    %157 = vector.extract_strided_slice %156 {offsets = [0, 0], sizes = [8, 32], strides = [1, 1]} : vector<8x96xf32> to vector<8x32xf32>
    %158 = vector.extract_strided_slice %156 {offsets = [0, 32], sizes = [8, 32], strides = [1, 1]} : vector<8x96xf32> to vector<8x32xf32>
    %159 = vector.extract_strided_slice %156 {offsets = [0, 64], sizes = [8, 32], strides = [1, 1]} : vector<8x96xf32> to vector<8x32xf32>
    %160 = vector.extract_strided_slice %157 {offsets = [0, 0], sizes = [8, 8], strides = [1, 1]} : vector<8x32xf32> to vector<8x8xf32>
    %161 = vector.extract_strided_slice %158 {offsets = [0, 0], sizes = [8, 8], strides = [1, 1]} : vector<8x32xf32> to vector<8x8xf32>
    %cst_55 = arith.constant dense<0.000000e+00> : vector<8x8xf32>
    %162 = tpu.matmul %160, %161, %cst_55 {dimension_numbers = #tpu.dot_dimension_numbers<[1], [1], [0], [0], [0, 0, 1, 0], [], []>} : vector<8x8xf32>, vector<8x8xf32>, vector<8x8xf32> -> vector<8x8xf32>
    %163 = arith.addf %162, %4 : vector<8x8xf32>
    %cst_56 = arith.constant dense<0xFF800000> : vector<8xf32>
    %164 = vector.multi_reduction <maximumf>, %163, %cst_56 [1] : vector<8x8xf32> to vector<8xf32>
    %165 = vector.shape_cast %164 : vector<8xf32> to vector<8x1xf32>
    %166 = vector.broadcast %165 : vector<8x1xf32> to vector<8x8xf32>
    %167 = arith.subf %163, %166 : vector<8x8xf32>
    %168 = math.exp %167 : vector<8x8xf32>
    %cst_57 = arith.constant dense<0.000000e+00> : vector<8xf32>
    %169 = vector.multi_reduction <add>, %168, %cst_57 [1] : vector<8x8xf32> to vector<8xf32>
    %170 = vector.shape_cast %169 : vector<8xf32> to vector<8x1xf32>
    %171 = vector.broadcast %170 : vector<8x1xf32> to vector<8x8xf32>
    %172 = arith.divf %168, %171 : vector<8x8xf32>
    %173 = vector.extract_strided_slice %159 {offsets = [0, 0], sizes = [8, 8], strides = [1, 1]} : vector<8x32xf32> to vector<8x8xf32>
    %cst_58 = arith.constant dense<0.000000e+00> : vector<8x8xf32>
    %174 = tpu.matmul %172, %173, %cst_58 {dimension_numbers = #tpu.dot_dimension_numbers<[1], [0], [0], [1], [0, 0, 1, 1], [], []>} : vector<8x8xf32>, vector<8x8xf32>, vector<8x8xf32> -> vector<8x8xf32>
    %175 = vector.extract_strided_slice %152 {offsets = [0, 0], sizes = [8, 32], strides = [1, 1]} : vector<32x32xf32> to vector<8x32xf32>
    %cst_59 = arith.constant dense<0.000000e+00> : vector<8x32xf32>
    %176 = tpu.matmul %174, %175, %cst_59 {dimension_numbers = #tpu.dot_dimension_numbers<[1], [0], [0], [1], [0, 0, 1, 1], [], []>} : vector<8x8xf32>, vector<8x32xf32>, vector<8x32xf32> -> vector<8x32xf32>
    %177 = vector.extract_strided_slice %157 {offsets = [0, 8], sizes = [8, 8], strides = [1, 1]} : vector<8x32xf32> to vector<8x8xf32>
    %178 = vector.extract_strided_slice %158 {offsets = [0, 8], sizes = [8, 8], strides = [1, 1]} : vector<8x32xf32> to vector<8x8xf32>
    %cst_60 = arith.constant dense<0.000000e+00> : vector<8x8xf32>
    %179 = tpu.matmul %177, %178, %cst_60 {dimension_numbers = #tpu.dot_dimension_numbers<[1], [1], [0], [0], [0, 0, 1, 0], [], []>} : vector<8x8xf32>, vector<8x8xf32>, vector<8x8xf32> -> vector<8x8xf32>
    %180 = arith.addf %179, %4 : vector<8x8xf32>
    %cst_61 = arith.constant dense<0xFF800000> : vector<8xf32>
    %181 = vector.multi_reduction <maximumf>, %180, %cst_61 [1] : vector<8x8xf32> to vector<8xf32>
    %182 = vector.shape_cast %181 : vector<8xf32> to vector<8x1xf32>
    %183 = vector.broadcast %182 : vector<8x1xf32> to vector<8x8xf32>
    %184 = arith.subf %180, %183 : vector<8x8xf32>
    %185 = math.exp %184 : vector<8x8xf32>
    %cst_62 = arith.constant dense<0.000000e+00> : vector<8xf32>
    %186 = vector.multi_reduction <add>, %185, %cst_62 [1] : vector<8x8xf32> to vector<8xf32>
    %187 = vector.shape_cast %186 : vector<8xf32> to vector<8x1xf32>
    %188 = vector.broadcast %187 : vector<8x1xf32> to vector<8x8xf32>
    %189 = arith.divf %185, %188 : vector<8x8xf32>
    %190 = vector.extract_strided_slice %159 {offsets = [0, 8], sizes = [8, 8], strides = [1, 1]} : vector<8x32xf32> to vector<8x8xf32>
    %cst_63 = arith.constant dense<0.000000e+00> : vector<8x8xf32>
    %191 = tpu.matmul %189, %190, %cst_63 {dimension_numbers = #tpu.dot_dimension_numbers<[1], [0], [0], [1], [0, 0, 1, 1], [], []>} : vector<8x8xf32>, vector<8x8xf32>, vector<8x8xf32> -> vector<8x8xf32>
    %192 = vector.extract_strided_slice %152 {offsets = [8, 0], sizes = [8, 32], strides = [1, 1]} : vector<32x32xf32> to vector<8x32xf32>
    %cst_64 = arith.constant dense<0.000000e+00> : vector<8x32xf32>
    %193 = tpu.matmul %191, %192, %cst_64 {dimension_numbers = #tpu.dot_dimension_numbers<[1], [0], [0], [1], [0, 0, 1, 1], [], []>} : vector<8x8xf32>, vector<8x32xf32>, vector<8x32xf32> -> vector<8x32xf32>
    %194 = arith.addf %176, %193 : vector<8x32xf32>
    %195 = vector.extract_strided_slice %157 {offsets = [0, 16], sizes = [8, 8], strides = [1, 1]} : vector<8x32xf32> to vector<8x8xf32>
    %196 = vector.extract_strided_slice %158 {offsets = [0, 16], sizes = [8, 8], strides = [1, 1]} : vector<8x32xf32> to vector<8x8xf32>
    %cst_65 = arith.constant dense<0.000000e+00> : vector<8x8xf32>
    %197 = tpu.matmul %195, %196, %cst_65 {dimension_numbers = #tpu.dot_dimension_numbers<[1], [1], [0], [0], [0, 0, 1, 0], [], []>} : vector<8x8xf32>, vector<8x8xf32>, vector<8x8xf32> -> vector<8x8xf32>
    %198 = arith.addf %197, %4 : vector<8x8xf32>
    %cst_66 = arith.constant dense<0xFF800000> : vector<8xf32>
    %199 = vector.multi_reduction <maximumf>, %198, %cst_66 [1] : vector<8x8xf32> to vector<8xf32>
    %200 = vector.shape_cast %199 : vector<8xf32> to vector<8x1xf32>
    %201 = vector.broadcast %200 : vector<8x1xf32> to vector<8x8xf32>
    %202 = arith.subf %198, %201 : vector<8x8xf32>
    %203 = math.exp %202 : vector<8x8xf32>
    %cst_67 = arith.constant dense<0.000000e+00> : vector<8xf32>
    %204 = vector.multi_reduction <add>, %203, %cst_67 [1] : vector<8x8xf32> to vector<8xf32>
    %205 = vector.shape_cast %204 : vector<8xf32> to vector<8x1xf32>
    %206 = vector.broadcast %205 : vector<8x1xf32> to vector<8x8xf32>
    %207 = arith.divf %203, %206 : vector<8x8xf32>
    %208 = vector.extract_strided_slice %159 {offsets = [0, 16], sizes = [8, 8], strides = [1, 1]} : vector<8x32xf32> to vector<8x8xf32>
    %cst_68 = arith.constant dense<0.000000e+00> : vector<8x8xf32>
    %209 = tpu.matmul %207, %208, %cst_68 {dimension_numbers = #tpu.dot_dimension_numbers<[1], [0], [0], [1], [0, 0, 1, 1], [], []>} : vector<8x8xf32>, vector<8x8xf32>, vector<8x8xf32> -> vector<8x8xf32>
    %210 = vector.extract_strided_slice %152 {offsets = [16, 0], sizes = [8, 32], strides = [1, 1]} : vector<32x32xf32> to vector<8x32xf32>
    %cst_69 = arith.constant dense<0.000000e+00> : vector<8x32xf32>
    %211 = tpu.matmul %209, %210, %cst_69 {dimension_numbers = #tpu.dot_dimension_numbers<[1], [0], [0], [1], [0, 0, 1, 1], [], []>} : vector<8x8xf32>, vector<8x32xf32>, vector<8x32xf32> -> vector<8x32xf32>
    %212 = arith.addf %194, %211 : vector<8x32xf32>
    %213 = vector.extract_strided_slice %157 {offsets = [0, 24], sizes = [8, 8], strides = [1, 1]} : vector<8x32xf32> to vector<8x8xf32>
    %214 = vector.extract_strided_slice %158 {offsets = [0, 24], sizes = [8, 8], strides = [1, 1]} : vector<8x32xf32> to vector<8x8xf32>
    %cst_70 = arith.constant dense<0.000000e+00> : vector<8x8xf32>
    %215 = tpu.matmul %213, %214, %cst_70 {dimension_numbers = #tpu.dot_dimension_numbers<[1], [1], [0], [0], [0, 0, 1, 0], [], []>} : vector<8x8xf32>, vector<8x8xf32>, vector<8x8xf32> -> vector<8x8xf32>
    %216 = arith.addf %215, %4 : vector<8x8xf32>
    %cst_71 = arith.constant dense<0xFF800000> : vector<8xf32>
    %217 = vector.multi_reduction <maximumf>, %216, %cst_71 [1] : vector<8x8xf32> to vector<8xf32>
    %218 = vector.shape_cast %217 : vector<8xf32> to vector<8x1xf32>
    %219 = vector.broadcast %218 : vector<8x1xf32> to vector<8x8xf32>
    %220 = arith.subf %216, %219 : vector<8x8xf32>
    %221 = math.exp %220 : vector<8x8xf32>
    %cst_72 = arith.constant dense<0.000000e+00> : vector<8xf32>
    %222 = vector.multi_reduction <add>, %221, %cst_72 [1] : vector<8x8xf32> to vector<8xf32>
    %223 = vector.shape_cast %222 : vector<8xf32> to vector<8x1xf32>
    %224 = vector.broadcast %223 : vector<8x1xf32> to vector<8x8xf32>
    %225 = arith.divf %221, %224 : vector<8x8xf32>
    %226 = vector.extract_strided_slice %159 {offsets = [0, 24], sizes = [8, 8], strides = [1, 1]} : vector<8x32xf32> to vector<8x8xf32>
    %cst_73 = arith.constant dense<0.000000e+00> : vector<8x8xf32>
    %227 = tpu.matmul %225, %226, %cst_73 {dimension_numbers = #tpu.dot_dimension_numbers<[1], [0], [0], [1], [0, 0, 1, 1], [], []>} : vector<8x8xf32>, vector<8x8xf32>, vector<8x8xf32> -> vector<8x8xf32>
    %228 = vector.extract_strided_slice %152 {offsets = [24, 0], sizes = [8, 32], strides = [1, 1]} : vector<32x32xf32> to vector<8x32xf32>
    %cst_74 = arith.constant dense<0.000000e+00> : vector<8x32xf32>
    %229 = tpu.matmul %227, %228, %cst_74 {dimension_numbers = #tpu.dot_dimension_numbers<[1], [0], [0], [1], [0, 0, 1, 1], [], []>} : vector<8x8xf32>, vector<8x32xf32>, vector<8x32xf32> -> vector<8x32xf32>
    %230 = arith.addf %212, %229 : vector<8x32xf32>
    %231 = vector.broadcast %153 : vector<1x32xf32> to vector<8x32xf32>
    %232 = arith.addf %230, %231 : vector<8x32xf32>
    %233 = arith.addf %149, %232 : vector<8x32xf32>
    %c26 = arith.constant 26 : index
    %c0_75 = arith.constant 0 : index
    %234 = vector.load %arg3[%c26, %c0_75] : memref<64x128xf32, #tpu.memory_space<vmem>>, vector<1x32xf32>
    %c27 = arith.constant 27 : index
    %c0_76 = arith.constant 0 : index
    %235 = vector.load %arg3[%c27, %c0_76] : memref<64x128xf32, #tpu.memory_space<vmem>>, vector<1x32xf32>
    %cst_77 = arith.constant dense<0.000000e+00> : vector<8xf32>
    %236 = vector.multi_reduction <add>, %233, %cst_77 [1] : vector<8x32xf32> to vector<8xf32>
    %237 = vector.shape_cast %236 : vector<8xf32> to vector<8x1xf32>
    %cst_78 = arith.constant 3.200000e+01 : f32
    %238 = vector.broadcast %cst_78 : f32 to vector<8x1xf32>
    %239 = arith.divf %237, %238 : vector<8x1xf32>
    %240 = vector.broadcast %239 : vector<8x1xf32> to vector<8x32xf32>
    %241 = arith.subf %233, %240 : vector<8x32xf32>
    %242 = arith.mulf %241, %241 : vector<8x32xf32>
    %cst_79 = arith.constant dense<0.000000e+00> : vector<8xf32>
    %243 = vector.multi_reduction <add>, %242, %cst_79 [1] : vector<8x32xf32> to vector<8xf32>
    %244 = vector.shape_cast %243 : vector<8xf32> to vector<8x1xf32>
    %cst_80 = arith.constant 3.200000e+01 : f32
    %245 = vector.broadcast %cst_80 : f32 to vector<8x1xf32>
    %246 = arith.divf %244, %245 : vector<8x1xf32>
    %247 = vector.broadcast %239 : vector<8x1xf32> to vector<8x32xf32>
    %248 = arith.subf %233, %247 : vector<8x32xf32>
    %cst_81 = arith.constant 9.99999974E-6 : f32
    %249 = vector.broadcast %cst_81 : f32 to vector<8x1xf32>
    %250 = arith.addf %246, %249 : vector<8x1xf32>
    %251 = math.rsqrt %250 : vector<8x1xf32>
    %252 = vector.broadcast %251 : vector<8x1xf32> to vector<8x32xf32>
    %253 = arith.mulf %248, %252 : vector<8x32xf32>
    %254 = vector.broadcast %234 : vector<1x32xf32> to vector<8x32xf32>
    %255 = arith.mulf %253, %254 : vector<8x32xf32>
    %256 = vector.broadcast %235 : vector<1x32xf32> to vector<8x32xf32>
    %257 = arith.addf %255, %256 : vector<8x32xf32>
    %c224 = arith.constant 224 : index
    %c0_82 = arith.constant 0 : index
    %258 = vector.load %arg2[%c224, %c0_82] : memref<800x128xf32, #tpu.memory_space<vmem>>, vector<32x64xf32>
    %c28 = arith.constant 28 : index
    %c0_83 = arith.constant 0 : index
    %259 = vector.load %arg3[%c28, %c0_83] : memref<64x128xf32, #tpu.memory_space<vmem>>, vector<1x64xf32>
    %c256 = arith.constant 256 : index
    %c0_84 = arith.constant 0 : index
    %260 = vector.load %arg2[%c256, %c0_84] : memref<800x128xf32, #tpu.memory_space<vmem>>, vector<64x32xf32>
    %c29 = arith.constant 29 : index
    %c0_85 = arith.constant 0 : index
    %261 = vector.load %arg3[%c29, %c0_85] : memref<64x128xf32, #tpu.memory_space<vmem>>, vector<1x32xf32>
    %cst_86 = arith.constant dense<0.000000e+00> : vector<8x64xf32>
    %262 = tpu.matmul %257, %258, %cst_86 {dimension_numbers = #tpu.dot_dimension_numbers<[1], [0], [0], [1], [0, 0, 1, 1], [], []>} : vector<8x32xf32>, vector<32x64xf32>, vector<8x64xf32> -> vector<8x64xf32>
    %263 = vector.broadcast %259 : vector<1x64xf32> to vector<8x64xf32>
    %264 = arith.addf %262, %263 : vector<8x64xf32>
    %cst_87 = arith.constant 0.000000e+00 : f32
    %265 = vector.broadcast %cst_87 : f32 to vector<8x64xf32>
    %266 = arith.maximumf %264, %265 : vector<8x64xf32>
    %cst_88 = arith.constant dense<0.000000e+00> : vector<8x32xf32>
    %267 = tpu.matmul %266, %260, %cst_88 {dimension_numbers = #tpu.dot_dimension_numbers<[1], [0], [0], [1], [0, 0, 1, 1], [], []>} : vector<8x64xf32>, vector<64x32xf32>, vector<8x32xf32> -> vector<8x32xf32>
    %268 = vector.broadcast %261 : vector<1x32xf32> to vector<8x32xf32>
    %269 = arith.addf %267, %268 : vector<8x32xf32>
    %270 = arith.addf %257, %269 : vector<8x32xf32>
    %c30 = arith.constant 30 : index
    %c0_89 = arith.constant 0 : index
    %271 = vector.load %arg3[%c30, %c0_89] : memref<64x128xf32, #tpu.memory_space<vmem>>, vector<1x32xf32>
    %c31 = arith.constant 31 : index
    %c0_90 = arith.constant 0 : index
    %272 = vector.load %arg3[%c31, %c0_90] : memref<64x128xf32, #tpu.memory_space<vmem>>, vector<1x32xf32>
    %cst_91 = arith.constant dense<0.000000e+00> : vector<8xf32>
    %273 = vector.multi_reduction <add>, %270, %cst_91 [1] : vector<8x32xf32> to vector<8xf32>
    %274 = vector.shape_cast %273 : vector<8xf32> to vector<8x1xf32>
    %cst_92 = arith.constant 3.200000e+01 : f32
    %275 = vector.broadcast %cst_92 : f32 to vector<8x1xf32>
    %276 = arith.divf %274, %275 : vector<8x1xf32>
    %277 = vector.broadcast %276 : vector<8x1xf32> to vector<8x32xf32>
    %278 = arith.subf %270, %277 : vector<8x32xf32>
    %279 = arith.mulf %278, %278 : vector<8x32xf32>
    %cst_93 = arith.constant dense<0.000000e+00> : vector<8xf32>
    %280 = vector.multi_reduction <add>, %279, %cst_93 [1] : vector<8x32xf32> to vector<8xf32>
    %281 = vector.shape_cast %280 : vector<8xf32> to vector<8x1xf32>
    %cst_94 = arith.constant 3.200000e+01 : f32
    %282 = vector.broadcast %cst_94 : f32 to vector<8x1xf32>
    %283 = arith.divf %281, %282 : vector<8x1xf32>
    %284 = vector.broadcast %276 : vector<8x1xf32> to vector<8x32xf32>
    %285 = arith.subf %270, %284 : vector<8x32xf32>
    %cst_95 = arith.constant 9.99999974E-6 : f32
    %286 = vector.broadcast %cst_95 : f32 to vector<8x1xf32>
    %287 = arith.addf %283, %286 : vector<8x1xf32>
    %288 = math.rsqrt %287 : vector<8x1xf32>
    %289 = vector.broadcast %288 : vector<8x1xf32> to vector<8x32xf32>
    %290 = arith.mulf %285, %289 : vector<8x32xf32>
    %291 = vector.broadcast %271 : vector<1x32xf32> to vector<8x32xf32>
    %292 = arith.mulf %290, %291 : vector<8x32xf32>
    %293 = vector.broadcast %272 : vector<1x32xf32> to vector<8x32xf32>
    %294 = arith.addf %292, %293 : vector<8x32xf32>
    %c32_96 = arith.constant 32 : index
    %c0_97 = arith.constant 0 : index
    %295 = vector.load %arg3[%c32_96, %c0_97] : memref<64x128xf32, #tpu.memory_space<vmem>>, vector<1x32xf32>
    %c33 = arith.constant 33 : index
    %c0_98 = arith.constant 0 : index
    %296 = vector.load %arg3[%c33, %c0_98] : memref<64x128xf32, #tpu.memory_space<vmem>>, vector<1x32xf32>
    %cst_99 = arith.constant dense<0.000000e+00> : vector<8xf32>
    %297 = vector.multi_reduction <add>, %294, %cst_99 [1] : vector<8x32xf32> to vector<8xf32>
    %298 = vector.shape_cast %297 : vector<8xf32> to vector<8x1xf32>
    %cst_100 = arith.constant 3.200000e+01 : f32
    %299 = vector.broadcast %cst_100 : f32 to vector<8x1xf32>
    %300 = arith.divf %298, %299 : vector<8x1xf32>
    %301 = vector.broadcast %300 : vector<8x1xf32> to vector<8x32xf32>
    %302 = arith.subf %294, %301 : vector<8x32xf32>
    %303 = arith.mulf %302, %302 : vector<8x32xf32>
    %cst_101 = arith.constant dense<0.000000e+00> : vector<8xf32>
    %304 = vector.multi_reduction <add>, %303, %cst_101 [1] : vector<8x32xf32> to vector<8xf32>
    %305 = vector.shape_cast %304 : vector<8xf32> to vector<8x1xf32>
    %cst_102 = arith.constant 3.200000e+01 : f32
    %306 = vector.broadcast %cst_102 : f32 to vector<8x1xf32>
    %307 = arith.divf %305, %306 : vector<8x1xf32>
    %308 = vector.broadcast %300 : vector<8x1xf32> to vector<8x32xf32>
    %309 = arith.subf %294, %308 : vector<8x32xf32>
    %cst_103 = arith.constant 9.99999974E-6 : f32
    %310 = vector.broadcast %cst_103 : f32 to vector<8x1xf32>
    %311 = arith.addf %307, %310 : vector<8x1xf32>
    %312 = math.rsqrt %311 : vector<8x1xf32>
    %313 = vector.broadcast %312 : vector<8x1xf32> to vector<8x32xf32>
    %314 = arith.mulf %309, %313 : vector<8x32xf32>
    %315 = vector.broadcast %295 : vector<1x32xf32> to vector<8x32xf32>
    %316 = arith.mulf %314, %315 : vector<8x32xf32>
    %317 = vector.broadcast %296 : vector<1x32xf32> to vector<8x32xf32>
    %318 = arith.addf %316, %317 : vector<8x32xf32>
    %c320 = arith.constant 320 : index
    %c0_104 = arith.constant 0 : index
    %319 = vector.load %arg2[%c320, %c0_104] : memref<800x128xf32, #tpu.memory_space<vmem>>, vector<32x96xf32>
    %c34 = arith.constant 34 : index
    %c0_105 = arith.constant 0 : index
    %320 = vector.load %arg3[%c34, %c0_105] : memref<64x128xf32, #tpu.memory_space<vmem>>, vector<1x96xf32>
    %c352 = arith.constant 352 : index
    %c0_106 = arith.constant 0 : index
    %321 = vector.load %arg2[%c352, %c0_106] : memref<800x128xf32, #tpu.memory_space<vmem>>, vector<32x32xf32>
    %c35 = arith.constant 35 : index
    %c0_107 = arith.constant 0 : index
    %322 = vector.load %arg3[%c35, %c0_107] : memref<64x128xf32, #tpu.memory_space<vmem>>, vector<1x32xf32>
    %cst_108 = arith.constant dense<0.000000e+00> : vector<8x96xf32>
    %323 = tpu.matmul %3, %319, %cst_108 {dimension_numbers = #tpu.dot_dimension_numbers<[1], [0], [0], [1], [0, 0, 1, 1], [], []>} : vector<8x32xf32>, vector<32x96xf32>, vector<8x96xf32> -> vector<8x96xf32>
    %324 = vector.broadcast %320 : vector<1x96xf32> to vector<8x96xf32>
    %325 = arith.addf %323, %324 : vector<8x96xf32>
    %326 = vector.extract_strided_slice %325 {offsets = [0, 0], sizes = [8, 32], strides = [1, 1]} : vector<8x96xf32> to vector<8x32xf32>
    %327 = vector.extract_strided_slice %325 {offsets = [0, 32], sizes = [8, 32], strides = [1, 1]} : vector<8x96xf32> to vector<8x32xf32>
    %328 = vector.extract_strided_slice %325 {offsets = [0, 64], sizes = [8, 32], strides = [1, 1]} : vector<8x96xf32> to vector<8x32xf32>
    %329 = vector.extract_strided_slice %326 {offsets = [0, 0], sizes = [8, 8], strides = [1, 1]} : vector<8x32xf32> to vector<8x8xf32>
    %330 = vector.extract_strided_slice %327 {offsets = [0, 0], sizes = [8, 8], strides = [1, 1]} : vector<8x32xf32> to vector<8x8xf32>
    %cst_109 = arith.constant dense<0.000000e+00> : vector<8x8xf32>
    %331 = tpu.matmul %329, %330, %cst_109 {dimension_numbers = #tpu.dot_dimension_numbers<[1], [1], [0], [0], [0, 0, 1, 0], [], []>} : vector<8x8xf32>, vector<8x8xf32>, vector<8x8xf32> -> vector<8x8xf32>
    %cst_110 = arith.constant dense<0xFF800000> : vector<8xf32>
    %332 = vector.multi_reduction <maximumf>, %331, %cst_110 [1] : vector<8x8xf32> to vector<8xf32>
    %333 = vector.shape_cast %332 : vector<8xf32> to vector<8x1xf32>
    %334 = vector.broadcast %333 : vector<8x1xf32> to vector<8x8xf32>
    %335 = arith.subf %331, %334 : vector<8x8xf32>
    %336 = math.exp %335 : vector<8x8xf32>
    %cst_111 = arith.constant dense<0.000000e+00> : vector<8xf32>
    %337 = vector.multi_reduction <add>, %336, %cst_111 [1] : vector<8x8xf32> to vector<8xf32>
    %338 = vector.shape_cast %337 : vector<8xf32> to vector<8x1xf32>
    %339 = vector.broadcast %338 : vector<8x1xf32> to vector<8x8xf32>
    %340 = arith.divf %336, %339 : vector<8x8xf32>
    %341 = vector.extract_strided_slice %328 {offsets = [0, 0], sizes = [8, 8], strides = [1, 1]} : vector<8x32xf32> to vector<8x8xf32>
    %cst_112 = arith.constant dense<0.000000e+00> : vector<8x8xf32>
    %342 = tpu.matmul %340, %341, %cst_112 {dimension_numbers = #tpu.dot_dimension_numbers<[1], [0], [0], [1], [0, 0, 1, 1], [], []>} : vector<8x8xf32>, vector<8x8xf32>, vector<8x8xf32> -> vector<8x8xf32>
    %343 = vector.extract_strided_slice %321 {offsets = [0, 0], sizes = [8, 32], strides = [1, 1]} : vector<32x32xf32> to vector<8x32xf32>
    %cst_113 = arith.constant dense<0.000000e+00> : vector<8x32xf32>
    %344 = tpu.matmul %342, %343, %cst_113 {dimension_numbers = #tpu.dot_dimension_numbers<[1], [0], [0], [1], [0, 0, 1, 1], [], []>} : vector<8x8xf32>, vector<8x32xf32>, vector<8x32xf32> -> vector<8x32xf32>
    %345 = vector.extract_strided_slice %326 {offsets = [0, 8], sizes = [8, 8], strides = [1, 1]} : vector<8x32xf32> to vector<8x8xf32>
    %346 = vector.extract_strided_slice %327 {offsets = [0, 8], sizes = [8, 8], strides = [1, 1]} : vector<8x32xf32> to vector<8x8xf32>
    %cst_114 = arith.constant dense<0.000000e+00> : vector<8x8xf32>
    %347 = tpu.matmul %345, %346, %cst_114 {dimension_numbers = #tpu.dot_dimension_numbers<[1], [1], [0], [0], [0, 0, 1, 0], [], []>} : vector<8x8xf32>, vector<8x8xf32>, vector<8x8xf32> -> vector<8x8xf32>
    %cst_115 = arith.constant dense<0xFF800000> : vector<8xf32>
    %348 = vector.multi_reduction <maximumf>, %347, %cst_115 [1] : vector<8x8xf32> to vector<8xf32>
    %349 = vector.shape_cast %348 : vector<8xf32> to vector<8x1xf32>
    %350 = vector.broadcast %349 : vector<8x1xf32> to vector<8x8xf32>
    %351 = arith.subf %347, %350 : vector<8x8xf32>
    %352 = math.exp %351 : vector<8x8xf32>
    %cst_116 = arith.constant dense<0.000000e+00> : vector<8xf32>
    %353 = vector.multi_reduction <add>, %352, %cst_116 [1] : vector<8x8xf32> to vector<8xf32>
    %354 = vector.shape_cast %353 : vector<8xf32> to vector<8x1xf32>
    %355 = vector.broadcast %354 : vector<8x1xf32> to vector<8x8xf32>
    %356 = arith.divf %352, %355 : vector<8x8xf32>
    %357 = vector.extract_strided_slice %328 {offsets = [0, 8], sizes = [8, 8], strides = [1, 1]} : vector<8x32xf32> to vector<8x8xf32>
    %cst_117 = arith.constant dense<0.000000e+00> : vector<8x8xf32>
    %358 = tpu.matmul %356, %357, %cst_117 {dimension_numbers = #tpu.dot_dimension_numbers<[1], [0], [0], [1], [0, 0, 1, 1], [], []>} : vector<8x8xf32>, vector<8x8xf32>, vector<8x8xf32> -> vector<8x8xf32>
    %359 = vector.extract_strided_slice %321 {offsets = [8, 0], sizes = [8, 32], strides = [1, 1]} : vector<32x32xf32> to vector<8x32xf32>
    %cst_118 = arith.constant dense<0.000000e+00> : vector<8x32xf32>
    %360 = tpu.matmul %358, %359, %cst_118 {dimension_numbers = #tpu.dot_dimension_numbers<[1], [0], [0], [1], [0, 0, 1, 1], [], []>} : vector<8x8xf32>, vector<8x32xf32>, vector<8x32xf32> -> vector<8x32xf32>
    %361 = arith.addf %344, %360 : vector<8x32xf32>
    %362 = vector.extract_strided_slice %326 {offsets = [0, 16], sizes = [8, 8], strides = [1, 1]} : vector<8x32xf32> to vector<8x8xf32>
    %363 = vector.extract_strided_slice %327 {offsets = [0, 16], sizes = [8, 8], strides = [1, 1]} : vector<8x32xf32> to vector<8x8xf32>
    %cst_119 = arith.constant dense<0.000000e+00> : vector<8x8xf32>
    %364 = tpu.matmul %362, %363, %cst_119 {dimension_numbers = #tpu.dot_dimension_numbers<[1], [1], [0], [0], [0, 0, 1, 0], [], []>} : vector<8x8xf32>, vector<8x8xf32>, vector<8x8xf32> -> vector<8x8xf32>
    %cst_120 = arith.constant dense<0xFF800000> : vector<8xf32>
    %365 = vector.multi_reduction <maximumf>, %364, %cst_120 [1] : vector<8x8xf32> to vector<8xf32>
    %366 = vector.shape_cast %365 : vector<8xf32> to vector<8x1xf32>
    %367 = vector.broadcast %366 : vector<8x1xf32> to vector<8x8xf32>
    %368 = arith.subf %364, %367 : vector<8x8xf32>
    %369 = math.exp %368 : vector<8x8xf32>
    %cst_121 = arith.constant dense<0.000000e+00> : vector<8xf32>
    %370 = vector.multi_reduction <add>, %369, %cst_121 [1] : vector<8x8xf32> to vector<8xf32>
    %371 = vector.shape_cast %370 : vector<8xf32> to vector<8x1xf32>
    %372 = vector.broadcast %371 : vector<8x1xf32> to vector<8x8xf32>
    %373 = arith.divf %369, %372 : vector<8x8xf32>
    %374 = vector.extract_strided_slice %328 {offsets = [0, 16], sizes = [8, 8], strides = [1, 1]} : vector<8x32xf32> to vector<8x8xf32>
    %cst_122 = arith.constant dense<0.000000e+00> : vector<8x8xf32>
    %375 = tpu.matmul %373, %374, %cst_122 {dimension_numbers = #tpu.dot_dimension_numbers<[1], [0], [0], [1], [0, 0, 1, 1], [], []>} : vector<8x8xf32>, vector<8x8xf32>, vector<8x8xf32> -> vector<8x8xf32>
    %376 = vector.extract_strided_slice %321 {offsets = [16, 0], sizes = [8, 32], strides = [1, 1]} : vector<32x32xf32> to vector<8x32xf32>
    %cst_123 = arith.constant dense<0.000000e+00> : vector<8x32xf32>
    %377 = tpu.matmul %375, %376, %cst_123 {dimension_numbers = #tpu.dot_dimension_numbers<[1], [0], [0], [1], [0, 0, 1, 1], [], []>} : vector<8x8xf32>, vector<8x32xf32>, vector<8x32xf32> -> vector<8x32xf32>
    %378 = arith.addf %361, %377 : vector<8x32xf32>
    %379 = vector.extract_strided_slice %326 {offsets = [0, 24], sizes = [8, 8], strides = [1, 1]} : vector<8x32xf32> to vector<8x8xf32>
    %380 = vector.extract_strided_slice %327 {offsets = [0, 24], sizes = [8, 8], strides = [1, 1]} : vector<8x32xf32> to vector<8x8xf32>
    %cst_124 = arith.constant dense<0.000000e+00> : vector<8x8xf32>
    %381 = tpu.matmul %379, %380, %cst_124 {dimension_numbers = #tpu.dot_dimension_numbers<[1], [1], [0], [0], [0, 0, 1, 0], [], []>} : vector<8x8xf32>, vector<8x8xf32>, vector<8x8xf32> -> vector<8x8xf32>
    %cst_125 = arith.constant dense<0xFF800000> : vector<8xf32>
    %382 = vector.multi_reduction <maximumf>, %381, %cst_125 [1] : vector<8x8xf32> to vector<8xf32>
    %383 = vector.shape_cast %382 : vector<8xf32> to vector<8x1xf32>
    %384 = vector.broadcast %383 : vector<8x1xf32> to vector<8x8xf32>
    %385 = arith.subf %381, %384 : vector<8x8xf32>
    %386 = math.exp %385 : vector<8x8xf32>
    %cst_126 = arith.constant dense<0.000000e+00> : vector<8xf32>
    %387 = vector.multi_reduction <add>, %386, %cst_126 [1] : vector<8x8xf32> to vector<8xf32>
    %388 = vector.shape_cast %387 : vector<8xf32> to vector<8x1xf32>
    %389 = vector.broadcast %388 : vector<8x1xf32> to vector<8x8xf32>
    %390 = arith.divf %386, %389 : vector<8x8xf32>
    %391 = vector.extract_strided_slice %328 {offsets = [0, 24], sizes = [8, 8], strides = [1, 1]} : vector<8x32xf32> to vector<8x8xf32>
    %cst_127 = arith.constant dense<0.000000e+00> : vector<8x8xf32>
    %392 = tpu.matmul %390, %391, %cst_127 {dimension_numbers = #tpu.dot_dimension_numbers<[1], [0], [0], [1], [0, 0, 1, 1], [], []>} : vector<8x8xf32>, vector<8x8xf32>, vector<8x8xf32> -> vector<8x8xf32>
    %393 = vector.extract_strided_slice %321 {offsets = [24, 0], sizes = [8, 32], strides = [1, 1]} : vector<32x32xf32> to vector<8x32xf32>
    %cst_128 = arith.constant dense<0.000000e+00> : vector<8x32xf32>
    %394 = tpu.matmul %392, %393, %cst_128 {dimension_numbers = #tpu.dot_dimension_numbers<[1], [0], [0], [1], [0, 0, 1, 1], [], []>} : vector<8x8xf32>, vector<8x32xf32>, vector<8x32xf32> -> vector<8x32xf32>
    %395 = arith.addf %378, %394 : vector<8x32xf32>
    %396 = vector.broadcast %322 : vector<1x32xf32> to vector<8x32xf32>
    %397 = arith.addf %395, %396 : vector<8x32xf32>
    %398 = arith.addf %3, %397 : vector<8x32xf32>
    %c36 = arith.constant 36 : index
    %c0_129 = arith.constant 0 : index
    %399 = vector.load %arg3[%c36, %c0_129] : memref<64x128xf32, #tpu.memory_space<vmem>>, vector<1x32xf32>
    %c37 = arith.constant 37 : index
    %c0_130 = arith.constant 0 : index
    %400 = vector.load %arg3[%c37, %c0_130] : memref<64x128xf32, #tpu.memory_space<vmem>>, vector<1x32xf32>
    %cst_131 = arith.constant dense<0.000000e+00> : vector<8xf32>
    %401 = vector.multi_reduction <add>, %398, %cst_131 [1] : vector<8x32xf32> to vector<8xf32>
    %402 = vector.shape_cast %401 : vector<8xf32> to vector<8x1xf32>
    %cst_132 = arith.constant 3.200000e+01 : f32
    %403 = vector.broadcast %cst_132 : f32 to vector<8x1xf32>
    %404 = arith.divf %402, %403 : vector<8x1xf32>
    %405 = vector.broadcast %404 : vector<8x1xf32> to vector<8x32xf32>
    %406 = arith.subf %398, %405 : vector<8x32xf32>
    %407 = arith.mulf %406, %406 : vector<8x32xf32>
    %cst_133 = arith.constant dense<0.000000e+00> : vector<8xf32>
    %408 = vector.multi_reduction <add>, %407, %cst_133 [1] : vector<8x32xf32> to vector<8xf32>
    %409 = vector.shape_cast %408 : vector<8xf32> to vector<8x1xf32>
    %cst_134 = arith.constant 3.200000e+01 : f32
    %410 = vector.broadcast %cst_134 : f32 to vector<8x1xf32>
    %411 = arith.divf %409, %410 : vector<8x1xf32>
    %412 = vector.broadcast %404 : vector<8x1xf32> to vector<8x32xf32>
    %413 = arith.subf %398, %412 : vector<8x32xf32>
    %cst_135 = arith.constant 9.99999974E-6 : f32
    %414 = vector.broadcast %cst_135 : f32 to vector<8x1xf32>
    %415 = arith.addf %411, %414 : vector<8x1xf32>
    %416 = math.rsqrt %415 : vector<8x1xf32>
    %417 = vector.broadcast %416 : vector<8x1xf32> to vector<8x32xf32>
    %418 = arith.mulf %413, %417 : vector<8x32xf32>
    %419 = vector.broadcast %399 : vector<1x32xf32> to vector<8x32xf32>
    %420 = arith.mulf %418, %419 : vector<8x32xf32>
    %421 = vector.broadcast %400 : vector<1x32xf32> to vector<8x32xf32>
    %422 = arith.addf %420, %421 : vector<8x32xf32>
    %c384 = arith.constant 384 : index
    %c0_136 = arith.constant 0 : index
    %423 = vector.load %arg2[%c384, %c0_136] : memref<800x128xf32, #tpu.memory_space<vmem>>, vector<32x96xf32>
    %c38 = arith.constant 38 : index
    %c0_137 = arith.constant 0 : index
    %424 = vector.load %arg3[%c38, %c0_137] : memref<64x128xf32, #tpu.memory_space<vmem>>, vector<1x96xf32>
    %c416 = arith.constant 416 : index
    %c0_138 = arith.constant 0 : index
    %425 = vector.load %arg2[%c416, %c0_138] : memref<800x128xf32, #tpu.memory_space<vmem>>, vector<32x32xf32>
    %c39 = arith.constant 39 : index
    %c0_139 = arith.constant 0 : index
    %426 = vector.load %arg3[%c39, %c0_139] : memref<64x128xf32, #tpu.memory_space<vmem>>, vector<1x32xf32>
    %427 = vector.extract_strided_slice %423 {offsets = [0, 0], sizes = [32, 32], strides = [1, 1]} : vector<32x96xf32> to vector<32x32xf32>
    %cst_140 = arith.constant dense<0.000000e+00> : vector<8x32xf32>
    %428 = tpu.matmul %422, %427, %cst_140 {dimension_numbers = #tpu.dot_dimension_numbers<[1], [0], [0], [1], [0, 0, 1, 1], [], []>} : vector<8x32xf32>, vector<32x32xf32>, vector<8x32xf32> -> vector<8x32xf32>
    %429 = vector.extract_strided_slice %424 {offsets = [0, 0], sizes = [1, 32], strides = [1, 1]} : vector<1x96xf32> to vector<1x32xf32>
    %430 = vector.broadcast %429 : vector<1x32xf32> to vector<8x32xf32>
    %431 = arith.addf %428, %430 : vector<8x32xf32>
    %432 = vector.extract_strided_slice %423 {offsets = [0, 32], sizes = [32, 64], strides = [1, 1]} : vector<32x96xf32> to vector<32x64xf32>
    %cst_141 = arith.constant dense<0.000000e+00> : vector<8x64xf32>
    %433 = tpu.matmul %318, %432, %cst_141 {dimension_numbers = #tpu.dot_dimension_numbers<[1], [0], [0], [1], [0, 0, 1, 1], [], []>} : vector<8x32xf32>, vector<32x64xf32>, vector<8x64xf32> -> vector<8x64xf32>
    %434 = vector.extract_strided_slice %424 {offsets = [0, 32], sizes = [1, 64], strides = [1, 1]} : vector<1x96xf32> to vector<1x64xf32>
    %435 = vector.broadcast %434 : vector<1x64xf32> to vector<8x64xf32>
    %436 = arith.addf %433, %435 : vector<8x64xf32>
    %437 = vector.extract_strided_slice %436 {offsets = [0, 0], sizes = [8, 32], strides = [1, 1]} : vector<8x64xf32> to vector<8x32xf32>
    %438 = vector.extract_strided_slice %436 {offsets = [0, 32], sizes = [8, 32], strides = [1, 1]} : vector<8x64xf32> to vector<8x32xf32>
    %439 = vector.extract_strided_slice %431 {offsets = [0, 0], sizes = [8, 8], strides = [1, 1]} : vector<8x32xf32> to vector<8x8xf32>
    %440 = vector.extract_strided_slice %437 {offsets = [0, 0], sizes = [8, 8], strides = [1, 1]} : vector<8x32xf32> to vector<8x8xf32>
    %cst_142 = arith.constant dense<0.000000e+00> : vector<8x8xf32>
    %441 = tpu.matmul %439, %440, %cst_142 {dimension_numbers = #tpu.dot_dimension_numbers<[1], [1], [0], [0], [0, 0, 1, 0], [], []>} : vector<8x8xf32>, vector<8x8xf32>, vector<8x8xf32> -> vector<8x8xf32>
    %cst_143 = arith.constant dense<0xFF800000> : vector<8xf32>
    %442 = vector.multi_reduction <maximumf>, %441, %cst_143 [1] : vector<8x8xf32> to vector<8xf32>
    %443 = vector.shape_cast %442 : vector<8xf32> to vector<8x1xf32>
    %444 = vector.broadcast %443 : vector<8x1xf32> to vector<8x8xf32>
    %445 = arith.subf %441, %444 : vector<8x8xf32>
    %446 = math.exp %445 : vector<8x8xf32>
    %cst_144 = arith.constant dense<0.000000e+00> : vector<8xf32>
    %447 = vector.multi_reduction <add>, %446, %cst_144 [1] : vector<8x8xf32> to vector<8xf32>
    %448 = vector.shape_cast %447 : vector<8xf32> to vector<8x1xf32>
    %449 = vector.broadcast %448 : vector<8x1xf32> to vector<8x8xf32>
    %450 = arith.divf %446, %449 : vector<8x8xf32>
    %451 = vector.extract_strided_slice %438 {offsets = [0, 0], sizes = [8, 8], strides = [1, 1]} : vector<8x32xf32> to vector<8x8xf32>
    %cst_145 = arith.constant dense<0.000000e+00> : vector<8x8xf32>
    %452 = tpu.matmul %450, %451, %cst_145 {dimension_numbers = #tpu.dot_dimension_numbers<[1], [0], [0], [1], [0, 0, 1, 1], [], []>} : vector<8x8xf32>, vector<8x8xf32>, vector<8x8xf32> -> vector<8x8xf32>
    %453 = vector.extract_strided_slice %425 {offsets = [0, 0], sizes = [8, 32], strides = [1, 1]} : vector<32x32xf32> to vector<8x32xf32>
    %cst_146 = arith.constant dense<0.000000e+00> : vector<8x32xf32>
    %454 = tpu.matmul %452, %453, %cst_146 {dimension_numbers = #tpu.dot_dimension_numbers<[1], [0], [0], [1], [0, 0, 1, 1], [], []>} : vector<8x8xf32>, vector<8x32xf32>, vector<8x32xf32> -> vector<8x32xf32>
    %455 = vector.extract_strided_slice %431 {offsets = [0, 8], sizes = [8, 8], strides = [1, 1]} : vector<8x32xf32> to vector<8x8xf32>
    %456 = vector.extract_strided_slice %437 {offsets = [0, 8], sizes = [8, 8], strides = [1, 1]} : vector<8x32xf32> to vector<8x8xf32>
    %cst_147 = arith.constant dense<0.000000e+00> : vector<8x8xf32>
    %457 = tpu.matmul %455, %456, %cst_147 {dimension_numbers = #tpu.dot_dimension_numbers<[1], [1], [0], [0], [0, 0, 1, 0], [], []>} : vector<8x8xf32>, vector<8x8xf32>, vector<8x8xf32> -> vector<8x8xf32>
    %cst_148 = arith.constant dense<0xFF800000> : vector<8xf32>
    %458 = vector.multi_reduction <maximumf>, %457, %cst_148 [1] : vector<8x8xf32> to vector<8xf32>
    %459 = vector.shape_cast %458 : vector<8xf32> to vector<8x1xf32>
    %460 = vector.broadcast %459 : vector<8x1xf32> to vector<8x8xf32>
    %461 = arith.subf %457, %460 : vector<8x8xf32>
    %462 = math.exp %461 : vector<8x8xf32>
    %cst_149 = arith.constant dense<0.000000e+00> : vector<8xf32>
    %463 = vector.multi_reduction <add>, %462, %cst_149 [1] : vector<8x8xf32> to vector<8xf32>
    %464 = vector.shape_cast %463 : vector<8xf32> to vector<8x1xf32>
    %465 = vector.broadcast %464 : vector<8x1xf32> to vector<8x8xf32>
    %466 = arith.divf %462, %465 : vector<8x8xf32>
    %467 = vector.extract_strided_slice %438 {offsets = [0, 8], sizes = [8, 8], strides = [1, 1]} : vector<8x32xf32> to vector<8x8xf32>
    %cst_150 = arith.constant dense<0.000000e+00> : vector<8x8xf32>
    %468 = tpu.matmul %466, %467, %cst_150 {dimension_numbers = #tpu.dot_dimension_numbers<[1], [0], [0], [1], [0, 0, 1, 1], [], []>} : vector<8x8xf32>, vector<8x8xf32>, vector<8x8xf32> -> vector<8x8xf32>
    %469 = vector.extract_strided_slice %425 {offsets = [8, 0], sizes = [8, 32], strides = [1, 1]} : vector<32x32xf32> to vector<8x32xf32>
    %cst_151 = arith.constant dense<0.000000e+00> : vector<8x32xf32>
    %470 = tpu.matmul %468, %469, %cst_151 {dimension_numbers = #tpu.dot_dimension_numbers<[1], [0], [0], [1], [0, 0, 1, 1], [], []>} : vector<8x8xf32>, vector<8x32xf32>, vector<8x32xf32> -> vector<8x32xf32>
    %471 = arith.addf %454, %470 : vector<8x32xf32>
    %472 = vector.extract_strided_slice %431 {offsets = [0, 16], sizes = [8, 8], strides = [1, 1]} : vector<8x32xf32> to vector<8x8xf32>
    %473 = vector.extract_strided_slice %437 {offsets = [0, 16], sizes = [8, 8], strides = [1, 1]} : vector<8x32xf32> to vector<8x8xf32>
    %cst_152 = arith.constant dense<0.000000e+00> : vector<8x8xf32>
    %474 = tpu.matmul %472, %473, %cst_152 {dimension_numbers = #tpu.dot_dimension_numbers<[1], [1], [0], [0], [0, 0, 1, 0], [], []>} : vector<8x8xf32>, vector<8x8xf32>, vector<8x8xf32> -> vector<8x8xf32>
    %cst_153 = arith.constant dense<0xFF800000> : vector<8xf32>
    %475 = vector.multi_reduction <maximumf>, %474, %cst_153 [1] : vector<8x8xf32> to vector<8xf32>
    %476 = vector.shape_cast %475 : vector<8xf32> to vector<8x1xf32>
    %477 = vector.broadcast %476 : vector<8x1xf32> to vector<8x8xf32>
    %478 = arith.subf %474, %477 : vector<8x8xf32>
    %479 = math.exp %478 : vector<8x8xf32>
    %cst_154 = arith.constant dense<0.000000e+00> : vector<8xf32>
    %480 = vector.multi_reduction <add>, %479, %cst_154 [1] : vector<8x8xf32> to vector<8xf32>
    %481 = vector.shape_cast %480 : vector<8xf32> to vector<8x1xf32>
    %482 = vector.broadcast %481 : vector<8x1xf32> to vector<8x8xf32>
    %483 = arith.divf %479, %482 : vector<8x8xf32>
    %484 = vector.extract_strided_slice %438 {offsets = [0, 16], sizes = [8, 8], strides = [1, 1]} : vector<8x32xf32> to vector<8x8xf32>
    %cst_155 = arith.constant dense<0.000000e+00> : vector<8x8xf32>
    %485 = tpu.matmul %483, %484, %cst_155 {dimension_numbers = #tpu.dot_dimension_numbers<[1], [0], [0], [1], [0, 0, 1, 1], [], []>} : vector<8x8xf32>, vector<8x8xf32>, vector<8x8xf32> -> vector<8x8xf32>
    %486 = vector.extract_strided_slice %425 {offsets = [16, 0], sizes = [8, 32], strides = [1, 1]} : vector<32x32xf32> to vector<8x32xf32>
    %cst_156 = arith.constant dense<0.000000e+00> : vector<8x32xf32>
    %487 = tpu.matmul %485, %486, %cst_156 {dimension_numbers = #tpu.dot_dimension_numbers<[1], [0], [0], [1], [0, 0, 1, 1], [], []>} : vector<8x8xf32>, vector<8x32xf32>, vector<8x32xf32> -> vector<8x32xf32>
    %488 = arith.addf %471, %487 : vector<8x32xf32>
    %489 = vector.extract_strided_slice %431 {offsets = [0, 24], sizes = [8, 8], strides = [1, 1]} : vector<8x32xf32> to vector<8x8xf32>
    %490 = vector.extract_strided_slice %437 {offsets = [0, 24], sizes = [8, 8], strides = [1, 1]} : vector<8x32xf32> to vector<8x8xf32>
    %cst_157 = arith.constant dense<0.000000e+00> : vector<8x8xf32>
    %491 = tpu.matmul %489, %490, %cst_157 {dimension_numbers = #tpu.dot_dimension_numbers<[1], [1], [0], [0], [0, 0, 1, 0], [], []>} : vector<8x8xf32>, vector<8x8xf32>, vector<8x8xf32> -> vector<8x8xf32>
    %cst_158 = arith.constant dense<0xFF800000> : vector<8xf32>
    %492 = vector.multi_reduction <maximumf>, %491, %cst_158 [1] : vector<8x8xf32> to vector<8xf32>
    %493 = vector.shape_cast %492 : vector<8xf32> to vector<8x1xf32>
    %494 = vector.broadcast %493 : vector<8x1xf32> to vector<8x8xf32>
    %495 = arith.subf %491, %494 : vector<8x8xf32>
    %496 = math.exp %495 : vector<8x8xf32>
    %cst_159 = arith.constant dense<0.000000e+00> : vector<8xf32>
    %497 = vector.multi_reduction <add>, %496, %cst_159 [1] : vector<8x8xf32> to vector<8xf32>
    %498 = vector.shape_cast %497 : vector<8xf32> to vector<8x1xf32>
    %499 = vector.broadcast %498 : vector<8x1xf32> to vector<8x8xf32>
    %500 = arith.divf %496, %499 : vector<8x8xf32>
    %501 = vector.extract_strided_slice %438 {offsets = [0, 24], sizes = [8, 8], strides = [1, 1]} : vector<8x32xf32> to vector<8x8xf32>
    %cst_160 = arith.constant dense<0.000000e+00> : vector<8x8xf32>
    %502 = tpu.matmul %500, %501, %cst_160 {dimension_numbers = #tpu.dot_dimension_numbers<[1], [0], [0], [1], [0, 0, 1, 1], [], []>} : vector<8x8xf32>, vector<8x8xf32>, vector<8x8xf32> -> vector<8x8xf32>
    %503 = vector.extract_strided_slice %425 {offsets = [24, 0], sizes = [8, 32], strides = [1, 1]} : vector<32x32xf32> to vector<8x32xf32>
    %cst_161 = arith.constant dense<0.000000e+00> : vector<8x32xf32>
    %504 = tpu.matmul %502, %503, %cst_161 {dimension_numbers = #tpu.dot_dimension_numbers<[1], [0], [0], [1], [0, 0, 1, 1], [], []>} : vector<8x8xf32>, vector<8x32xf32>, vector<8x32xf32> -> vector<8x32xf32>
    %505 = arith.addf %488, %504 : vector<8x32xf32>
    %506 = vector.broadcast %426 : vector<1x32xf32> to vector<8x32xf32>
    %507 = arith.addf %505, %506 : vector<8x32xf32>
    %508 = arith.addf %422, %507 : vector<8x32xf32>
    %c40 = arith.constant 40 : index
    %c0_162 = arith.constant 0 : index
    %509 = vector.load %arg3[%c40, %c0_162] : memref<64x128xf32, #tpu.memory_space<vmem>>, vector<1x32xf32>
    %c41 = arith.constant 41 : index
    %c0_163 = arith.constant 0 : index
    %510 = vector.load %arg3[%c41, %c0_163] : memref<64x128xf32, #tpu.memory_space<vmem>>, vector<1x32xf32>
    %cst_164 = arith.constant dense<0.000000e+00> : vector<8xf32>
    %511 = vector.multi_reduction <add>, %508, %cst_164 [1] : vector<8x32xf32> to vector<8xf32>
    %512 = vector.shape_cast %511 : vector<8xf32> to vector<8x1xf32>
    %cst_165 = arith.constant 3.200000e+01 : f32
    %513 = vector.broadcast %cst_165 : f32 to vector<8x1xf32>
    %514 = arith.divf %512, %513 : vector<8x1xf32>
    %515 = vector.broadcast %514 : vector<8x1xf32> to vector<8x32xf32>
    %516 = arith.subf %508, %515 : vector<8x32xf32>
    %517 = arith.mulf %516, %516 : vector<8x32xf32>
    %cst_166 = arith.constant dense<0.000000e+00> : vector<8xf32>
    %518 = vector.multi_reduction <add>, %517, %cst_166 [1] : vector<8x32xf32> to vector<8xf32>
    %519 = vector.shape_cast %518 : vector<8xf32> to vector<8x1xf32>
    %cst_167 = arith.constant 3.200000e+01 : f32
    %520 = vector.broadcast %cst_167 : f32 to vector<8x1xf32>
    %521 = arith.divf %519, %520 : vector<8x1xf32>
    %522 = vector.broadcast %514 : vector<8x1xf32> to vector<8x32xf32>
    %523 = arith.subf %508, %522 : vector<8x32xf32>
    %cst_168 = arith.constant 9.99999974E-6 : f32
    %524 = vector.broadcast %cst_168 : f32 to vector<8x1xf32>
    %525 = arith.addf %521, %524 : vector<8x1xf32>
    %526 = math.rsqrt %525 : vector<8x1xf32>
    %527 = vector.broadcast %526 : vector<8x1xf32> to vector<8x32xf32>
    %528 = arith.mulf %523, %527 : vector<8x32xf32>
    %529 = vector.broadcast %509 : vector<1x32xf32> to vector<8x32xf32>
    %530 = arith.mulf %528, %529 : vector<8x32xf32>
    %531 = vector.broadcast %510 : vector<1x32xf32> to vector<8x32xf32>
    %532 = arith.addf %530, %531 : vector<8x32xf32>
    %c448 = arith.constant 448 : index
    %c0_169 = arith.constant 0 : index
    %533 = vector.load %arg2[%c448, %c0_169] : memref<800x128xf32, #tpu.memory_space<vmem>>, vector<32x64xf32>
    %c42 = arith.constant 42 : index
    %c0_170 = arith.constant 0 : index
    %534 = vector.load %arg3[%c42, %c0_170] : memref<64x128xf32, #tpu.memory_space<vmem>>, vector<1x64xf32>
    %c480 = arith.constant 480 : index
    %c0_171 = arith.constant 0 : index
    %535 = vector.load %arg2[%c480, %c0_171] : memref<800x128xf32, #tpu.memory_space<vmem>>, vector<64x32xf32>
    %c43 = arith.constant 43 : index
    %c0_172 = arith.constant 0 : index
    %536 = vector.load %arg3[%c43, %c0_172] : memref<64x128xf32, #tpu.memory_space<vmem>>, vector<1x32xf32>
    %cst_173 = arith.constant dense<0.000000e+00> : vector<8x64xf32>
    %537 = tpu.matmul %532, %533, %cst_173 {dimension_numbers = #tpu.dot_dimension_numbers<[1], [0], [0], [1], [0, 0, 1, 1], [], []>} : vector<8x32xf32>, vector<32x64xf32>, vector<8x64xf32> -> vector<8x64xf32>
    %538 = vector.broadcast %534 : vector<1x64xf32> to vector<8x64xf32>
    %539 = arith.addf %537, %538 : vector<8x64xf32>
    %cst_174 = arith.constant 0.000000e+00 : f32
    %540 = vector.broadcast %cst_174 : f32 to vector<8x64xf32>
    %541 = arith.maximumf %539, %540 : vector<8x64xf32>
    %cst_175 = arith.constant dense<0.000000e+00> : vector<8x32xf32>
    %542 = tpu.matmul %541, %535, %cst_175 {dimension_numbers = #tpu.dot_dimension_numbers<[1], [0], [0], [1], [0, 0, 1, 1], [], []>} : vector<8x64xf32>, vector<64x32xf32>, vector<8x32xf32> -> vector<8x32xf32>
    %543 = vector.broadcast %536 : vector<1x32xf32> to vector<8x32xf32>
    %544 = arith.addf %542, %543 : vector<8x32xf32>
    %545 = arith.addf %532, %544 : vector<8x32xf32>
    %c44 = arith.constant 44 : index
    %c0_176 = arith.constant 0 : index
    %546 = vector.load %arg3[%c44, %c0_176] : memref<64x128xf32, #tpu.memory_space<vmem>>, vector<1x32xf32>
    %c45 = arith.constant 45 : index
    %c0_177 = arith.constant 0 : index
    %547 = vector.load %arg3[%c45, %c0_177] : memref<64x128xf32, #tpu.memory_space<vmem>>, vector<1x32xf32>
    %cst_178 = arith.constant dense<0.000000e+00> : vector<8xf32>
    %548 = vector.multi_reduction <add>, %545, %cst_178 [1] : vector<8x32xf32> to vector<8xf32>
    %549 = vector.shape_cast %548 : vector<8xf32> to vector<8x1xf32>
    %cst_179 = arith.constant 3.200000e+01 : f32
    %550 = vector.broadcast %cst_179 : f32 to vector<8x1xf32>
    %551 = arith.divf %549, %550 : vector<8x1xf32>
    %552 = vector.broadcast %551 : vector<8x1xf32> to vector<8x32xf32>
    %553 = arith.subf %545, %552 : vector<8x32xf32>
    %554 = arith.mulf %553, %553 : vector<8x32xf32>
    %cst_180 = arith.constant dense<0.000000e+00> : vector<8xf32>
    %555 = vector.multi_reduction <add>, %554, %cst_180 [1] : vector<8x32xf32> to vector<8xf32>
    %556 = vector.shape_cast %555 : vector<8xf32> to vector<8x1xf32>
    %cst_181 = arith.constant 3.200000e+01 : f32
    %557 = vector.broadcast %cst_181 : f32 to vector<8x1xf32>
    %558 = arith.divf %556, %557 : vector<8x1xf32>
    %559 = vector.broadcast %551 : vector<8x1xf32> to vector<8x32xf32>
    %560 = arith.subf %545, %559 : vector<8x32xf32>
    %cst_182 = arith.constant 9.99999974E-6 : f32
    %561 = vector.broadcast %cst_182 : f32 to vector<8x1xf32>
    %562 = arith.addf %558, %561 : vector<8x1xf32>
    %563 = math.rsqrt %562 : vector<8x1xf32>
    %564 = vector.broadcast %563 : vector<8x1xf32> to vector<8x32xf32>
    %565 = arith.mulf %560, %564 : vector<8x32xf32>
    %566 = vector.broadcast %546 : vector<1x32xf32> to vector<8x32xf32>
    %567 = arith.mulf %565, %566 : vector<8x32xf32>
    %568 = vector.broadcast %547 : vector<1x32xf32> to vector<8x32xf32>
    %569 = arith.addf %567, %568 : vector<8x32xf32>
    %c544 = arith.constant 544 : index
    %c0_183 = arith.constant 0 : index
    %570 = vector.load %arg2[%c544, %c0_183] : memref<800x128xf32, #tpu.memory_space<vmem>>, vector<32x96xf32>
    %c46 = arith.constant 46 : index
    %c0_184 = arith.constant 0 : index
    %571 = vector.load %arg3[%c46, %c0_184] : memref<64x128xf32, #tpu.memory_space<vmem>>, vector<1x96xf32>
    %c576 = arith.constant 576 : index
    %c0_185 = arith.constant 0 : index
    %572 = vector.load %arg2[%c576, %c0_185] : memref<800x128xf32, #tpu.memory_space<vmem>>, vector<32x32xf32>
    %c47 = arith.constant 47 : index
    %c0_186 = arith.constant 0 : index
    %573 = vector.load %arg3[%c47, %c0_186] : memref<64x128xf32, #tpu.memory_space<vmem>>, vector<1x32xf32>
    %cst_187 = arith.constant dense<0.000000e+00> : vector<8x96xf32>
    %574 = tpu.matmul %569, %570, %cst_187 {dimension_numbers = #tpu.dot_dimension_numbers<[1], [0], [0], [1], [0, 0, 1, 1], [], []>} : vector<8x32xf32>, vector<32x96xf32>, vector<8x96xf32> -> vector<8x96xf32>
    %575 = vector.broadcast %571 : vector<1x96xf32> to vector<8x96xf32>
    %576 = arith.addf %574, %575 : vector<8x96xf32>
    %577 = vector.extract_strided_slice %576 {offsets = [0, 0], sizes = [8, 32], strides = [1, 1]} : vector<8x96xf32> to vector<8x32xf32>
    %578 = vector.extract_strided_slice %576 {offsets = [0, 32], sizes = [8, 32], strides = [1, 1]} : vector<8x96xf32> to vector<8x32xf32>
    %579 = vector.extract_strided_slice %576 {offsets = [0, 64], sizes = [8, 32], strides = [1, 1]} : vector<8x96xf32> to vector<8x32xf32>
    %580 = vector.extract_strided_slice %577 {offsets = [0, 0], sizes = [8, 8], strides = [1, 1]} : vector<8x32xf32> to vector<8x8xf32>
    %581 = vector.extract_strided_slice %578 {offsets = [0, 0], sizes = [8, 8], strides = [1, 1]} : vector<8x32xf32> to vector<8x8xf32>
    %cst_188 = arith.constant dense<0.000000e+00> : vector<8x8xf32>
    %582 = tpu.matmul %580, %581, %cst_188 {dimension_numbers = #tpu.dot_dimension_numbers<[1], [1], [0], [0], [0, 0, 1, 0], [], []>} : vector<8x8xf32>, vector<8x8xf32>, vector<8x8xf32> -> vector<8x8xf32>
    %cst_189 = arith.constant dense<0xFF800000> : vector<8xf32>
    %583 = vector.multi_reduction <maximumf>, %582, %cst_189 [1] : vector<8x8xf32> to vector<8xf32>
    %584 = vector.shape_cast %583 : vector<8xf32> to vector<8x1xf32>
    %585 = vector.broadcast %584 : vector<8x1xf32> to vector<8x8xf32>
    %586 = arith.subf %582, %585 : vector<8x8xf32>
    %587 = math.exp %586 : vector<8x8xf32>
    %cst_190 = arith.constant dense<0.000000e+00> : vector<8xf32>
    %588 = vector.multi_reduction <add>, %587, %cst_190 [1] : vector<8x8xf32> to vector<8xf32>
    %589 = vector.shape_cast %588 : vector<8xf32> to vector<8x1xf32>
    %590 = vector.broadcast %589 : vector<8x1xf32> to vector<8x8xf32>
    %591 = arith.divf %587, %590 : vector<8x8xf32>
    %592 = vector.extract_strided_slice %579 {offsets = [0, 0], sizes = [8, 8], strides = [1, 1]} : vector<8x32xf32> to vector<8x8xf32>
    %cst_191 = arith.constant dense<0.000000e+00> : vector<8x8xf32>
    %593 = tpu.matmul %591, %592, %cst_191 {dimension_numbers = #tpu.dot_dimension_numbers<[1], [0], [0], [1], [0, 0, 1, 1], [], []>} : vector<8x8xf32>, vector<8x8xf32>, vector<8x8xf32> -> vector<8x8xf32>
    %594 = vector.extract_strided_slice %572 {offsets = [0, 0], sizes = [8, 32], strides = [1, 1]} : vector<32x32xf32> to vector<8x32xf32>
    %cst_192 = arith.constant dense<0.000000e+00> : vector<8x32xf32>
    %595 = tpu.matmul %593, %594, %cst_192 {dimension_numbers = #tpu.dot_dimension_numbers<[1], [0], [0], [1], [0, 0, 1, 1], [], []>} : vector<8x8xf32>, vector<8x32xf32>, vector<8x32xf32> -> vector<8x32xf32>
    %596 = vector.extract_strided_slice %577 {offsets = [0, 8], sizes = [8, 8], strides = [1, 1]} : vector<8x32xf32> to vector<8x8xf32>
    %597 = vector.extract_strided_slice %578 {offsets = [0, 8], sizes = [8, 8], strides = [1, 1]} : vector<8x32xf32> to vector<8x8xf32>
    %cst_193 = arith.constant dense<0.000000e+00> : vector<8x8xf32>
    %598 = tpu.matmul %596, %597, %cst_193 {dimension_numbers = #tpu.dot_dimension_numbers<[1], [1], [0], [0], [0, 0, 1, 0], [], []>} : vector<8x8xf32>, vector<8x8xf32>, vector<8x8xf32> -> vector<8x8xf32>
    %cst_194 = arith.constant dense<0xFF800000> : vector<8xf32>
    %599 = vector.multi_reduction <maximumf>, %598, %cst_194 [1] : vector<8x8xf32> to vector<8xf32>
    %600 = vector.shape_cast %599 : vector<8xf32> to vector<8x1xf32>
    %601 = vector.broadcast %600 : vector<8x1xf32> to vector<8x8xf32>
    %602 = arith.subf %598, %601 : vector<8x8xf32>
    %603 = math.exp %602 : vector<8x8xf32>
    %cst_195 = arith.constant dense<0.000000e+00> : vector<8xf32>
    %604 = vector.multi_reduction <add>, %603, %cst_195 [1] : vector<8x8xf32> to vector<8xf32>
    %605 = vector.shape_cast %604 : vector<8xf32> to vector<8x1xf32>
    %606 = vector.broadcast %605 : vector<8x1xf32> to vector<8x8xf32>
    %607 = arith.divf %603, %606 : vector<8x8xf32>
    %608 = vector.extract_strided_slice %579 {offsets = [0, 8], sizes = [8, 8], strides = [1, 1]} : vector<8x32xf32> to vector<8x8xf32>
    %cst_196 = arith.constant dense<0.000000e+00> : vector<8x8xf32>
    %609 = tpu.matmul %607, %608, %cst_196 {dimension_numbers = #tpu.dot_dimension_numbers<[1], [0], [0], [1], [0, 0, 1, 1], [], []>} : vector<8x8xf32>, vector<8x8xf32>, vector<8x8xf32> -> vector<8x8xf32>
    %610 = vector.extract_strided_slice %572 {offsets = [8, 0], sizes = [8, 32], strides = [1, 1]} : vector<32x32xf32> to vector<8x32xf32>
    %cst_197 = arith.constant dense<0.000000e+00> : vector<8x32xf32>
    %611 = tpu.matmul %609, %610, %cst_197 {dimension_numbers = #tpu.dot_dimension_numbers<[1], [0], [0], [1], [0, 0, 1, 1], [], []>} : vector<8x8xf32>, vector<8x32xf32>, vector<8x32xf32> -> vector<8x32xf32>
    %612 = arith.addf %595, %611 : vector<8x32xf32>
    %613 = vector.extract_strided_slice %577 {offsets = [0, 16], sizes = [8, 8], strides = [1, 1]} : vector<8x32xf32> to vector<8x8xf32>
    %614 = vector.extract_strided_slice %578 {offsets = [0, 16], sizes = [8, 8], strides = [1, 1]} : vector<8x32xf32> to vector<8x8xf32>
    %cst_198 = arith.constant dense<0.000000e+00> : vector<8x8xf32>
    %615 = tpu.matmul %613, %614, %cst_198 {dimension_numbers = #tpu.dot_dimension_numbers<[1], [1], [0], [0], [0, 0, 1, 0], [], []>} : vector<8x8xf32>, vector<8x8xf32>, vector<8x8xf32> -> vector<8x8xf32>
    %cst_199 = arith.constant dense<0xFF800000> : vector<8xf32>
    %616 = vector.multi_reduction <maximumf>, %615, %cst_199 [1] : vector<8x8xf32> to vector<8xf32>
    %617 = vector.shape_cast %616 : vector<8xf32> to vector<8x1xf32>
    %618 = vector.broadcast %617 : vector<8x1xf32> to vector<8x8xf32>
    %619 = arith.subf %615, %618 : vector<8x8xf32>
    %620 = math.exp %619 : vector<8x8xf32>
    %cst_200 = arith.constant dense<0.000000e+00> : vector<8xf32>
    %621 = vector.multi_reduction <add>, %620, %cst_200 [1] : vector<8x8xf32> to vector<8xf32>
    %622 = vector.shape_cast %621 : vector<8xf32> to vector<8x1xf32>
    %623 = vector.broadcast %622 : vector<8x1xf32> to vector<8x8xf32>
    %624 = arith.divf %620, %623 : vector<8x8xf32>
    %625 = vector.extract_strided_slice %579 {offsets = [0, 16], sizes = [8, 8], strides = [1, 1]} : vector<8x32xf32> to vector<8x8xf32>
    %cst_201 = arith.constant dense<0.000000e+00> : vector<8x8xf32>
    %626 = tpu.matmul %624, %625, %cst_201 {dimension_numbers = #tpu.dot_dimension_numbers<[1], [0], [0], [1], [0, 0, 1, 1], [], []>} : vector<8x8xf32>, vector<8x8xf32>, vector<8x8xf32> -> vector<8x8xf32>
    %627 = vector.extract_strided_slice %572 {offsets = [16, 0], sizes = [8, 32], strides = [1, 1]} : vector<32x32xf32> to vector<8x32xf32>
    %cst_202 = arith.constant dense<0.000000e+00> : vector<8x32xf32>
    %628 = tpu.matmul %626, %627, %cst_202 {dimension_numbers = #tpu.dot_dimension_numbers<[1], [0], [0], [1], [0, 0, 1, 1], [], []>} : vector<8x8xf32>, vector<8x32xf32>, vector<8x32xf32> -> vector<8x32xf32>
    %629 = arith.addf %612, %628 : vector<8x32xf32>
    %630 = vector.extract_strided_slice %577 {offsets = [0, 24], sizes = [8, 8], strides = [1, 1]} : vector<8x32xf32> to vector<8x8xf32>
    %631 = vector.extract_strided_slice %578 {offsets = [0, 24], sizes = [8, 8], strides = [1, 1]} : vector<8x32xf32> to vector<8x8xf32>
    %cst_203 = arith.constant dense<0.000000e+00> : vector<8x8xf32>
    %632 = tpu.matmul %630, %631, %cst_203 {dimension_numbers = #tpu.dot_dimension_numbers<[1], [1], [0], [0], [0, 0, 1, 0], [], []>} : vector<8x8xf32>, vector<8x8xf32>, vector<8x8xf32> -> vector<8x8xf32>
    %cst_204 = arith.constant dense<0xFF800000> : vector<8xf32>
    %633 = vector.multi_reduction <maximumf>, %632, %cst_204 [1] : vector<8x8xf32> to vector<8xf32>
    %634 = vector.shape_cast %633 : vector<8xf32> to vector<8x1xf32>
    %635 = vector.broadcast %634 : vector<8x1xf32> to vector<8x8xf32>
    %636 = arith.subf %632, %635 : vector<8x8xf32>
    %637 = math.exp %636 : vector<8x8xf32>
    %cst_205 = arith.constant dense<0.000000e+00> : vector<8xf32>
    %638 = vector.multi_reduction <add>, %637, %cst_205 [1] : vector<8x8xf32> to vector<8xf32>
    %639 = vector.shape_cast %638 : vector<8xf32> to vector<8x1xf32>
    %640 = vector.broadcast %639 : vector<8x1xf32> to vector<8x8xf32>
    %641 = arith.divf %637, %640 : vector<8x8xf32>
    %642 = vector.extract_strided_slice %579 {offsets = [0, 24], sizes = [8, 8], strides = [1, 1]} : vector<8x32xf32> to vector<8x8xf32>
    %cst_206 = arith.constant dense<0.000000e+00> : vector<8x8xf32>
    %643 = tpu.matmul %641, %642, %cst_206 {dimension_numbers = #tpu.dot_dimension_numbers<[1], [0], [0], [1], [0, 0, 1, 1], [], []>} : vector<8x8xf32>, vector<8x8xf32>, vector<8x8xf32> -> vector<8x8xf32>
    %644 = vector.extract_strided_slice %572 {offsets = [24, 0], sizes = [8, 32], strides = [1, 1]} : vector<32x32xf32> to vector<8x32xf32>
    %cst_207 = arith.constant dense<0.000000e+00> : vector<8x32xf32>
    %645 = tpu.matmul %643, %644, %cst_207 {dimension_numbers = #tpu.dot_dimension_numbers<[1], [0], [0], [1], [0, 0, 1, 1], [], []>} : vector<8x8xf32>, vector<8x32xf32>, vector<8x32xf32> -> vector<8x32xf32>
    %646 = arith.addf %629, %645 : vector<8x32xf32>
    %647 = vector.broadcast %573 : vector<1x32xf32> to vector<8x32xf32>
    %648 = arith.addf %646, %647 : vector<8x32xf32>
    %649 = arith.addf %569, %648 : vector<8x32xf32>
    %c48 = arith.constant 48 : index
    %c0_208 = arith.constant 0 : index
    %650 = vector.load %arg3[%c48, %c0_208] : memref<64x128xf32, #tpu.memory_space<vmem>>, vector<1x32xf32>
    %c49 = arith.constant 49 : index
    %c0_209 = arith.constant 0 : index
    %651 = vector.load %arg3[%c49, %c0_209] : memref<64x128xf32, #tpu.memory_space<vmem>>, vector<1x32xf32>
    %cst_210 = arith.constant dense<0.000000e+00> : vector<8xf32>
    %652 = vector.multi_reduction <add>, %649, %cst_210 [1] : vector<8x32xf32> to vector<8xf32>
    %653 = vector.shape_cast %652 : vector<8xf32> to vector<8x1xf32>
    %cst_211 = arith.constant 3.200000e+01 : f32
    %654 = vector.broadcast %cst_211 : f32 to vector<8x1xf32>
    %655 = arith.divf %653, %654 : vector<8x1xf32>
    %656 = vector.broadcast %655 : vector<8x1xf32> to vector<8x32xf32>
    %657 = arith.subf %649, %656 : vector<8x32xf32>
    %658 = arith.mulf %657, %657 : vector<8x32xf32>
    %cst_212 = arith.constant dense<0.000000e+00> : vector<8xf32>
    %659 = vector.multi_reduction <add>, %658, %cst_212 [1] : vector<8x32xf32> to vector<8xf32>
    %660 = vector.shape_cast %659 : vector<8xf32> to vector<8x1xf32>
    %cst_213 = arith.constant 3.200000e+01 : f32
    %661 = vector.broadcast %cst_213 : f32 to vector<8x1xf32>
    %662 = arith.divf %660, %661 : vector<8x1xf32>
    %663 = vector.broadcast %655 : vector<8x1xf32> to vector<8x32xf32>
    %664 = arith.subf %649, %663 : vector<8x32xf32>
    %cst_214 = arith.constant 9.99999974E-6 : f32
    %665 = vector.broadcast %cst_214 : f32 to vector<8x1xf32>
    %666 = arith.addf %662, %665 : vector<8x1xf32>
    %667 = math.rsqrt %666 : vector<8x1xf32>
    %668 = vector.broadcast %667 : vector<8x1xf32> to vector<8x32xf32>
    %669 = arith.mulf %664, %668 : vector<8x32xf32>
    %670 = vector.broadcast %650 : vector<1x32xf32> to vector<8x32xf32>
    %671 = arith.mulf %669, %670 : vector<8x32xf32>
    %672 = vector.broadcast %651 : vector<1x32xf32> to vector<8x32xf32>
    %673 = arith.addf %671, %672 : vector<8x32xf32>
    %c608 = arith.constant 608 : index
    %c0_215 = arith.constant 0 : index
    %674 = vector.load %arg2[%c608, %c0_215] : memref<800x128xf32, #tpu.memory_space<vmem>>, vector<32x96xf32>
    %c50 = arith.constant 50 : index
    %c0_216 = arith.constant 0 : index
    %675 = vector.load %arg3[%c50, %c0_216] : memref<64x128xf32, #tpu.memory_space<vmem>>, vector<1x96xf32>
    %c640 = arith.constant 640 : index
    %c0_217 = arith.constant 0 : index
    %676 = vector.load %arg2[%c640, %c0_217] : memref<800x128xf32, #tpu.memory_space<vmem>>, vector<32x32xf32>
    %c51 = arith.constant 51 : index
    %c0_218 = arith.constant 0 : index
    %677 = vector.load %arg3[%c51, %c0_218] : memref<64x128xf32, #tpu.memory_space<vmem>>, vector<1x32xf32>
    %678 = vector.extract_strided_slice %674 {offsets = [0, 0], sizes = [32, 32], strides = [1, 1]} : vector<32x96xf32> to vector<32x32xf32>
    %cst_219 = arith.constant dense<0.000000e+00> : vector<8x32xf32>
    %679 = tpu.matmul %673, %678, %cst_219 {dimension_numbers = #tpu.dot_dimension_numbers<[1], [0], [0], [1], [0, 0, 1, 1], [], []>} : vector<8x32xf32>, vector<32x32xf32>, vector<8x32xf32> -> vector<8x32xf32>
    %680 = vector.extract_strided_slice %675 {offsets = [0, 0], sizes = [1, 32], strides = [1, 1]} : vector<1x96xf32> to vector<1x32xf32>
    %681 = vector.broadcast %680 : vector<1x32xf32> to vector<8x32xf32>
    %682 = arith.addf %679, %681 : vector<8x32xf32>
    %683 = vector.extract_strided_slice %674 {offsets = [0, 32], sizes = [32, 64], strides = [1, 1]} : vector<32x96xf32> to vector<32x64xf32>
    %cst_220 = arith.constant dense<0.000000e+00> : vector<8x64xf32>
    %684 = tpu.matmul %318, %683, %cst_220 {dimension_numbers = #tpu.dot_dimension_numbers<[1], [0], [0], [1], [0, 0, 1, 1], [], []>} : vector<8x32xf32>, vector<32x64xf32>, vector<8x64xf32> -> vector<8x64xf32>
    %685 = vector.extract_strided_slice %675 {offsets = [0, 32], sizes = [1, 64], strides = [1, 1]} : vector<1x96xf32> to vector<1x64xf32>
    %686 = vector.broadcast %685 : vector<1x64xf32> to vector<8x64xf32>
    %687 = arith.addf %684, %686 : vector<8x64xf32>
    %688 = vector.extract_strided_slice %687 {offsets = [0, 0], sizes = [8, 32], strides = [1, 1]} : vector<8x64xf32> to vector<8x32xf32>
    %689 = vector.extract_strided_slice %687 {offsets = [0, 32], sizes = [8, 32], strides = [1, 1]} : vector<8x64xf32> to vector<8x32xf32>
    %690 = vector.extract_strided_slice %682 {offsets = [0, 0], sizes = [8, 8], strides = [1, 1]} : vector<8x32xf32> to vector<8x8xf32>
    %691 = vector.extract_strided_slice %688 {offsets = [0, 0], sizes = [8, 8], strides = [1, 1]} : vector<8x32xf32> to vector<8x8xf32>
    %cst_221 = arith.constant dense<0.000000e+00> : vector<8x8xf32>
    %692 = tpu.matmul %690, %691, %cst_221 {dimension_numbers = #tpu.dot_dimension_numbers<[1], [1], [0], [0], [0, 0, 1, 0], [], []>} : vector<8x8xf32>, vector<8x8xf32>, vector<8x8xf32> -> vector<8x8xf32>
    %cst_222 = arith.constant dense<0xFF800000> : vector<8xf32>
    %693 = vector.multi_reduction <maximumf>, %692, %cst_222 [1] : vector<8x8xf32> to vector<8xf32>
    %694 = vector.shape_cast %693 : vector<8xf32> to vector<8x1xf32>
    %695 = vector.broadcast %694 : vector<8x1xf32> to vector<8x8xf32>
    %696 = arith.subf %692, %695 : vector<8x8xf32>
    %697 = math.exp %696 : vector<8x8xf32>
    %cst_223 = arith.constant dense<0.000000e+00> : vector<8xf32>
    %698 = vector.multi_reduction <add>, %697, %cst_223 [1] : vector<8x8xf32> to vector<8xf32>
    %699 = vector.shape_cast %698 : vector<8xf32> to vector<8x1xf32>
    %700 = vector.broadcast %699 : vector<8x1xf32> to vector<8x8xf32>
    %701 = arith.divf %697, %700 : vector<8x8xf32>
    %702 = vector.extract_strided_slice %689 {offsets = [0, 0], sizes = [8, 8], strides = [1, 1]} : vector<8x32xf32> to vector<8x8xf32>
    %cst_224 = arith.constant dense<0.000000e+00> : vector<8x8xf32>
    %703 = tpu.matmul %701, %702, %cst_224 {dimension_numbers = #tpu.dot_dimension_numbers<[1], [0], [0], [1], [0, 0, 1, 1], [], []>} : vector<8x8xf32>, vector<8x8xf32>, vector<8x8xf32> -> vector<8x8xf32>
    %704 = vector.extract_strided_slice %676 {offsets = [0, 0], sizes = [8, 32], strides = [1, 1]} : vector<32x32xf32> to vector<8x32xf32>
    %cst_225 = arith.constant dense<0.000000e+00> : vector<8x32xf32>
    %705 = tpu.matmul %703, %704, %cst_225 {dimension_numbers = #tpu.dot_dimension_numbers<[1], [0], [0], [1], [0, 0, 1, 1], [], []>} : vector<8x8xf32>, vector<8x32xf32>, vector<8x32xf32> -> vector<8x32xf32>
    %706 = vector.extract_strided_slice %682 {offsets = [0, 8], sizes = [8, 8], strides = [1, 1]} : vector<8x32xf32> to vector<8x8xf32>
    %707 = vector.extract_strided_slice %688 {offsets = [0, 8], sizes = [8, 8], strides = [1, 1]} : vector<8x32xf32> to vector<8x8xf32>
    %cst_226 = arith.constant dense<0.000000e+00> : vector<8x8xf32>
    %708 = tpu.matmul %706, %707, %cst_226 {dimension_numbers = #tpu.dot_dimension_numbers<[1], [1], [0], [0], [0, 0, 1, 0], [], []>} : vector<8x8xf32>, vector<8x8xf32>, vector<8x8xf32> -> vector<8x8xf32>
    %cst_227 = arith.constant dense<0xFF800000> : vector<8xf32>
    %709 = vector.multi_reduction <maximumf>, %708, %cst_227 [1] : vector<8x8xf32> to vector<8xf32>
    %710 = vector.shape_cast %709 : vector<8xf32> to vector<8x1xf32>
    %711 = vector.broadcast %710 : vector<8x1xf32> to vector<8x8xf32>
    %712 = arith.subf %708, %711 : vector<8x8xf32>
    %713 = math.exp %712 : vector<8x8xf32>
    %cst_228 = arith.constant dense<0.000000e+00> : vector<8xf32>
    %714 = vector.multi_reduction <add>, %713, %cst_228 [1] : vector<8x8xf32> to vector<8xf32>
    %715 = vector.shape_cast %714 : vector<8xf32> to vector<8x1xf32>
    %716 = vector.broadcast %715 : vector<8x1xf32> to vector<8x8xf32>
    %717 = arith.divf %713, %716 : vector<8x8xf32>
    %718 = vector.extract_strided_slice %689 {offsets = [0, 8], sizes = [8, 8], strides = [1, 1]} : vector<8x32xf32> to vector<8x8xf32>
    %cst_229 = arith.constant dense<0.000000e+00> : vector<8x8xf32>
    %719 = tpu.matmul %717, %718, %cst_229 {dimension_numbers = #tpu.dot_dimension_numbers<[1], [0], [0], [1], [0, 0, 1, 1], [], []>} : vector<8x8xf32>, vector<8x8xf32>, vector<8x8xf32> -> vector<8x8xf32>
    %720 = vector.extract_strided_slice %676 {offsets = [8, 0], sizes = [8, 32], strides = [1, 1]} : vector<32x32xf32> to vector<8x32xf32>
    %cst_230 = arith.constant dense<0.000000e+00> : vector<8x32xf32>
    %721 = tpu.matmul %719, %720, %cst_230 {dimension_numbers = #tpu.dot_dimension_numbers<[1], [0], [0], [1], [0, 0, 1, 1], [], []>} : vector<8x8xf32>, vector<8x32xf32>, vector<8x32xf32> -> vector<8x32xf32>
    %722 = arith.addf %705, %721 : vector<8x32xf32>
    %723 = vector.extract_strided_slice %682 {offsets = [0, 16], sizes = [8, 8], strides = [1, 1]} : vector<8x32xf32> to vector<8x8xf32>
    %724 = vector.extract_strided_slice %688 {offsets = [0, 16], sizes = [8, 8], strides = [1, 1]} : vector<8x32xf32> to vector<8x8xf32>
    %cst_231 = arith.constant dense<0.000000e+00> : vector<8x8xf32>
    %725 = tpu.matmul %723, %724, %cst_231 {dimension_numbers = #tpu.dot_dimension_numbers<[1], [1], [0], [0], [0, 0, 1, 0], [], []>} : vector<8x8xf32>, vector<8x8xf32>, vector<8x8xf32> -> vector<8x8xf32>
    %cst_232 = arith.constant dense<0xFF800000> : vector<8xf32>
    %726 = vector.multi_reduction <maximumf>, %725, %cst_232 [1] : vector<8x8xf32> to vector<8xf32>
    %727 = vector.shape_cast %726 : vector<8xf32> to vector<8x1xf32>
    %728 = vector.broadcast %727 : vector<8x1xf32> to vector<8x8xf32>
    %729 = arith.subf %725, %728 : vector<8x8xf32>
    %730 = math.exp %729 : vector<8x8xf32>
    %cst_233 = arith.constant dense<0.000000e+00> : vector<8xf32>
    %731 = vector.multi_reduction <add>, %730, %cst_233 [1] : vector<8x8xf32> to vector<8xf32>
    %732 = vector.shape_cast %731 : vector<8xf32> to vector<8x1xf32>
    %733 = vector.broadcast %732 : vector<8x1xf32> to vector<8x8xf32>
    %734 = arith.divf %730, %733 : vector<8x8xf32>
    %735 = vector.extract_strided_slice %689 {offsets = [0, 16], sizes = [8, 8], strides = [1, 1]} : vector<8x32xf32> to vector<8x8xf32>
    %cst_234 = arith.constant dense<0.000000e+00> : vector<8x8xf32>
    %736 = tpu.matmul %734, %735, %cst_234 {dimension_numbers = #tpu.dot_dimension_numbers<[1], [0], [0], [1], [0, 0, 1, 1], [], []>} : vector<8x8xf32>, vector<8x8xf32>, vector<8x8xf32> -> vector<8x8xf32>
    %737 = vector.extract_strided_slice %676 {offsets = [16, 0], sizes = [8, 32], strides = [1, 1]} : vector<32x32xf32> to vector<8x32xf32>
    %cst_235 = arith.constant dense<0.000000e+00> : vector<8x32xf32>
    %738 = tpu.matmul %736, %737, %cst_235 {dimension_numbers = #tpu.dot_dimension_numbers<[1], [0], [0], [1], [0, 0, 1, 1], [], []>} : vector<8x8xf32>, vector<8x32xf32>, vector<8x32xf32> -> vector<8x32xf32>
    %739 = arith.addf %722, %738 : vector<8x32xf32>
    %740 = vector.extract_strided_slice %682 {offsets = [0, 24], sizes = [8, 8], strides = [1, 1]} : vector<8x32xf32> to vector<8x8xf32>
    %741 = vector.extract_strided_slice %688 {offsets = [0, 24], sizes = [8, 8], strides = [1, 1]} : vector<8x32xf32> to vector<8x8xf32>
    %cst_236 = arith.constant dense<0.000000e+00> : vector<8x8xf32>
    %742 = tpu.matmul %740, %741, %cst_236 {dimension_numbers = #tpu.dot_dimension_numbers<[1], [1], [0], [0], [0, 0, 1, 0], [], []>} : vector<8x8xf32>, vector<8x8xf32>, vector<8x8xf32> -> vector<8x8xf32>
    %cst_237 = arith.constant dense<0xFF800000> : vector<8xf32>
    %743 = vector.multi_reduction <maximumf>, %742, %cst_237 [1] : vector<8x8xf32> to vector<8xf32>
    %744 = vector.shape_cast %743 : vector<8xf32> to vector<8x1xf32>
    %745 = vector.broadcast %744 : vector<8x1xf32> to vector<8x8xf32>
    %746 = arith.subf %742, %745 : vector<8x8xf32>
    %747 = math.exp %746 : vector<8x8xf32>
    %cst_238 = arith.constant dense<0.000000e+00> : vector<8xf32>
    %748 = vector.multi_reduction <add>, %747, %cst_238 [1] : vector<8x8xf32> to vector<8xf32>
    %749 = vector.shape_cast %748 : vector<8xf32> to vector<8x1xf32>
    %750 = vector.broadcast %749 : vector<8x1xf32> to vector<8x8xf32>
    %751 = arith.divf %747, %750 : vector<8x8xf32>
    %752 = vector.extract_strided_slice %689 {offsets = [0, 24], sizes = [8, 8], strides = [1, 1]} : vector<8x32xf32> to vector<8x8xf32>
    %cst_239 = arith.constant dense<0.000000e+00> : vector<8x8xf32>
    %753 = tpu.matmul %751, %752, %cst_239 {dimension_numbers = #tpu.dot_dimension_numbers<[1], [0], [0], [1], [0, 0, 1, 1], [], []>} : vector<8x8xf32>, vector<8x8xf32>, vector<8x8xf32> -> vector<8x8xf32>
    %754 = vector.extract_strided_slice %676 {offsets = [24, 0], sizes = [8, 32], strides = [1, 1]} : vector<32x32xf32> to vector<8x32xf32>
    %cst_240 = arith.constant dense<0.000000e+00> : vector<8x32xf32>
    %755 = tpu.matmul %753, %754, %cst_240 {dimension_numbers = #tpu.dot_dimension_numbers<[1], [0], [0], [1], [0, 0, 1, 1], [], []>} : vector<8x8xf32>, vector<8x32xf32>, vector<8x32xf32> -> vector<8x32xf32>
    %756 = arith.addf %739, %755 : vector<8x32xf32>
    %757 = vector.broadcast %677 : vector<1x32xf32> to vector<8x32xf32>
    %758 = arith.addf %756, %757 : vector<8x32xf32>
    %759 = arith.addf %673, %758 : vector<8x32xf32>
    %c52 = arith.constant 52 : index
    %c0_241 = arith.constant 0 : index
    %760 = vector.load %arg3[%c52, %c0_241] : memref<64x128xf32, #tpu.memory_space<vmem>>, vector<1x32xf32>
    %c53 = arith.constant 53 : index
    %c0_242 = arith.constant 0 : index
    %761 = vector.load %arg3[%c53, %c0_242] : memref<64x128xf32, #tpu.memory_space<vmem>>, vector<1x32xf32>
    %cst_243 = arith.constant dense<0.000000e+00> : vector<8xf32>
    %762 = vector.multi_reduction <add>, %759, %cst_243 [1] : vector<8x32xf32> to vector<8xf32>
    %763 = vector.shape_cast %762 : vector<8xf32> to vector<8x1xf32>
    %cst_244 = arith.constant 3.200000e+01 : f32
    %764 = vector.broadcast %cst_244 : f32 to vector<8x1xf32>
    %765 = arith.divf %763, %764 : vector<8x1xf32>
    %766 = vector.broadcast %765 : vector<8x1xf32> to vector<8x32xf32>
    %767 = arith.subf %759, %766 : vector<8x32xf32>
    %768 = arith.mulf %767, %767 : vector<8x32xf32>
    %cst_245 = arith.constant dense<0.000000e+00> : vector<8xf32>
    %769 = vector.multi_reduction <add>, %768, %cst_245 [1] : vector<8x32xf32> to vector<8xf32>
    %770 = vector.shape_cast %769 : vector<8xf32> to vector<8x1xf32>
    %cst_246 = arith.constant 3.200000e+01 : f32
    %771 = vector.broadcast %cst_246 : f32 to vector<8x1xf32>
    %772 = arith.divf %770, %771 : vector<8x1xf32>
    %773 = vector.broadcast %765 : vector<8x1xf32> to vector<8x32xf32>
    %774 = arith.subf %759, %773 : vector<8x32xf32>
    %cst_247 = arith.constant 9.99999974E-6 : f32
    %775 = vector.broadcast %cst_247 : f32 to vector<8x1xf32>
    %776 = arith.addf %772, %775 : vector<8x1xf32>
    %777 = math.rsqrt %776 : vector<8x1xf32>
    %778 = vector.broadcast %777 : vector<8x1xf32> to vector<8x32xf32>
    %779 = arith.mulf %774, %778 : vector<8x32xf32>
    %780 = vector.broadcast %760 : vector<1x32xf32> to vector<8x32xf32>
    %781 = arith.mulf %779, %780 : vector<8x32xf32>
    %782 = vector.broadcast %761 : vector<1x32xf32> to vector<8x32xf32>
    %783 = arith.addf %781, %782 : vector<8x32xf32>
    %c672 = arith.constant 672 : index
    %c0_248 = arith.constant 0 : index
    %784 = vector.load %arg2[%c672, %c0_248] : memref<800x128xf32, #tpu.memory_space<vmem>>, vector<32x64xf32>
    %c54 = arith.constant 54 : index
    %c0_249 = arith.constant 0 : index
    %785 = vector.load %arg3[%c54, %c0_249] : memref<64x128xf32, #tpu.memory_space<vmem>>, vector<1x64xf32>
    %c704 = arith.constant 704 : index
    %c0_250 = arith.constant 0 : index
    %786 = vector.load %arg2[%c704, %c0_250] : memref<800x128xf32, #tpu.memory_space<vmem>>, vector<64x32xf32>
    %c55 = arith.constant 55 : index
    %c0_251 = arith.constant 0 : index
    %787 = vector.load %arg3[%c55, %c0_251] : memref<64x128xf32, #tpu.memory_space<vmem>>, vector<1x32xf32>
    %cst_252 = arith.constant dense<0.000000e+00> : vector<8x64xf32>
    %788 = tpu.matmul %783, %784, %cst_252 {dimension_numbers = #tpu.dot_dimension_numbers<[1], [0], [0], [1], [0, 0, 1, 1], [], []>} : vector<8x32xf32>, vector<32x64xf32>, vector<8x64xf32> -> vector<8x64xf32>
    %789 = vector.broadcast %785 : vector<1x64xf32> to vector<8x64xf32>
    %790 = arith.addf %788, %789 : vector<8x64xf32>
    %cst_253 = arith.constant 0.000000e+00 : f32
    %791 = vector.broadcast %cst_253 : f32 to vector<8x64xf32>
    %792 = arith.maximumf %790, %791 : vector<8x64xf32>
    %cst_254 = arith.constant dense<0.000000e+00> : vector<8x32xf32>
    %793 = tpu.matmul %792, %786, %cst_254 {dimension_numbers = #tpu.dot_dimension_numbers<[1], [0], [0], [1], [0, 0, 1, 1], [], []>} : vector<8x64xf32>, vector<64x32xf32>, vector<8x32xf32> -> vector<8x32xf32>
    %794 = vector.broadcast %787 : vector<1x32xf32> to vector<8x32xf32>
    %795 = arith.addf %793, %794 : vector<8x32xf32>
    %796 = arith.addf %783, %795 : vector<8x32xf32>
    %c56 = arith.constant 56 : index
    %c0_255 = arith.constant 0 : index
    %797 = vector.load %arg3[%c56, %c0_255] : memref<64x128xf32, #tpu.memory_space<vmem>>, vector<1x32xf32>
    %c57 = arith.constant 57 : index
    %c0_256 = arith.constant 0 : index
    %798 = vector.load %arg3[%c57, %c0_256] : memref<64x128xf32, #tpu.memory_space<vmem>>, vector<1x32xf32>
    %cst_257 = arith.constant dense<0.000000e+00> : vector<8xf32>
    %799 = vector.multi_reduction <add>, %796, %cst_257 [1] : vector<8x32xf32> to vector<8xf32>
    %800 = vector.shape_cast %799 : vector<8xf32> to vector<8x1xf32>
    %cst_258 = arith.constant 3.200000e+01 : f32
    %801 = vector.broadcast %cst_258 : f32 to vector<8x1xf32>
    %802 = arith.divf %800, %801 : vector<8x1xf32>
    %803 = vector.broadcast %802 : vector<8x1xf32> to vector<8x32xf32>
    %804 = arith.subf %796, %803 : vector<8x32xf32>
    %805 = arith.mulf %804, %804 : vector<8x32xf32>
    %cst_259 = arith.constant dense<0.000000e+00> : vector<8xf32>
    %806 = vector.multi_reduction <add>, %805, %cst_259 [1] : vector<8x32xf32> to vector<8xf32>
    %807 = vector.shape_cast %806 : vector<8xf32> to vector<8x1xf32>
    %cst_260 = arith.constant 3.200000e+01 : f32
    %808 = vector.broadcast %cst_260 : f32 to vector<8x1xf32>
    %809 = arith.divf %807, %808 : vector<8x1xf32>
    %810 = vector.broadcast %802 : vector<8x1xf32> to vector<8x32xf32>
    %811 = arith.subf %796, %810 : vector<8x32xf32>
    %cst_261 = arith.constant 9.99999974E-6 : f32
    %812 = vector.broadcast %cst_261 : f32 to vector<8x1xf32>
    %813 = arith.addf %809, %812 : vector<8x1xf32>
    %814 = math.rsqrt %813 : vector<8x1xf32>
    %815 = vector.broadcast %814 : vector<8x1xf32> to vector<8x32xf32>
    %816 = arith.mulf %811, %815 : vector<8x32xf32>
    %817 = vector.broadcast %797 : vector<1x32xf32> to vector<8x32xf32>
    %818 = arith.mulf %816, %817 : vector<8x32xf32>
    %819 = vector.broadcast %798 : vector<1x32xf32> to vector<8x32xf32>
    %820 = arith.addf %818, %819 : vector<8x32xf32>
    %c58 = arith.constant 58 : index
    %c0_262 = arith.constant 0 : index
    %821 = vector.load %arg3[%c58, %c0_262] : memref<64x128xf32, #tpu.memory_space<vmem>>, vector<1x32xf32>
    %c59 = arith.constant 59 : index
    %c0_263 = arith.constant 0 : index
    %822 = vector.load %arg3[%c59, %c0_263] : memref<64x128xf32, #tpu.memory_space<vmem>>, vector<1x32xf32>
    %cst_264 = arith.constant dense<0.000000e+00> : vector<8xf32>
    %823 = vector.multi_reduction <add>, %820, %cst_264 [1] : vector<8x32xf32> to vector<8xf32>
    %824 = vector.shape_cast %823 : vector<8xf32> to vector<8x1xf32>
    %cst_265 = arith.constant 3.200000e+01 : f32
    %825 = vector.broadcast %cst_265 : f32 to vector<8x1xf32>
    %826 = arith.divf %824, %825 : vector<8x1xf32>
    %827 = vector.broadcast %826 : vector<8x1xf32> to vector<8x32xf32>
    %828 = arith.subf %820, %827 : vector<8x32xf32>
    %829 = arith.mulf %828, %828 : vector<8x32xf32>
    %cst_266 = arith.constant dense<0.000000e+00> : vector<8xf32>
    %830 = vector.multi_reduction <add>, %829, %cst_266 [1] : vector<8x32xf32> to vector<8xf32>
    %831 = vector.shape_cast %830 : vector<8xf32> to vector<8x1xf32>
    %cst_267 = arith.constant 3.200000e+01 : f32
    %832 = vector.broadcast %cst_267 : f32 to vector<8x1xf32>
    %833 = arith.divf %831, %832 : vector<8x1xf32>
    %834 = vector.broadcast %826 : vector<8x1xf32> to vector<8x32xf32>
    %835 = arith.subf %820, %834 : vector<8x32xf32>
    %cst_268 = arith.constant 9.99999974E-6 : f32
    %836 = vector.broadcast %cst_268 : f32 to vector<8x1xf32>
    %837 = arith.addf %833, %836 : vector<8x1xf32>
    %838 = math.rsqrt %837 : vector<8x1xf32>
    %839 = vector.broadcast %838 : vector<8x1xf32> to vector<8x32xf32>
    %840 = arith.mulf %835, %839 : vector<8x32xf32>
    %841 = vector.broadcast %821 : vector<1x32xf32> to vector<8x32xf32>
    %842 = arith.mulf %840, %841 : vector<8x32xf32>
    %843 = vector.broadcast %822 : vector<1x32xf32> to vector<8x32xf32>
    %844 = arith.addf %842, %843 : vector<8x32xf32>
    %c768 = arith.constant 768 : index
    %c0_269 = arith.constant 0 : index
    %845 = vector.load %arg2[%c768, %c0_269] : memref<800x128xf32, #tpu.memory_space<vmem>>, vector<32x10xf32>
    %c60 = arith.constant 60 : index
    %c0_270 = arith.constant 0 : index
    %846 = vector.load %arg3[%c60, %c0_270] : memref<64x128xf32, #tpu.memory_space<vmem>>, vector<1x10xf32>
    %cst_271 = arith.constant dense<0.000000e+00> : vector<8x10xf32>
    %847 = tpu.matmul %844, %845, %cst_271 {dimension_numbers = #tpu.dot_dimension_numbers<[1], [0], [0], [1], [0, 0, 1, 1], [], []>} : vector<8x32xf32>, vector<32x10xf32>, vector<8x10xf32> -> vector<8x10xf32>
    %848 = vector.broadcast %846 : vector<1x10xf32> to vector<8x10xf32>
    %849 = arith.addf %847, %848 : vector<8x10xf32>
    %c0_272 = arith.constant 0 : index
    %c0_273 = arith.constant 0 : index
    %850 = vector.load %arg4[%c0_272, %c0_273] : memref<8x10xf32, #tpu.memory_space<vmem>>, vector<8x10xf32>
    tpu.vector_store %arg4[%c0_272, %c0_273], %849 {strides = array<i32>} : memref<8x10xf32, #tpu.memory_space<vmem>>, vector<8x10xf32>,
    return
  }
  func.func @transform_0(%arg0: i32) -> (i32, i32, i32) {
    %c0_i32 = arith.constant 0 : i32
    %c0_i32_0 = arith.constant 0 : i32
    %c0_i32_1 = arith.constant 0 : i32
    %c0_i32_2 = arith.constant 0 : i32
    return %c0_i32, %c0_i32_0, %c0_i32_1 : i32, i32, i32
  }
  func.func @transform_1(%arg0: i32) -> (i32, i32) {
    %c0_i32 = arith.constant 0 : i32
    %c0_i32_0 = arith.constant 0 : i32
    %c0_i32_1 = arith.constant 0 : i32
    return %c0_i32, %c0_i32_0 : i32, i32
  }
  func.func @transform_2(%arg0: i32) -> (i32, i32) {
    %c0_i32 = arith.constant 0 : i32
    %c0_i32_0 = arith.constant 0 : i32
    %c0_i32_1 = arith.constant 0 : i32
    return %c0_i32, %c0_i32_0 : i32, i32
  }
  func.func @transform_3(%arg0: i32) -> (i32, i32) {
    %c0_i32 = arith.constant 0 : i32
    %c0_i32_0 = arith.constant 0 : i32
    %c0_i32_1 = arith.constant 0 : i32
    return %c0_i32, %c0_i32_0 : i32, i32
  }
}

</mosaic_0001>

<llo_original>
// kernel: tpu_custom_call.1
$region0: #{tpu_custom_call.1}
  #allocation0 [shape = 'u32[]', space=smem, size = 0x4, offset = 0x4, fixed_abs, tag = 'smem constant byte address 0x4 - core index']
  #allocation1 [shape = 'u32[72,128]{1,0:T(1,128)}', space=vmem, size = 0x9000, scoped, tag = 'internal scratch']
  %s0 = inlined_call_operand.hbm [shape: f32[8,2,32], index: 0, kind: input, shape index: {}]
  %s1 = inlined_call_operand.hbm [shape: f32[800,128], index: 1, kind: input, shape index: {}]
  %s2 = inlined_call_operand.hbm [shape: f32[64,128], index: 2, kind: input, shape index: {}]
  %s3 = inlined_call_operand.hbm [shape: f32[8,10], index: 3, kind: output, shape index: {}]
  %s4 = sld [smem:[#allocation0]]
  $region34: #{tpu_custom_call.1} parent=0
    _
  %s6 = ssub.s32 1, %s4
  %s7 = scalar_select 0, %s6, %s4
  $region1: #{tpu_custom_call.1} parent=0
    #allocation2 [shape = 'u8[8192]{0}', space=vmem, size = 0x2000, scoped, tag = 'input window, operand 0, single buffered']
    #allocation3 [shape = 's32[1]{0}', space=sflag, size = 0x4, scoped, tag = 'scoped memory for tpu_custom_call.1']
    #allocation4 [shape = 's32[1]{0}', space=sflag, size = 0x4, scoped, tag = 'scoped memory for tpu_custom_call.1']
    #allocation5 [shape = 'u8[409600]{0}', space=vmem, size = 0x64000, scoped, tag = 'input window, operand 1, single buffered']
    #allocation6 [shape = 's32[1]{0}', space=sflag, size = 0x4, scoped, tag = 'scoped memory for tpu_custom_call.1']
    #allocation7 [shape = 'u8[32768]{0}', space=vmem, size = 0x8000, scoped, tag = 'input window, operand 2, single buffered']
    #allocation8 [shape = 'u8[4096]{0}', space=vmem, size = 0x1000, scoped, tag = 'output window, operand 0, single buffered']
    %8 = vsyncpa [#allocation3], 0
    %9 = vsyncpa [#allocation6], 0
    %10 = vsyncpa [#allocation4], 0
    // Predicated region
    $region2: #{tpu_custom_call.1} parent=1 // pred_check
      _
    $region3: #{tpu_custom_call.1} parent=1 // pred_check_branch
      %12 = sbr.rel (0) target = $region5
    $region4: #{tpu_custom_call.1} parent=1 // pred_region
      %14 = vsyncadd [#allocation3], 0
      %s15 = sshll.u32 %s0, 4
      %s16 = int_to_ptr.hbm [resolvable:$true] %s15
      %s17 = sshll.u32 [#allocation2], 4
      %s18 = int_to_ptr.vmem [resolvable:$true] %s17
      %23 = dma.hbm_to_vmem [thread:$0]  %s16, 256, %s18, [#allocation3], 32, 32, 2
    $region5: #{tpu_custom_call.1} parent=1 // pred_fallthru
      _
    // Predicated region
    $region6: #{tpu_custom_call.1} parent=1 // pred_check
      _
    $region7: #{tpu_custom_call.1} parent=1 // pred_check_branch
      %25 = sbr.rel (0) target = $region9
    $region8: #{tpu_custom_call.1} parent=1 // pred_region
      %27 = vsyncadd [#allocation6], 0
      %s28 = sshll.u32 %s1, 4
      %s29 = int_to_ptr.hbm [resolvable:$true] %s28
      %s30 = sshll.u32 [#allocation5], 4
      %s31 = int_to_ptr.vmem [resolvable:$true] %s30
      %36 = dma.hbm_to_vmem [thread:$0]  %s29, 12800, %s31, [#allocation6], 128, 128, 8
    $region9: #{tpu_custom_call.1} parent=1 // pred_fallthru
      _
    // Predicated region
    $region10: #{tpu_custom_call.1} parent=1 // pred_check
      _
    $region11: #{tpu_custom_call.1} parent=1 // pred_check_branch
      %38 = sbr.rel (0) target = $region13
    $region12: #{tpu_custom_call.1} parent=1 // pred_region
      %40 = vsyncadd [#allocation6], 0
      %s41 = sshll.u32 %s2, 4
      %s42 = int_to_ptr.hbm [resolvable:$true] %s41
      %s43 = sshll.u32 [#allocation7], 4
      %s44 = int_to_ptr.vmem [resolvable:$true] %s43
      %49 = dma.hbm_to_vmem [thread:$0]  %s42, 1024, %s44, [#allocation6], 128, 128, 8
    $region13: #{tpu_custom_call.1} parent=1 // pred_fallthru
      _
    // Predicated region
    $region14: #{tpu_custom_call.1} parent=1 // pred_check
      _
    $region15: #{tpu_custom_call.1} parent=1 // pred_check_branch
      %51 = sbr.rel (0) target = $region17
    $region16: #{tpu_custom_call.1} parent=1 // pred_region
      %53 = dma.done [#allocation3], 256
    $region17: #{tpu_custom_call.1} parent=1 // pred_fallthru
      _
    // Predicated region
    $region18: #{tpu_custom_call.1} parent=1 // pred_check
      _
    $region19: #{tpu_custom_call.1} parent=1 // pred_check_branch
      %55 = sbr.rel (0) target = $region21
    $region20: #{tpu_custom_call.1} parent=1 // pred_region
      %57 = dma.done [#allocation6], 12800
    $region21: #{tpu_custom_call.1} parent=1 // pred_fallthru
      _
    // Predicated region
    $region22: #{tpu_custom_call.1} parent=1 // pred_check
      _
    $region23: #{tpu_custom_call.1} parent=1 // pred_check_branch
      %59 = sbr.rel (0) target = $region25
    $region24: #{tpu_custom_call.1} parent=1 // pred_region
      %61 = dma.done [#allocation6], 1024
    $region25: #{tpu_custom_call.1} parent=1 // pred_fallthru
      _
    %v62 = vld [vmem:[#allocation2 + $0x1] sm:$0x1]
    %v63 = vld [vmem:[#allocation2 + $0x3] sm:$0x1]
    %v64 = vld [vmem:[#allocation2 + $0x5] sm:$0x1]
    %v65 = vld [vmem:[#allocation2 + $0x7] sm:$0x1]
    %v66 = vld [vmem:[#allocation2 + $0x9] sm:$0x1]
    %v67 = vld [vmem:[#allocation2 + $0xb] sm:$0x1]
    %v68 = vld [vmem:[#allocation2 + $0xd] sm:$0x1]
    %v69 = vld [vmem:[#allocation2 + $0xf] sm:$0x1]
    %v70 = vld [vmem:[#allocation7] sm:$0xff]
    %v72 = vrot.slane %v70, 1
    %v73 = vrot.slane %v70, 2
    %v74 = vrot.slane %v70, 3
    %v75 = vrot.slane %v70, 4
    %v76 = vrot.slane %v70, 5
    %v77 = vrot.slane %v70, 6
    %v78 = vrot.slane %v70, 7
    %v87 = vadd.f32 %v62, %v70
    %v88 = vadd.f32 %v63, %v72
    %v89 = vadd.f32 %v64, %v73
    %v90 = vadd.f32 %v65, %v74
    %v91 = vadd.f32 %v66, %v75
    %v92 = vadd.f32 %v67, %v76
    %v93 = vadd.f32 %v68, %v77
    %v94 = vadd.f32 %v69, %v78
    %v95 = vld [vmem:[#allocation7 + $0x8] sm:$0xff]
    %v96 = vld [vmem:[#allocation5] sm:$0xff]
    %v97 = vld [vmem:[#allocation5 + $0x8] sm:$0xff]
    %v98 = vld [vmem:[#allocation5 + $0x10] sm:$0xff]
    %v99 = vld [vmem:[#allocation5 + $0x18] sm:$0xff]
    %v100 = vld [vmem:[#allocation7 + $0x10] sm:$0x1]
    %v101 = vld [vmem:[#allocation5 + $0x20] sm:$0xff]
    %v102 = vld [vmem:[#allocation5 + $0x28] sm:$0xff]
    %v103 = vld [vmem:[#allocation5 + $0x30] sm:$0xff]
    %v104 = vld [vmem:[#allocation5 + $0x38] sm:$0xff]
    %v105 = vld [vmem:[#allocation7 + $0x11] sm:$0x1]
    %v106 = vperm.slane %v100, 0
    %v115 = vrot.slane %v88, 7
    %vm116 = vcmask 1041409
    %v117 = vsel %vm116, %v115, %v87
    %v118 = vrot.slane %v89, 6
    %vm119 = vcmask 1042434
    %v120 = vsel %vm119, %v118, %v117
    %v121 = vrot.slane %v90, 5
    %vm122 = vcmask 1043459
    %v123 = vsel %vm122, %v121, %v120
    %v124 = vrot.slane %v91, 4
    %vm125 = vcmask 1044484
    %v126 = vsel %vm125, %v124, %v123
    %v127 = vrot.slane %v92, 3
    %vm128 = vcmask 1045509
    %v129 = vsel %vm128, %v127, %v126
    %v130 = vrot.slane %v93, 2
    %vm131 = vcmask 1046534
    %v132 = vsel %vm131, %v130, %v129
    %v133 = vrot.slane %v94, 1
    %vm134 = vcmask 1047559
    %v135 = vsel %vm134, %v133, %v132
    %vm136 = vcmask 261120
    %v137 = vsel %vm136, %v135, 0
    %139 = vmatpush.msra.mxu0 0.0
    %140 = vmatpush.msra.mxu0 0.0
    %141 = vmatpush.msra.mxu0 0.0
    %142 = vmatpush.msra.mxu0 0.0
    %143 = vmatpush.msra.mxu0 0.0
    %144 = vmatpush.msra.mxu0 0.0
    %145 = vmatpush.msra.mxu0 0.0
    %146 = vmatpush.msra.mxu0 0.0
    %147 = vmatpush.msra.mxu0 0.0
    %148 = vmatpush.msra.mxu0 0.0
    %149 = vmatpush.msra.mxu0 0.0
    %150 = vmatpush.msra.mxu0 0.0
    %151 = vmatpush.msra.mxu0 %v99
    %152 = vmatpush.msra.mxu0 %v98
    %153 = vmatpush.msra.mxu0 %v97
    %154 = vmatpush.msra.mxu0 %v96
    %155 = vmatmul.f32.gmra.mxu0 %v137
    %v156 = vpop.f32.mrf.mxu0
    %v157 = vadd.f32 %v106, %v156
    %158 = vdwg.mxu0
    %160 = vrot.lane.b32.xlu0 %v157, 96
    %v161 = vpop.permute.xlu0 %160
    %vm162 = vcmask 64512
    %v163 = vsel %vm162, %v157, 0
    %v165 = vsel %vm162, %v161, 0
    %167 = vmatpush.xpose.msra.mxu0 0.0
    %168 = vmatpush.xpose.msra.mxu0 0.0
    %169 = vmatpush.xpose.msra.mxu0 0.0
    %170 = vmatpush.xpose.msra.mxu0 0.0
    %171 = vmatpush.xpose.msra.mxu0 0.0
    %172 = vmatpush.xpose.msra.mxu0 0.0
    %173 = vmatpush.xpose.msra.mxu0 0.0
    %174 = vmatpush.xpose.msra.mxu0 0.0
    %175 = vmatpush.xpose.msra.mxu0 0.0
    %176 = vmatpush.xpose.msra.mxu0 0.0
    %177 = vmatpush.xpose.msra.mxu0 0.0
    %178 = vmatpush.xpose.msra.mxu0 0.0
    %179 = vmatpush.xpose.msra.mxu0 0.0
    %180 = vmatpush.xpose.msra.mxu0 0.0
    %181 = vmatpush.xpose.msra.mxu0 0.0
    %182 = vmatpush.xpose.msra.mxu0 %v165
    %183 = vmatmul.f32.gmra.mxu0 %v163
    %v184 = vpop.f32.mrf.mxu0
    %v185 = vadd.f32 %v95, %v184
    %186 = vdwg.mxu0
    %v187 = vsel %vm162, %v185, -inf
    %188 = vmax.xlane.f32.xlu0 %v187
    %v189 = vpop.xlane.xlu0 %188
    %v190 = vsub.f32 %v185, %v189
    %v191 = vmul.f32 %v190, 1.442695
    %v192 = vpow.pop %v191
    %v193 = vsel %vm162, %v192, 0.0
    %194 = vadd.xlane.f32.xlu0 %v193
    %v195 = vpop.xlane.xlu0 %194
    %v196 = vrcp.pop %v195
    %v197 = vmul.f32 %v195, %v196
    %v198 = vsub.f32 1.0, %v197
    %v199 = vmul.f32 %v196, %v198
    %v200 = vadd.f32 %v196, %v199
    %vm201 = vweird.f32 %v195
    %vm202 = vweird.f32 %v196
    %vm203 = vmor %vm201, %vm202
    %v204 = vsel %vm203, %v196, %v200
    %v205 = vand.u32 2147483647, %v195
    %vm206 = vcmp.eq.f32.partialorder %v205, 8.507059e+37
    %v207 = vand.u32 %v195, 2147483648
    %v208 = vor.u32 1.1754944e-38, %v207
    %v209 = vsel %vm206, %v208, %v204
    %v210 = vmul.f32 %v192, %v209
    %211 = vrot.lane.b32.xlu0 %v157, 64
    %v212 = vpop.permute.xlu0 %211
    %v215 = vsel %vm162, %v210, 0
    %217 = vmatpush.msra.mxu0 0.0
    %218 = vmatpush.msra.mxu0 0.0
    %219 = vmatpush.msra.mxu0 0.0
    %220 = vmatpush.msra.mxu0 0.0
    %221 = vmatpush.msra.mxu0 0.0
    %222 = vmatpush.msra.mxu0 0.0
    %223 = vmatpush.msra.mxu0 0.0
    %224 = vmatpush.msra.mxu0 0.0
    %225 = vmatpush.msra.mxu0 0.0
    %226 = vmatpush.msra.mxu0 0.0
    %227 = vmatpush.msra.mxu0 0.0
    %228 = vmatpush.msra.mxu0 0.0
    %229 = vmatpush.msra.mxu0 0.0
    %230 = vmatpush.msra.mxu0 0.0
    %231 = vmatpush.msra.mxu0 0.0
    %232 = vmatpush.msra.mxu0 %v212
    %233 = vmatmul.f32.gmra.mxu0 %v215
    %v234 = vpop.f32.mrf.mxu0
    %v235 = vadd.f32 0.0, %v234
    %236 = vdwg.mxu0
    %237 = vrot.lane.b32.xlu0 %v157, 120
    %v238 = vpop.permute.xlu0 %237
    %239 = vrot.lane.b32.xlu0 %v157, 88
    %v240 = vpop.permute.xlu0 %239
    %v241 = vsel %vm162, %v238, 0
    %v243 = vsel %vm162, %v240, 0
    %245 = vmatpush.xpose.msra.mxu0 0.0
    %246 = vmatpush.xpose.msra.mxu0 0.0
    %247 = vmatpush.xpose.msra.mxu0 0.0
    %248 = vmatpush.xpose.msra.mxu0 0.0
    %249 = vmatpush.xpose.msra.mxu0 0.0
    %250 = vmatpush.xpose.msra.mxu0 0.0
    %251 = vmatpush.xpose.msra.mxu0 0.0
    %252 = vmatpush.xpose.msra.mxu0 0.0
    %253 = vmatpush.xpose.msra.mxu0 0.0
    %254 = vmatpush.xpose.msra.mxu0 0.0
    %255 = vmatpush.xpose.msra.mxu0 0.0
    %256 = vmatpush.xpose.msra.mxu0 0.0
    %257 = vmatpush.xpose.msra.mxu0 0.0
    %258 = vmatpush.xpose.msra.mxu0 0.0
    %259 = vmatpush.xpose.msra.mxu0 0.0
    %260 = vmatpush.xpose.msra.mxu0 %v243
    %261 = vmatmul.f32.gmra.mxu0 %v241
    %v262 = vpop.f32.mrf.mxu0
    %v263 = vadd.f32 %v95, %v262
    %264 = vdwg.mxu0
    %v265 = vsel %vm162, %v263, -inf
    %266 = vmax.xlane.f32.xlu0 %v265
    %v267 = vpop.xlane.xlu0 %266
    %v268 = vsub.f32 %v263, %v267
    %v269 = vmul.f32 %v268, 1.442695
    %v270 = vpow.pop %v269
    %v271 = vsel %vm162, %v270, 0.0
    %272 = vadd.xlane.f32.xlu0 %v271
    %v273 = vpop.xlane.xlu0 %272
    %v274 = vrcp.pop %v273
    %v275 = vmul.f32 %v273, %v274
    %v276 = vsub.f32 1.0, %v275
    %v277 = vmul.f32 %v274, %v276
    %v278 = vadd.f32 %v274, %v277
    %vm279 = vweird.f32 %v273
    %vm280 = vweird.f32 %v274
    %vm281 = vmor %vm279, %vm280
    %v282 = vsel %vm281, %v274, %v278
    %v283 = vand.u32 2147483647, %v273
    %vm284 = vcmp.eq.f32.partialorder %v283, 8.507059e+37
    %v285 = vand.u32 %v273, 2147483648
    %v286 = vor.u32 1.1754944e-38, %v285
    %v287 = vsel %vm284, %v286, %v282
    %v288 = vmul.f32 %v270, %v287
    %289 = vrot.lane.b32.xlu0 %v157, 56
    %v290 = vpop.permute.xlu0 %289
    %v293 = vsel %vm162, %v288, 0
    %295 = vmatpush.msra.mxu0 0.0
    %296 = vmatpush.msra.mxu0 0.0
    %297 = vmatpush.msra.mxu0 0.0
    %298 = vmatpush.msra.mxu0 0.0
    %299 = vmatpush.msra.mxu0 0.0
    %300 = vmatpush.msra.mxu0 0.0
    %301 = vmatpush.msra.mxu0 0.0
    %302 = vmatpush.msra.mxu0 0.0
    %303 = vmatpush.msra.mxu0 0.0
    %304 = vmatpush.msra.mxu0 0.0
    %305 = vmatpush.msra.mxu0 0.0
    %306 = vmatpush.msra.mxu0 0.0
    %307 = vmatpush.msra.mxu0 0.0
    %308 = vmatpush.msra.mxu0 0.0
    %309 = vmatpush.msra.mxu0 0.0
    %310 = vmatpush.msra.mxu0 %v290
    %311 = vmatmul.f32.gmra.mxu0 %v293
    %v312 = vpop.f32.mrf.mxu0
    %v313 = vadd.f32 0.0, %v312
    %314 = vdwg.mxu0
    %v316 = vsel %vm162, %v313, 0
    %318 = vmatpush.msra.mxu0 0.0
    %319 = vmatpush.msra.mxu0 0.0
    %320 = vmatpush.msra.mxu0 0.0
    %321 = vmatpush.msra.mxu0 0.0
    %322 = vmatpush.msra.mxu0 0.0
    %323 = vmatpush.msra.mxu0 0.0
    %324 = vmatpush.msra.mxu0 0.0
    %325 = vmatpush.msra.mxu0 0.0
    %326 = vmatpush.msra.mxu0 0.0
    %327 = vmatpush.msra.mxu0 0.0
    %328 = vmatpush.msra.mxu0 0.0
    %329 = vmatpush.msra.mxu0 0.0
    %330 = vmatpush.msra.mxu0 0.0
    %331 = vmatpush.msra.mxu0 0.0
    %332 = vmatpush.msra.mxu0 0.0
    %333 = vmatpush.msra.mxu0 %v102
    %334 = vmatmul.f32.gmra.mxu0 %v316
    %v335 = vpop.f32.mrf.mxu0
    %v336 = vadd.f32 0.0, %v335
    %337 = vdwg.mxu0
    %v339 = vsel %vm162, %v235, 0
    %341 = vmatpush.msra.mxu0 0.0
    %342 = vmatpush.msra.mxu0 0.0
    %343 = vmatpush.msra.mxu0 0.0
    %344 = vmatpush.msra.mxu0 0.0
    %345 = vmatpush.msra.mxu0 0.0
    %346 = vmatpush.msra.mxu0 0.0
    %347 = vmatpush.msra.mxu0 0.0
    %348 = vmatpush.msra.mxu0 0.0
    %349 = vmatpush.msra.mxu0 0.0
    %350 = vmatpush.msra.mxu0 0.0
    %351 = vmatpush.msra.mxu0 0.0
    %352 = vmatpush.msra.mxu0 0.0
    %353 = vmatpush.msra.mxu0 0.0
    %354 = vmatpush.msra.mxu0 0.0
    %355 = vmatpush.msra.mxu0 0.0
    %356 = vmatpush.msra.mxu0 %v101
    %357 = vmatmul.f32.gmra.mxu0 %v339
    %v358 = vpop.f32.mrf.mxu0
    %v359 = vadd.f32 %v336, %v358
    %360 = vdwg.mxu0
    %361 = vrot.lane.b32.xlu0 %v157, 112
    %v362 = vpop.permute.xlu0 %361
    %363 = vrot.lane.b32.xlu0 %v157, 80
    %v364 = vpop.permute.xlu0 %363
    %v365 = vsel %vm162, %v362, 0
    %v367 = vsel %vm162, %v364, 0
    %369 = vmatpush.xpose.msra.mxu0 0.0
    %370 = vmatpush.xpose.msra.mxu0 0.0
    %371 = vmatpush.xpose.msra.mxu0 0.0
    %372 = vmatpush.xpose.msra.mxu0 0.0
    %373 = vmatpush.xpose.msra.mxu0 0.0
    %374 = vmatpush.xpose.msra.mxu0 0.0
    %375 = vmatpush.xpose.msra.mxu0 0.0
    %376 = vmatpush.xpose.msra.mxu0 0.0
    %377 = vmatpush.xpose.msra.mxu0 0.0
    %378 = vmatpush.xpose.msra.mxu0 0.0
    %379 = vmatpush.xpose.msra.mxu0 0.0
    %380 = vmatpush.xpose.msra.mxu0 0.0
    %381 = vmatpush.xpose.msra.mxu0 0.0
    %382 = vmatpush.xpose.msra.mxu0 0.0
    %383 = vmatpush.xpose.msra.mxu0 0.0
    %384 = vmatpush.xpose.msra.mxu0 %v367
    %385 = vmatmul.f32.gmra.mxu0 %v365
    %v386 = vpop.f32.mrf.mxu0
    %v387 = vadd.f32 %v95, %v386
    %388 = vdwg.mxu0
    %v389 = vsel %vm162, %v387, -inf
    %390 = vmax.xlane.f32.xlu0 %v389
    %v391 = vpop.xlane.xlu0 %390
    %v392 = vsub.f32 %v387, %v391
    %v393 = vmul.f32 %v392, 1.442695
    %v394 = vpow.pop %v393
    %v395 = vsel %vm162, %v394, 0.0
    %396 = vadd.xlane.f32.xlu0 %v395
    %v397 = vpop.xlane.xlu0 %396
    %v398 = vrcp.pop %v397
    %v399 = vmul.f32 %v397, %v398
    %v400 = vsub.f32 1.0, %v399
    %v401 = vmul.f32 %v398, %v400
    %v402 = vadd.f32 %v398, %v401
    %vm403 = vweird.f32 %v397
    %vm404 = vweird.f32 %v398
    %vm405 = vmor %vm403, %vm404
    %v406 = vsel %vm405, %v398, %v402
    %v407 = vand.u32 2147483647, %v397
    %vm408 = vcmp.eq.f32.partialorder %v407, 8.507059e+37
    %v409 = vand.u32 %v397, 2147483648
    %v410 = vor.u32 1.1754944e-38, %v409
    %v411 = vsel %vm408, %v410, %v406
    %v412 = vmul.f32 %v394, %v411
    %413 = vrot.lane.b32.xlu0 %v157, 48
    %v414 = vpop.permute.xlu0 %413
    %v417 = vsel %vm162, %v412, 0
    %419 = vmatpush.msra.mxu0 0.0
    %420 = vmatpush.msra.mxu0 0.0
    %421 = vmatpush.msra.mxu0 0.0
    %422 = vmatpush.msra.mxu0 0.0
    %423 = vmatpush.msra.mxu0 0.0
    %424 = vmatpush.msra.mxu0 0.0
    %425 = vmatpush.msra.mxu0 0.0
    %426 = vmatpush.msra.mxu0 0.0
    %427 = vmatpush.msra.mxu0 0.0
    %428 = vmatpush.msra.mxu0 0.0
    %429 = vmatpush.msra.mxu0 0.0
    %430 = vmatpush.msra.mxu0 0.0
    %431 = vmatpush.msra.mxu0 0.0
    %432 = vmatpush.msra.mxu0 0.0
    %433 = vmatpush.msra.mxu0 0.0
    %434 = vmatpush.msra.mxu0 %v414
    %435 = vmatmul.f32.gmra.mxu0 %v417
    %v436 = vpop.f32.mrf.mxu0
    %v437 = vadd.f32 0.0, %v436
    %438 = vdwg.mxu0
    %v440 = vsel %vm162, %v437, 0
    %442 = vmatpush.msra.mxu0 0.0
    %443 = vmatpush.msra.mxu0 0.0
    %444 = vmatpush.msra.mxu0 0.0
    %445 = vmatpush.msra.mxu0 0.0
    %446 = vmatpush.msra.mxu0 0.0
    %447 = vmatpush.msra.mxu0 0.0
    %448 = vmatpush.msra.mxu0 0.0
    %449 = vmatpush.msra.mxu0 0.0
    %450 = vmatpush.msra.mxu0 0.0
    %451 = vmatpush.msra.mxu0 0.0
    %452 = vmatpush.msra.mxu0 0.0
    %453 = vmatpush.msra.mxu0 0.0
    %454 = vmatpush.msra.mxu0 0.0
    %455 = vmatpush.msra.mxu0 0.0
    %456 = vmatpush.msra.mxu0 0.0
    %457 = vmatpush.msra.mxu0 %v103
    %458 = vmatmul.f32.gmra.mxu0 %v440
    %v459 = vpop.f32.mrf.mxu0
    %v460 = vadd.f32 0.0, %v459
    %461 = vdwg.mxu0
    %v462 = vadd.f32 %v359, %v460
    %463 = vrot.lane.b32.xlu0 %v157, 104
    %v464 = vpop.permute.xlu0 %463
    %465 = vrot.lane.b32.xlu0 %v157, 72
    %v466 = vpop.permute.xlu0 %465
    %v467 = vsel %vm162, %v464, 0
    %v469 = vsel %vm162, %v466, 0
    %471 = vmatpush.xpose.msra.mxu0 0.0
    %472 = vmatpush.xpose.msra.mxu0 0.0
    %473 = vmatpush.xpose.msra.mxu0 0.0
    %474 = vmatpush.xpose.msra.mxu0 0.0
    %475 = vmatpush.xpose.msra.mxu0 0.0
    %476 = vmatpush.xpose.msra.mxu0 0.0
    %477 = vmatpush.xpose.msra.mxu0 0.0
    %478 = vmatpush.xpose.msra.mxu0 0.0
    %479 = vmatpush.xpose.msra.mxu0 0.0
    %480 = vmatpush.xpose.msra.mxu0 0.0
    %481 = vmatpush.xpose.msra.mxu0 0.0
    %482 = vmatpush.xpose.msra.mxu0 0.0
    %483 = vmatpush.xpose.msra.mxu0 0.0
    %484 = vmatpush.xpose.msra.mxu0 0.0
    %485 = vmatpush.xpose.msra.mxu0 0.0
    %486 = vmatpush.xpose.msra.mxu0 %v469
    %487 = vmatmul.f32.gmra.mxu0 %v467
    %v488 = vpop.f32.mrf.mxu0
    %v489 = vadd.f32 %v95, %v488
    %490 = vdwg.mxu0
    %v491 = vsel %vm162, %v489, -inf
    %492 = vmax.xlane.f32.xlu0 %v491
    %v493 = vpop.xlane.xlu0 %492
    %v494 = vsub.f32 %v489, %v493
    %v495 = vmul.f32 %v494, 1.442695
    %v496 = vpow.pop %v495
    %v497 = vsel %vm162, %v496, 0.0
    %498 = vadd.xlane.f32.xlu0 %v497
    %v499 = vpop.xlane.xlu0 %498
    %v500 = vrcp.pop %v499
    %v501 = vmul.f32 %v499, %v500
    %v502 = vsub.f32 1.0, %v501
    %v503 = vmul.f32 %v500, %v502
    %v504 = vadd.f32 %v500, %v503
    %vm505 = vweird.f32 %v499
    %vm506 = vweird.f32 %v500
    %vm507 = vmor %vm505, %vm506
    %v508 = vsel %vm507, %v500, %v504
    %v509 = vand.u32 2147483647, %v499
    %vm510 = vcmp.eq.f32.partialorder %v509, 8.507059e+37
    %v511 = vand.u32 %v499, 2147483648
    %v512 = vor.u32 1.1754944e-38, %v511
    %v513 = vsel %vm510, %v512, %v508
    %v514 = vmul.f32 %v496, %v513
    %515 = vrot.lane.b32.xlu0 %v157, 40
    %v516 = vpop.permute.xlu0 %515
    %v519 = vsel %vm162, %v514, 0
    %521 = vmatpush.msra.mxu0 0.0
    %522 = vmatpush.msra.mxu0 0.0
    %523 = vmatpush.msra.mxu0 0.0
    %524 = vmatpush.msra.mxu0 0.0
    %525 = vmatpush.msra.mxu0 0.0
    %526 = vmatpush.msra.mxu0 0.0
    %527 = vmatpush.msra.mxu0 0.0
    %528 = vmatpush.msra.mxu0 0.0
    %529 = vmatpush.msra.mxu0 0.0
    %530 = vmatpush.msra.mxu0 0.0
    %531 = vmatpush.msra.mxu0 0.0
    %532 = vmatpush.msra.mxu0 0.0
    %533 = vmatpush.msra.mxu0 0.0
    %534 = vmatpush.msra.mxu0 0.0
    %535 = vmatpush.msra.mxu0 0.0
    %536 = vmatpush.msra.mxu0 %v516
    %537 = vmatmul.f32.gmra.mxu0 %v519
    %v538 = vpop.f32.mrf.mxu0
    %v539 = vadd.f32 0.0, %v538
    %540 = vdwg.mxu0
    %v542 = vsel %vm162, %v539, 0
    %544 = vmatpush.msra.mxu0 0.0
    %545 = vmatpush.msra.mxu0 0.0
    %546 = vmatpush.msra.mxu0 0.0
    %547 = vmatpush.msra.mxu0 0.0
    %548 = vmatpush.msra.mxu0 0.0
    %549 = vmatpush.msra.mxu0 0.0
    %550 = vmatpush.msra.mxu0 0.0
    %551 = vmatpush.msra.mxu0 0.0
    %552 = vmatpush.msra.mxu0 0.0
    %553 = vmatpush.msra.mxu0 0.0
    %554 = vmatpush.msra.mxu0 0.0
    %555 = vmatpush.msra.mxu0 0.0
    %556 = vmatpush.msra.mxu0 0.0
    %557 = vmatpush.msra.mxu0 0.0
    %558 = vmatpush.msra.mxu0 0.0
    %559 = vmatpush.msra.mxu0 %v104
    %560 = vmatmul.f32.gmra.mxu0 %v542
    %v561 = vpop.f32.mrf.mxu0
    %v562 = vadd.f32 0.0, %v561
    %563 = vdwg.mxu0
    %v564 = vadd.f32 %v462, %v562
    %v565 = vperm.slane %v105, 0
    %v566 = vadd.f32 %v564, %v565
    %v568 = vrot.slane %v566, 1
    %v569 = vrot.slane %v566, 2
    %v570 = vrot.slane %v566, 3
    %v571 = vrot.slane %v566, 4
    %v572 = vrot.slane %v566, 5
    %v573 = vrot.slane %v566, 6
    %v574 = vrot.slane %v566, 7
    %v583 = vadd.f32 %v87, %v566
    %v584 = vadd.f32 %v88, %v568
    %v585 = vadd.f32 %v89, %v569
    %v586 = vadd.f32 %v90, %v570
    %v587 = vadd.f32 %v91, %v571
    %v588 = vadd.f32 %v92, %v572
    %v589 = vadd.f32 %v93, %v573
    %v590 = vadd.f32 %v94, %v574
    %v591 = vld [vmem:[#allocation7 + $0x12] sm:$0x1]
    %v592 = vld [vmem:[#allocation7 + $0x13] sm:$0x1]
    %v601 = vrot.slane %v584, 7
    %v602 = vsel %vm116, %v601, %v583
    %v603 = vrot.slane %v585, 6
    %v604 = vsel %vm119, %v603, %v602
    %v605 = vrot.slane %v586, 5
    %v606 = vsel %vm122, %v605, %v604
    %v607 = vrot.slane %v587, 4
    %v608 = vsel %vm125, %v607, %v606
    %v609 = vrot.slane %v588, 3
    %v610 = vsel %vm128, %v609, %v608
    %v611 = vrot.slane %v589, 2
    %v612 = vsel %vm131, %v611, %v610
    %v613 = vrot.slane %v590, 1
    %v614 = vsel %vm134, %v613, %v612
    %v616 = vsel %vm136, %v614, 0.0
    %617 = vadd.xlane.f32.xlu0 %v616
    %v618 = vpop.xlane.xlu0 %617
    %v619 = vrcp.pop 32.0
    %v620 = vmul.f32 32.0, %v619
    %v621 = vsub.f32 1.0, %v620
    %v622 = vmul.f32 %v619, %v621
    %v623 = vadd.f32 %v619, %v622
    %vm624 = vweird.f32 %v619
    %v625 = vsel %vm624, %v619, %v623
    %v626 = vmul.f32 %v618, %v625
    %v628 = vrot.slane %v626, 1
    %v629 = vrot.slane %v626, 2
    %v630 = vrot.slane %v626, 3
    %v631 = vrot.slane %v626, 4
    %v632 = vrot.slane %v626, 5
    %v633 = vrot.slane %v626, 6
    %v634 = vrot.slane %v626, 7
    %v643 = vsub.f32 %v583, %v626
    %v644 = vsub.f32 %v584, %v628
    %v645 = vsub.f32 %v585, %v629
    %v646 = vsub.f32 %v586, %v630
    %v647 = vsub.f32 %v587, %v631
    %v648 = vsub.f32 %v588, %v632
    %v649 = vsub.f32 %v589, %v633
    %v650 = vsub.f32 %v590, %v634
    %v651 = vmul.f32 %v643, %v643
    %v652 = vmul.f32 %v644, %v644
    %v653 = vmul.f32 %v645, %v645
    %v654 = vmul.f32 %v646, %v646
    %v655 = vmul.f32 %v647, %v647
    %v656 = vmul.f32 %v648, %v648
    %v657 = vmul.f32 %v649, %v649
    %v658 = vmul.f32 %v650, %v650
    %v667 = vrot.slane %v652, 7
    %v668 = vsel %vm116, %v667, %v651
    %v669 = vrot.slane %v653, 6
    %v670 = vsel %vm119, %v669, %v668
    %v671 = vrot.slane %v654, 5
    %v672 = vsel %vm122, %v671, %v670
    %v673 = vrot.slane %v655, 4
    %v674 = vsel %vm125, %v673, %v672
    %v675 = vrot.slane %v656, 3
    %v676 = vsel %vm128, %v675, %v674
    %v677 = vrot.slane %v657, 2
    %v678 = vsel %vm131, %v677, %v676
    %v679 = vrot.slane %v658, 1
    %v680 = vsel %vm134, %v679, %v678
    %v682 = vsel %vm136, %v680, 0.0
    %683 = vadd.xlane.f32.xlu0 %v682
    %v684 = vpop.xlane.xlu0 %683
    %v685 = vmul.f32 %v684, %v625
    %v686 = vadd.f32 %v685, 1e-05
    %v687 = vrsqrt.pop %v686
    %v688 = vmul.f32 %v687, %v686
    %v689 = vmul.f32 %v688, %v687
    %v690 = vmul.f32 0.5, %v689
    %v691 = vsub.f32 1.5, %v690
    %v692 = vmul.f32 %v687, %v691
    %vm693 = vweird.f32 %v686
    %vm694 = vweird.f32 %v687
    %vm695 = vmor %vm693, %vm694
    %v696 = vsel %vm695, %v687, %v692
    %v698 = vrot.slane %v696, 1
    %v699 = vrot.slane %v696, 2
    %v700 = vrot.slane %v696, 3
    %v701 = vrot.slane %v696, 4
    %v702 = vrot.slane %v696, 5
    %v703 = vrot.slane %v696, 6
    %v704 = vrot.slane %v696, 7
    %v713 = vmul.f32 %v643, %v696
    %v714 = vmul.f32 %v644, %v698
    %v715 = vmul.f32 %v645, %v699
    %v716 = vmul.f32 %v646, %v700
    %v717 = vmul.f32 %v647, %v701
    %v718 = vmul.f32 %v648, %v702
    %v719 = vmul.f32 %v649, %v703
    %v720 = vmul.f32 %v650, %v704
    %v721 = vperm.slane %v591, 0
    %v722 = vmul.f32 %v713, %v721
    %v723 = vmul.f32 %v714, %v721
    %v724 = vmul.f32 %v715, %v721
    %v725 = vmul.f32 %v716, %v721
    %v726 = vmul.f32 %v717, %v721
    %v727 = vmul.f32 %v718, %v721
    %v728 = vmul.f32 %v719, %v721
    %v729 = vmul.f32 %v720, %v721
    %v730 = vperm.slane %v592, 0
    %v731 = vadd.f32 %v722, %v730
    %v732 = vadd.f32 %v723, %v730
    %v733 = vadd.f32 %v724, %v730
    %v734 = vadd.f32 %v725, %v730
    %v735 = vadd.f32 %v726, %v730
    %v736 = vadd.f32 %v727, %v730
    %v737 = vadd.f32 %v728, %v730
    %v738 = vadd.f32 %v729, %v730
    %v739 = vld [vmem:[#allocation5 + $0x40] sm:$0xff]
    %v740 = vld [vmem:[#allocation5 + $0x48] sm:$0xff]
    %v741 = vld [vmem:[#allocation5 + $0x50] sm:$0xff]
    %v742 = vld [vmem:[#allocation5 + $0x58] sm:$0xff]
    %v743 = vld [vmem:[#allocation7 + $0x14] sm:$0x1]
    %v744 = vld [vmem:[#allocation5 + $0x60] sm:$0xff]
    %v745 = vld [vmem:[#allocation5 + $0x68] sm:$0xff]
    %v746 = vld [vmem:[#allocation5 + $0x70] sm:$0xff]
    %v747 = vld [vmem:[#allocation5 + $0x78] sm:$0xff]
    %v748 = vld [vmem:[#allocation5 + $0x80] sm:$0xff]
    %v749 = vld [vmem:[#allocation5 + $0x88] sm:$0xff]
    %v750 = vld [vmem:[#allocation5 + $0x90] sm:$0xff]
    %v751 = vld [vmem:[#allocation5 + $0x98] sm:$0xff]
    %v752 = vld [vmem:[#allocation7 + $0x15] sm:$0x1]
    %v753 = vperm.slane %v743, 0
    %v762 = vrot.slane %v732, 7
    %v763 = vsel %vm116, %v762, %v731
    %v764 = vrot.slane %v733, 6
    %v765 = vsel %vm119, %v764, %v763
    %v766 = vrot.slane %v734, 5
    %v767 = vsel %vm122, %v766, %v765
    %v768 = vrot.slane %v735, 4
    %v769 = vsel %vm125, %v768, %v767
    %v770 = vrot.slane %v736, 3
    %v771 = vsel %vm128, %v770, %v769
    %v772 = vrot.slane %v737, 2
    %v773 = vsel %vm131, %v772, %v771
    %v774 = vrot.slane %v738, 1
    %v775 = vsel %vm134, %v774, %v773
    %v776 = vsel %vm136, %v775, 0
    %778 = vmatpush.msra.mxu0 0.0
    %779 = vmatpush.msra.mxu0 0.0
    %780 = vmatpush.msra.mxu0 0.0
    %781 = vmatpush.msra.mxu0 0.0
    %782 = vmatpush.msra.mxu0 0.0
    %783 = vmatpush.msra.mxu0 0.0
    %784 = vmatpush.msra.mxu0 0.0
    %785 = vmatpush.msra.mxu0 0.0
    %786 = vmatpush.msra.mxu0 0.0
    %787 = vmatpush.msra.mxu0 0.0
    %788 = vmatpush.msra.mxu0 0.0
    %789 = vmatpush.msra.mxu0 0.0
    %790 = vmatpush.msra.mxu0 %v742
    %791 = vmatpush.msra.mxu0 %v741
    %792 = vmatpush.msra.mxu0 %v740
    %793 = vmatpush.msra.mxu0 %v739
    %794 = vmatmul.f32.gmra.mxu0 %v776
    %v795 = vpop.f32.mrf.mxu0
    %v796 = vadd.f32 %v753, %v795
    %797 = vdwg.mxu0
    %v798 = vmax.f32 %v796, 0.0
    %v799 = vperm.slane %v752, 0
    %vm800 = vcmask 523264
    %v802 = vsel %vm800, %v798, 0
    %804 = vmatpush.msra.mxu0 0.0
    %805 = vmatpush.msra.mxu0 0.0
    %806 = vmatpush.msra.mxu0 0.0
    %807 = vmatpush.msra.mxu0 0.0
    %808 = vmatpush.msra.mxu0 0.0
    %809 = vmatpush.msra.mxu0 0.0
    %810 = vmatpush.msra.mxu0 0.0
    %811 = vmatpush.msra.mxu0 0.0
    %812 = vmatpush.msra.mxu0 %v751
    %813 = vmatpush.msra.mxu0 %v750
    %814 = vmatpush.msra.mxu0 %v749
    %815 = vmatpush.msra.mxu0 %v748
    %816 = vmatpush.msra.mxu0 %v747
    %817 = vmatpush.msra.mxu0 %v746
    %818 = vmatpush.msra.mxu0 %v745
    %819 = vmatpush.msra.mxu0 %v744
    %820 = vmatmul.f32.gmra.mxu0 %v802
    %v821 = vpop.f32.mrf.mxu0
    %v822 = vadd.f32 %v799, %v821
    %823 = vdwg.mxu0
    %v825 = vrot.slane %v822, 1
    %v826 = vrot.slane %v822, 2
    %v827 = vrot.slane %v822, 3
    %v828 = vrot.slane %v822, 4
    %v829 = vrot.slane %v822, 5
    %v830 = vrot.slane %v822, 6
    %v831 = vrot.slane %v822, 7
    %v840 = vadd.f32 %v731, %v822
    %v841 = vadd.f32 %v732, %v825
    %v842 = vadd.f32 %v733, %v826
    %v843 = vadd.f32 %v734, %v827
    %v844 = vadd.f32 %v735, %v828
    %v845 = vadd.f32 %v736, %v829
    %v846 = vadd.f32 %v737, %v830
    %v847 = vadd.f32 %v738, %v831
    %v848 = vld [vmem:[#allocation7 + $0x16] sm:$0x1]
    %v849 = vld [vmem:[#allocation7 + $0x17] sm:$0x1]
    %v858 = vrot.slane %v841, 7
    %v859 = vsel %vm116, %v858, %v840
    %v860 = vrot.slane %v842, 6
    %v861 = vsel %vm119, %v860, %v859
    %v862 = vrot.slane %v843, 5
    %v863 = vsel %vm122, %v862, %v861
    %v864 = vrot.slane %v844, 4
    %v865 = vsel %vm125, %v864, %v863
    %v866 = vrot.slane %v845, 3
    %v867 = vsel %vm128, %v866, %v865
    %v868 = vrot.slane %v846, 2
    %v869 = vsel %vm131, %v868, %v867
    %v870 = vrot.slane %v847, 1
    %v871 = vsel %vm134, %v870, %v869
    %v873 = vsel %vm136, %v871, 0.0
    %874 = vadd.xlane.f32.xlu0 %v873
    %v875 = vpop.xlane.xlu0 %874
    %v876 = vmul.f32 %v875, %v625
    %v878 = vrot.slane %v876, 1
    %v879 = vrot.slane %v876, 2
    %v880 = vrot.slane %v876, 3
    %v881 = vrot.slane %v876, 4
    %v882 = vrot.slane %v876, 5
    %v883 = vrot.slane %v876, 6
    %v884 = vrot.slane %v876, 7
    %v893 = vsub.f32 %v840, %v876
    %v894 = vsub.f32 %v841, %v878
    %v895 = vsub.f32 %v842, %v879
    %v896 = vsub.f32 %v843, %v880
    %v897 = vsub.f32 %v844, %v881
    %v898 = vsub.f32 %v845, %v882
    %v899 = vsub.f32 %v846, %v883
    %v900 = vsub.f32 %v847, %v884
    %v901 = vmul.f32 %v893, %v893
    %v902 = vmul.f32 %v894, %v894
    %v903 = vmul.f32 %v895, %v895
    %v904 = vmul.f32 %v896, %v896
    %v905 = vmul.f32 %v897, %v897
    %v906 = vmul.f32 %v898, %v898
    %v907 = vmul.f32 %v899, %v899
    %v908 = vmul.f32 %v900, %v900
    %v917 = vrot.slane %v902, 7
    %v918 = vsel %vm116, %v917, %v901
    %v919 = vrot.slane %v903, 6
    %v920 = vsel %vm119, %v919, %v918
    %v921 = vrot.slane %v904, 5
    %v922 = vsel %vm122, %v921, %v920
    %v923 = vrot.slane %v905, 4
    %v924 = vsel %vm125, %v923, %v922
    %v925 = vrot.slane %v906, 3
    %v926 = vsel %vm128, %v925, %v924
    %v927 = vrot.slane %v907, 2
    %v928 = vsel %vm131, %v927, %v926
    %v929 = vrot.slane %v908, 1
    %v930 = vsel %vm134, %v929, %v928
    %v932 = vsel %vm136, %v930, 0.0
    %933 = vadd.xlane.f32.xlu0 %v932
    %v934 = vpop.xlane.xlu0 %933
    %v935 = vmul.f32 %v934, %v625
    %v936 = vadd.f32 %v935, 1e-05
    %v937 = vrsqrt.pop %v936
    %v938 = vmul.f32 %v937, %v936
    %v939 = vmul.f32 %v938, %v937
    %v940 = vmul.f32 0.5, %v939
    %v941 = vsub.f32 1.5, %v940
    %v942 = vmul.f32 %v937, %v941
    %vm943 = vweird.f32 %v936
    %vm944 = vweird.f32 %v937
    %vm945 = vmor %vm943, %vm944
    %v946 = vsel %vm945, %v937, %v942
    %v948 = vrot.slane %v946, 1
    %v949 = vrot.slane %v946, 2
    %v950 = vrot.slane %v946, 3
    %v951 = vrot.slane %v946, 4
    %v952 = vrot.slane %v946, 5
    %v953 = vrot.slane %v946, 6
    %v954 = vrot.slane %v946, 7
    %v963 = vmul.f32 %v893, %v946
    %v964 = vmul.f32 %v894, %v948
    %v965 = vmul.f32 %v895, %v949
    %v966 = vmul.f32 %v896, %v950
    %v967 = vmul.f32 %v897, %v951
    %v968 = vmul.f32 %v898, %v952
    %v969 = vmul.f32 %v899, %v953
    %v970 = vmul.f32 %v900, %v954
    %v971 = vperm.slane %v848, 0
    %v972 = vmul.f32 %v963, %v971
    %v973 = vmul.f32 %v964, %v971
    %v974 = vmul.f32 %v965, %v971
    %v975 = vmul.f32 %v966, %v971
    %v976 = vmul.f32 %v967, %v971
    %v977 = vmul.f32 %v968, %v971
    %v978 = vmul.f32 %v969, %v971
    %v979 = vmul.f32 %v970, %v971
    %v980 = vperm.slane %v849, 0
    %v981 = vadd.f32 %v972, %v980
    %v982 = vadd.f32 %v973, %v980
    %v983 = vadd.f32 %v974, %v980
    %v984 = vadd.f32 %v975, %v980
    %v985 = vadd.f32 %v976, %v980
    %v986 = vadd.f32 %v977, %v980
    %v987 = vadd.f32 %v978, %v980
    %v988 = vadd.f32 %v979, %v980
    %v989 = vld [vmem:[#allocation5 + $0xa0] sm:$0xff]
    %v990 = vld [vmem:[#allocation5 + $0xa8] sm:$0xff]
    %v991 = vld [vmem:[#allocation5 + $0xb0] sm:$0xff]
    %v992 = vld [vmem:[#allocation5 + $0xb8] sm:$0xff]
    %v993 = vld [vmem:[#allocation7 + $0x18] sm:$0x1]
    %v994 = vld [vmem:[#allocation5 + $0xc0] sm:$0xff]
    %v995 = vld [vmem:[#allocation5 + $0xc8] sm:$0xff]
    %v996 = vld [vmem:[#allocation5 + $0xd0] sm:$0xff]
    %v997 = vld [vmem:[#allocation5 + $0xd8] sm:$0xff]
    %v998 = vld [vmem:[#allocation7 + $0x19] sm:$0x1]
    %v999 = vperm.slane %v993, 0
    %v1008 = vrot.slane %v982, 7
    %v1009 = vsel %vm116, %v1008, %v981
    %v1010 = vrot.slane %v983, 6
    %v1011 = vsel %vm119, %v1010, %v1009
    %v1012 = vrot.slane %v984, 5
    %v1013 = vsel %vm122, %v1012, %v1011
    %v1014 = vrot.slane %v985, 4
    %v1015 = vsel %vm125, %v1014, %v1013
    %v1016 = vrot.slane %v986, 3
    %v1017 = vsel %vm128, %v1016, %v1015
    %v1018 = vrot.slane %v987, 2
    %v1019 = vsel %vm131, %v1018, %v1017
    %v1020 = vrot.slane %v988, 1
    %v1021 = vsel %vm134, %v1020, %v1019
    %v1022 = vsel %vm136, %v1021, 0
    %1024 = vmatpush.msra.mxu0 0.0
    %1025 = vmatpush.msra.mxu0 0.0
    %1026 = vmatpush.msra.mxu0 0.0
    %1027 = vmatpush.msra.mxu0 0.0
    %1028 = vmatpush.msra.mxu0 0.0
    %1029 = vmatpush.msra.mxu0 0.0
    %1030 = vmatpush.msra.mxu0 0.0
    %1031 = vmatpush.msra.mxu0 0.0
    %1032 = vmatpush.msra.mxu0 0.0
    %1033 = vmatpush.msra.mxu0 0.0
    %1034 = vmatpush.msra.mxu0 0.0
    %1035 = vmatpush.msra.mxu0 0.0
    %1036 = vmatpush.msra.mxu0 %v992
    %1037 = vmatpush.msra.mxu0 %v991
    %1038 = vmatpush.msra.mxu0 %v990
    %1039 = vmatpush.msra.mxu0 %v989
    %1040 = vmatmul.f32.gmra.mxu0 %v1022
    %v1041 = vpop.f32.mrf.mxu0
    %v1042 = vadd.f32 %v999, %v1041
    %1043 = vdwg.mxu0
    %1045 = vrot.lane.b32.xlu0 %v1042, 96
    %v1046 = vpop.permute.xlu0 %1045
    %v1047 = vsel %vm162, %v1042, 0
    %v1049 = vsel %vm162, %v1046, 0
    %1051 = vmatpush.xpose.msra.mxu0 0.0
    %1052 = vmatpush.xpose.msra.mxu0 0.0
    %1053 = vmatpush.xpose.msra.mxu0 0.0
    %1054 = vmatpush.xpose.msra.mxu0 0.0
    %1055 = vmatpush.xpose.msra.mxu0 0.0
    %1056 = vmatpush.xpose.msra.mxu0 0.0
    %1057 = vmatpush.xpose.msra.mxu0 0.0
    %1058 = vmatpush.xpose.msra.mxu0 0.0
    %1059 = vmatpush.xpose.msra.mxu0 0.0
    %1060 = vmatpush.xpose.msra.mxu0 0.0
    %1061 = vmatpush.xpose.msra.mxu0 0.0
    %1062 = vmatpush.xpose.msra.mxu0 0.0
    %1063 = vmatpush.xpose.msra.mxu0 0.0
    %1064 = vmatpush.xpose.msra.mxu0 0.0
    %1065 = vmatpush.xpose.msra.mxu0 0.0
    %1066 = vmatpush.xpose.msra.mxu0 %v1049
    %1067 = vmatmul.f32.gmra.mxu0 %v1047
    %v1068 = vpop.f32.mrf.mxu0
    %v1069 = vadd.f32 %v95, %v1068
    %1070 = vdwg.mxu0
    %v1071 = vsel %vm162, %v1069, -inf
    %1072 = vmax.xlane.f32.xlu0 %v1071
    %v1073 = vpop.xlane.xlu0 %1072
    %v1074 = vsub.f32 %v1069, %v1073
    %v1075 = vmul.f32 %v1074, 1.442695
    %v1076 = vpow.pop %v1075
    %v1077 = vsel %vm162, %v1076, 0.0
    %1078 = vadd.xlane.f32.xlu0 %v1077
    %v1079 = vpop.xlane.xlu0 %1078
    %v1080 = vrcp.pop %v1079
    %v1081 = vmul.f32 %v1079, %v1080
    %v1082 = vsub.f32 1.0, %v1081
    %v1083 = vmul.f32 %v1080, %v1082
    %v1084 = vadd.f32 %v1080, %v1083
    %vm1085 = vweird.f32 %v1079
    %vm1086 = vweird.f32 %v1080
    %vm1087 = vmor %vm1085, %vm1086
    %v1088 = vsel %vm1087, %v1080, %v1084
    %v1089 = vand.u32 2147483647, %v1079
    %vm1090 = vcmp.eq.f32.partialorder %v1089, 8.507059e+37
    %v1091 = vand.u32 %v1079, 2147483648
    %v1092 = vor.u32 1.1754944e-38, %v1091
    %v1093 = vsel %vm1090, %v1092, %v1088
    %v1094 = vmul.f32 %v1076, %v1093
    %1095 = vrot.lane.b32.xlu0 %v1042, 64
    %v1096 = vpop.permute.xlu0 %1095
    %v1099 = vsel %vm162, %v1094, 0
    %1101 = vmatpush.msra.mxu0 0.0
    %1102 = vmatpush.msra.mxu0 0.0
    %1103 = vmatpush.msra.mxu0 0.0
    %1104 = vmatpush.msra.mxu0 0.0
    %1105 = vmatpush.msra.mxu0 0.0
    %1106 = vmatpush.msra.mxu0 0.0
    %1107 = vmatpush.msra.mxu0 0.0
    %1108 = vmatpush.msra.mxu0 0.0
    %1109 = vmatpush.msra.mxu0 0.0
    %1110 = vmatpush.msra.mxu0 0.0
    %1111 = vmatpush.msra.mxu0 0.0
    %1112 = vmatpush.msra.mxu0 0.0
    %1113 = vmatpush.msra.mxu0 0.0
    %1114 = vmatpush.msra.mxu0 0.0
    %1115 = vmatpush.msra.mxu0 0.0
    %1116 = vmatpush.msra.mxu0 %v1096
    %1117 = vmatmul.f32.gmra.mxu0 %v1099
    %v1118 = vpop.f32.mrf.mxu0
    %v1119 = vadd.f32 0.0, %v1118
    %1120 = vdwg.mxu0
    %1121 = vrot.lane.b32.xlu0 %v1042, 120
    %v1122 = vpop.permute.xlu0 %1121
    %1123 = vrot.lane.b32.xlu0 %v1042, 88
    %v1124 = vpop.permute.xlu0 %1123
    %v1125 = vsel %vm162, %v1122, 0
    %v1127 = vsel %vm162, %v1124, 0
    %1129 = vmatpush.xpose.msra.mxu0 0.0
    %1130 = vmatpush.xpose.msra.mxu0 0.0
    %1131 = vmatpush.xpose.msra.mxu0 0.0
    %1132 = vmatpush.xpose.msra.mxu0 0.0
    %1133 = vmatpush.xpose.msra.mxu0 0.0
    %1134 = vmatpush.xpose.msra.mxu0 0.0
    %1135 = vmatpush.xpose.msra.mxu0 0.0
    %1136 = vmatpush.xpose.msra.mxu0 0.0
    %1137 = vmatpush.xpose.msra.mxu0 0.0
    %1138 = vmatpush.xpose.msra.mxu0 0.0
    %1139 = vmatpush.xpose.msra.mxu0 0.0
    %1140 = vmatpush.xpose.msra.mxu0 0.0
    %1141 = vmatpush.xpose.msra.mxu0 0.0
    %1142 = vmatpush.xpose.msra.mxu0 0.0
    %1143 = vmatpush.xpose.msra.mxu0 0.0
    %1144 = vmatpush.xpose.msra.mxu0 %v1127
    %1145 = vmatmul.f32.gmra.mxu0 %v1125
    %v1146 = vpop.f32.mrf.mxu0
    %v1147 = vadd.f32 %v95, %v1146
    %1148 = vdwg.mxu0
    %v1149 = vsel %vm162, %v1147, -inf
    %1150 = vmax.xlane.f32.xlu0 %v1149
    %v1151 = vpop.xlane.xlu0 %1150
    %v1152 = vsub.f32 %v1147, %v1151
    %v1153 = vmul.f32 %v1152, 1.442695
    %v1154 = vpow.pop %v1153
    %v1155 = vsel %vm162, %v1154, 0.0
    %1156 = vadd.xlane.f32.xlu0 %v1155
    %v1157 = vpop.xlane.xlu0 %1156
    %v1158 = vrcp.pop %v1157
    %v1159 = vmul.f32 %v1157, %v1158
    %v1160 = vsub.f32 1.0, %v1159
    %v1161 = vmul.f32 %v1158, %v1160
    %v1162 = vadd.f32 %v1158, %v1161
    %vm1163 = vweird.f32 %v1157
    %vm1164 = vweird.f32 %v1158
    %vm1165 = vmor %vm1163, %vm1164
    %v1166 = vsel %vm1165, %v1158, %v1162
    %v1167 = vand.u32 2147483647, %v1157
    %vm1168 = vcmp.eq.f32.partialorder %v1167, 8.507059e+37
    %v1169 = vand.u32 %v1157, 2147483648
    %v1170 = vor.u32 1.1754944e-38, %v1169
    %v1171 = vsel %vm1168, %v1170, %v1166
    %v1172 = vmul.f32 %v1154, %v1171
    %1173 = vrot.lane.b32.xlu0 %v1042, 56
    %v1174 = vpop.permute.xlu0 %1173
    %v1177 = vsel %vm162, %v1172, 0
    %1179 = vmatpush.msra.mxu0 0.0
    %1180 = vmatpush.msra.mxu0 0.0
    %1181 = vmatpush.msra.mxu0 0.0
    %1182 = vmatpush.msra.mxu0 0.0
    %1183 = vmatpush.msra.mxu0 0.0
    %1184 = vmatpush.msra.mxu0 0.0
    %1185 = vmatpush.msra.mxu0 0.0
    %1186 = vmatpush.msra.mxu0 0.0
    %1187 = vmatpush.msra.mxu0 0.0
    %1188 = vmatpush.msra.mxu0 0.0
    %1189 = vmatpush.msra.mxu0 0.0
    %1190 = vmatpush.msra.mxu0 0.0
    %1191 = vmatpush.msra.mxu0 0.0
    %1192 = vmatpush.msra.mxu0 0.0
    %1193 = vmatpush.msra.mxu0 0.0
    %1194 = vmatpush.msra.mxu0 %v1174
    %1195 = vmatmul.f32.gmra.mxu0 %v1177
    %v1196 = vpop.f32.mrf.mxu0
    %v1197 = vadd.f32 0.0, %v1196
    %1198 = vdwg.mxu0
    %v1200 = vsel %vm162, %v1197, 0
    %1202 = vmatpush.msra.mxu0 0.0
    %1203 = vmatpush.msra.mxu0 0.0
    %1204 = vmatpush.msra.mxu0 0.0
    %1205 = vmatpush.msra.mxu0 0.0
    %1206 = vmatpush.msra.mxu0 0.0
    %1207 = vmatpush.msra.mxu0 0.0
    %1208 = vmatpush.msra.mxu0 0.0
    %1209 = vmatpush.msra.mxu0 0.0
    %1210 = vmatpush.msra.mxu0 0.0
    %1211 = vmatpush.msra.mxu0 0.0
    %1212 = vmatpush.msra.mxu0 0.0
    %1213 = vmatpush.msra.mxu0 0.0
    %1214 = vmatpush.msra.mxu0 0.0
    %1215 = vmatpush.msra.mxu0 0.0
    %1216 = vmatpush.msra.mxu0 0.0
    %1217 = vmatpush.msra.mxu0 %v995
    %1218 = vmatmul.f32.gmra.mxu0 %v1200
    %v1219 = vpop.f32.mrf.mxu0
    %v1220 = vadd.f32 0.0, %v1219
    %1221 = vdwg.mxu0
    %v1223 = vsel %vm162, %v1119, 0
    %1225 = vmatpush.msra.mxu0 0.0
    %1226 = vmatpush.msra.mxu0 0.0
    %1227 = vmatpush.msra.mxu0 0.0
    %1228 = vmatpush.msra.mxu0 0.0
    %1229 = vmatpush.msra.mxu0 0.0
    %1230 = vmatpush.msra.mxu0 0.0
    %1231 = vmatpush.msra.mxu0 0.0
    %1232 = vmatpush.msra.mxu0 0.0
    %1233 = vmatpush.msra.mxu0 0.0
    %1234 = vmatpush.msra.mxu0 0.0
    %1235 = vmatpush.msra.mxu0 0.0
    %1236 = vmatpush.msra.mxu0 0.0
    %1237 = vmatpush.msra.mxu0 0.0
    %1238 = vmatpush.msra.mxu0 0.0
    %1239 = vmatpush.msra.mxu0 0.0
    %1240 = vmatpush.msra.mxu0 %v994
    %1241 = vmatmul.f32.gmra.mxu0 %v1223
    %v1242 = vpop.f32.mrf.mxu0
    %v1243 = vadd.f32 %v1220, %v1242
    %1244 = vdwg.mxu0
    %1245 = vrot.lane.b32.xlu0 %v1042, 112
    %v1246 = vpop.permute.xlu0 %1245
    %1247 = vrot.lane.b32.xlu0 %v1042, 80
    %v1248 = vpop.permute.xlu0 %1247
    %v1249 = vsel %vm162, %v1246, 0
    %v1251 = vsel %vm162, %v1248, 0
    %1253 = vmatpush.xpose.msra.mxu0 0.0
    %1254 = vmatpush.xpose.msra.mxu0 0.0
    %1255 = vmatpush.xpose.msra.mxu0 0.0
    %1256 = vmatpush.xpose.msra.mxu0 0.0
    %1257 = vmatpush.xpose.msra.mxu0 0.0
    %1258 = vmatpush.xpose.msra.mxu0 0.0
    %1259 = vmatpush.xpose.msra.mxu0 0.0
    %1260 = vmatpush.xpose.msra.mxu0 0.0
    %1261 = vmatpush.xpose.msra.mxu0 0.0
    %1262 = vmatpush.xpose.msra.mxu0 0.0
    %1263 = vmatpush.xpose.msra.mxu0 0.0
    %1264 = vmatpush.xpose.msra.mxu0 0.0
    %1265 = vmatpush.xpose.msra.mxu0 0.0
    %1266 = vmatpush.xpose.msra.mxu0 0.0
    %1267 = vmatpush.xpose.msra.mxu0 0.0
    %1268 = vmatpush.xpose.msra.mxu0 %v1251
    %1269 = vmatmul.f32.gmra.mxu0 %v1249
    %v1270 = vpop.f32.mrf.mxu0
    %v1271 = vadd.f32 %v95, %v1270
    %1272 = vdwg.mxu0
    %v1273 = vsel %vm162, %v1271, -inf
    %1274 = vmax.xlane.f32.xlu0 %v1273
    %v1275 = vpop.xlane.xlu0 %1274
    %v1276 = vsub.f32 %v1271, %v1275
    %v1277 = vmul.f32 %v1276, 1.442695
    %v1278 = vpow.pop %v1277
    %v1279 = vsel %vm162, %v1278, 0.0
    %1280 = vadd.xlane.f32.xlu0 %v1279
    %v1281 = vpop.xlane.xlu0 %1280
    %v1282 = vrcp.pop %v1281
    %v1283 = vmul.f32 %v1281, %v1282
    %v1284 = vsub.f32 1.0, %v1283
    %v1285 = vmul.f32 %v1282, %v1284
    %v1286 = vadd.f32 %v1282, %v1285
    %vm1287 = vweird.f32 %v1281
    %vm1288 = vweird.f32 %v1282
    %vm1289 = vmor %vm1287, %vm1288
    %v1290 = vsel %vm1289, %v1282, %v1286
    %v1291 = vand.u32 2147483647, %v1281
    %vm1292 = vcmp.eq.f32.partialorder %v1291, 8.507059e+37
    %v1293 = vand.u32 %v1281, 2147483648
    %v1294 = vor.u32 1.1754944e-38, %v1293
    %v1295 = vsel %vm1292, %v1294, %v1290
    %v1296 = vmul.f32 %v1278, %v1295
    %1297 = vrot.lane.b32.xlu0 %v1042, 48
    %v1298 = vpop.permute.xlu0 %1297
    %v1301 = vsel %vm162, %v1296, 0
    %1303 = vmatpush.msra.mxu0 0.0
    %1304 = vmatpush.msra.mxu0 0.0
    %1305 = vmatpush.msra.mxu0 0.0
    %1306 = vmatpush.msra.mxu0 0.0
    %1307 = vmatpush.msra.mxu0 0.0
    %1308 = vmatpush.msra.mxu0 0.0
    %1309 = vmatpush.msra.mxu0 0.0
    %1310 = vmatpush.msra.mxu0 0.0
    %1311 = vmatpush.msra.mxu0 0.0
    %1312 = vmatpush.msra.mxu0 0.0
    %1313 = vmatpush.msra.mxu0 0.0
    %1314 = vmatpush.msra.mxu0 0.0
    %1315 = vmatpush.msra.mxu0 0.0
    %1316 = vmatpush.msra.mxu0 0.0
    %1317 = vmatpush.msra.mxu0 0.0
    %1318 = vmatpush.msra.mxu0 %v1298
    %1319 = vmatmul.f32.gmra.mxu0 %v1301
    %v1320 = vpop.f32.mrf.mxu0
    %v1321 = vadd.f32 0.0, %v1320
    %1322 = vdwg.mxu0
    %v1324 = vsel %vm162, %v1321, 0
    %1326 = vmatpush.msra.mxu0 0.0
    %1327 = vmatpush.msra.mxu0 0.0
    %1328 = vmatpush.msra.mxu0 0.0
    %1329 = vmatpush.msra.mxu0 0.0
    %1330 = vmatpush.msra.mxu0 0.0
    %1331 = vmatpush.msra.mxu0 0.0
    %1332 = vmatpush.msra.mxu0 0.0
    %1333 = vmatpush.msra.mxu0 0.0
    %1334 = vmatpush.msra.mxu0 0.0
    %1335 = vmatpush.msra.mxu0 0.0
    %1336 = vmatpush.msra.mxu0 0.0
    %1337 = vmatpush.msra.mxu0 0.0
    %1338 = vmatpush.msra.mxu0 0.0
    %1339 = vmatpush.msra.mxu0 0.0
    %1340 = vmatpush.msra.mxu0 0.0
    %1341 = vmatpush.msra.mxu0 %v996
    %1342 = vmatmul.f32.gmra.mxu0 %v1324
    %v1343 = vpop.f32.mrf.mxu0
    %v1344 = vadd.f32 0.0, %v1343
    %1345 = vdwg.mxu0
    %v1346 = vadd.f32 %v1243, %v1344
    %1347 = vrot.lane.b32.xlu0 %v1042, 104
    %v1348 = vpop.permute.xlu0 %1347
    %1349 = vrot.lane.b32.xlu0 %v1042, 72
    %v1350 = vpop.permute.xlu0 %1349
    %v1351 = vsel %vm162, %v1348, 0
    %v1353 = vsel %vm162, %v1350, 0
    %1355 = vmatpush.xpose.msra.mxu0 0.0
    %1356 = vmatpush.xpose.msra.mxu0 0.0
    %1357 = vmatpush.xpose.msra.mxu0 0.0
    %1358 = vmatpush.xpose.msra.mxu0 0.0
    %1359 = vmatpush.xpose.msra.mxu0 0.0
    %1360 = vmatpush.xpose.msra.mxu0 0.0
    %1361 = vmatpush.xpose.msra.mxu0 0.0
    %1362 = vmatpush.xpose.msra.mxu0 0.0
    %1363 = vmatpush.xpose.msra.mxu0 0.0
    %1364 = vmatpush.xpose.msra.mxu0 0.0
    %1365 = vmatpush.xpose.msra.mxu0 0.0
    %1366 = vmatpush.xpose.msra.mxu0 0.0
    %1367 = vmatpush.xpose.msra.mxu0 0.0
    %1368 = vmatpush.xpose.msra.mxu0 0.0
    %1369 = vmatpush.xpose.msra.mxu0 0.0
    %1370 = vmatpush.xpose.msra.mxu0 %v1353
    %1371 = vmatmul.f32.gmra.mxu0 %v1351
    %v1372 = vpop.f32.mrf.mxu0
    %v1373 = vadd.f32 %v95, %v1372
    %1374 = vdwg.mxu0
    %v1375 = vsel %vm162, %v1373, -inf
    %1376 = vmax.xlane.f32.xlu0 %v1375
    %v1377 = vpop.xlane.xlu0 %1376
    %v1378 = vsub.f32 %v1373, %v1377
    %v1379 = vmul.f32 %v1378, 1.442695
    %v1380 = vpow.pop %v1379
    %v1381 = vsel %vm162, %v1380, 0.0
    %1382 = vadd.xlane.f32.xlu0 %v1381
    %v1383 = vpop.xlane.xlu0 %1382
    %v1384 = vrcp.pop %v1383
    %v1385 = vmul.f32 %v1383, %v1384
    %v1386 = vsub.f32 1.0, %v1385
    %v1387 = vmul.f32 %v1384, %v1386
    %v1388 = vadd.f32 %v1384, %v1387
    %vm1389 = vweird.f32 %v1383
    %vm1390 = vweird.f32 %v1384
    %vm1391 = vmor %vm1389, %vm1390
    %v1392 = vsel %vm1391, %v1384, %v1388
    %v1393 = vand.u32 2147483647, %v1383
    %vm1394 = vcmp.eq.f32.partialorder %v1393, 8.507059e+37
    %v1395 = vand.u32 %v1383, 2147483648
    %v1396 = vor.u32 1.1754944e-38, %v1395
    %v1397 = vsel %vm1394, %v1396, %v1392
    %v1398 = vmul.f32 %v1380, %v1397
    %1399 = vrot.lane.b32.xlu0 %v1042, 40
    %v1400 = vpop.permute.xlu0 %1399
    %v1403 = vsel %vm162, %v1398, 0
    %1405 = vmatpush.msra.mxu0 0.0
    %1406 = vmatpush.msra.mxu0 0.0
    %1407 = vmatpush.msra.mxu0 0.0
    %1408 = vmatpush.msra.mxu0 0.0
    %1409 = vmatpush.msra.mxu0 0.0
    %1410 = vmatpush.msra.mxu0 0.0
    %1411 = vmatpush.msra.mxu0 0.0
    %1412 = vmatpush.msra.mxu0 0.0
    %1413 = vmatpush.msra.mxu0 0.0
    %1414 = vmatpush.msra.mxu0 0.0
    %1415 = vmatpush.msra.mxu0 0.0
    %1416 = vmatpush.msra.mxu0 0.0
    %1417 = vmatpush.msra.mxu0 0.0
    %1418 = vmatpush.msra.mxu0 0.0
    %1419 = vmatpush.msra.mxu0 0.0
    %1420 = vmatpush.msra.mxu0 %v1400
    %1421 = vmatmul.f32.gmra.mxu0 %v1403
    %v1422 = vpop.f32.mrf.mxu0
    %v1423 = vadd.f32 0.0, %v1422
    %1424 = vdwg.mxu0
    %v1426 = vsel %vm162, %v1423, 0
    %1428 = vmatpush.msra.mxu0 0.0
    %1429 = vmatpush.msra.mxu0 0.0
    %1430 = vmatpush.msra.mxu0 0.0
    %1431 = vmatpush.msra.mxu0 0.0
    %1432 = vmatpush.msra.mxu0 0.0
    %1433 = vmatpush.msra.mxu0 0.0
    %1434 = vmatpush.msra.mxu0 0.0
    %1435 = vmatpush.msra.mxu0 0.0
    %1436 = vmatpush.msra.mxu0 0.0
    %1437 = vmatpush.msra.mxu0 0.0
    %1438 = vmatpush.msra.mxu0 0.0
    %1439 = vmatpush.msra.mxu0 0.0
    %1440 = vmatpush.msra.mxu0 0.0
    %1441 = vmatpush.msra.mxu0 0.0
    %1442 = vmatpush.msra.mxu0 0.0
    %1443 = vmatpush.msra.mxu0 %v997
    %1444 = vmatmul.f32.gmra.mxu0 %v1426
    %v1445 = vpop.f32.mrf.mxu0
    %v1446 = vadd.f32 0.0, %v1445
    %1447 = vdwg.mxu0
    %v1448 = vadd.f32 %v1346, %v1446
    %v1449 = vperm.slane %v998, 0
    %v1450 = vadd.f32 %v1448, %v1449
    %v1452 = vrot.slane %v1450, 1
    %v1453 = vrot.slane %v1450, 2
    %v1454 = vrot.slane %v1450, 3
    %v1455 = vrot.slane %v1450, 4
    %v1456 = vrot.slane %v1450, 5
    %v1457 = vrot.slane %v1450, 6
    %v1458 = vrot.slane %v1450, 7
    %v1467 = vadd.f32 %v981, %v1450
    %v1468 = vadd.f32 %v982, %v1452
    %v1469 = vadd.f32 %v983, %v1453
    %v1470 = vadd.f32 %v984, %v1454
    %v1471 = vadd.f32 %v985, %v1455
    %v1472 = vadd.f32 %v986, %v1456
    %v1473 = vadd.f32 %v987, %v1457
    %v1474 = vadd.f32 %v988, %v1458
    %v1475 = vld [vmem:[#allocation7 + $0x1a] sm:$0x1]
    %v1476 = vld [vmem:[#allocation7 + $0x1b] sm:$0x1]
    %v1485 = vrot.slane %v1468, 7
    %v1486 = vsel %vm116, %v1485, %v1467
    %v1487 = vrot.slane %v1469, 6
    %v1488 = vsel %vm119, %v1487, %v1486
    %v1489 = vrot.slane %v1470, 5
    %v1490 = vsel %vm122, %v1489, %v1488
    %v1491 = vrot.slane %v1471, 4
    %v1492 = vsel %vm125, %v1491, %v1490
    %v1493 = vrot.slane %v1472, 3
    %v1494 = vsel %vm128, %v1493, %v1492
    %v1495 = vrot.slane %v1473, 2
    %v1496 = vsel %vm131, %v1495, %v1494
    %v1497 = vrot.slane %v1474, 1
    %v1498 = vsel %vm134, %v1497, %v1496
    %v1500 = vsel %vm136, %v1498, 0.0
    %1501 = vadd.xlane.f32.xlu0 %v1500
    %v1502 = vpop.xlane.xlu0 %1501
    %v1503 = vmul.f32 %v1502, %v625
    %v1505 = vrot.slane %v1503, 1
    %v1506 = vrot.slane %v1503, 2
    %v1507 = vrot.slane %v1503, 3
    %v1508 = vrot.slane %v1503, 4
    %v1509 = vrot.slane %v1503, 5
    %v1510 = vrot.slane %v1503, 6
    %v1511 = vrot.slane %v1503, 7
    %v1520 = vsub.f32 %v1467, %v1503
    %v1521 = vsub.f32 %v1468, %v1505
    %v1522 = vsub.f32 %v1469, %v1506
    %v1523 = vsub.f32 %v1470, %v1507
    %v1524 = vsub.f32 %v1471, %v1508
    %v1525 = vsub.f32 %v1472, %v1509
    %v1526 = vsub.f32 %v1473, %v1510
    %v1527 = vsub.f32 %v1474, %v1511
    %v1528 = vmul.f32 %v1520, %v1520
    %v1529 = vmul.f32 %v1521, %v1521
    %v1530 = vmul.f32 %v1522, %v1522
    %v1531 = vmul.f32 %v1523, %v1523
    %v1532 = vmul.f32 %v1524, %v1524
    %v1533 = vmul.f32 %v1525, %v1525
    %v1534 = vmul.f32 %v1526, %v1526
    %v1535 = vmul.f32 %v1527, %v1527
    %v1544 = vrot.slane %v1529, 7
    %v1545 = vsel %vm116, %v1544, %v1528
    %v1546 = vrot.slane %v1530, 6
    %v1547 = vsel %vm119, %v1546, %v1545
    %v1548 = vrot.slane %v1531, 5
    %v1549 = vsel %vm122, %v1548, %v1547
    %v1550 = vrot.slane %v1532, 4
    %v1551 = vsel %vm125, %v1550, %v1549
    %v1552 = vrot.slane %v1533, 3
    %v1553 = vsel %vm128, %v1552, %v1551
    %v1554 = vrot.slane %v1534, 2
    %v1555 = vsel %vm131, %v1554, %v1553
    %v1556 = vrot.slane %v1535, 1
    %v1557 = vsel %vm134, %v1556, %v1555
    %v1559 = vsel %vm136, %v1557, 0.0
    %1560 = vadd.xlane.f32.xlu0 %v1559
    %v1561 = vpop.xlane.xlu0 %1560
    %v1562 = vmul.f32 %v1561, %v625
    %v1563 = vadd.f32 %v1562, 1e-05
    %v1564 = vrsqrt.pop %v1563
    %v1565 = vmul.f32 %v1564, %v1563
    %v1566 = vmul.f32 %v1565, %v1564
    %v1567 = vmul.f32 0.5, %v1566
    %v1568 = vsub.f32 1.5, %v1567
    %v1569 = vmul.f32 %v1564, %v1568
    %vm1570 = vweird.f32 %v1563
    %vm1571 = vweird.f32 %v1564
    %vm1572 = vmor %vm1570, %vm1571
    %v1573 = vsel %vm1572, %v1564, %v1569
    %v1575 = vrot.slane %v1573, 1
    %v1576 = vrot.slane %v1573, 2
    %v1577 = vrot.slane %v1573, 3
    %v1578 = vrot.slane %v1573, 4
    %v1579 = vrot.slane %v1573, 5
    %v1580 = vrot.slane %v1573, 6
    %v1581 = vrot.slane %v1573, 7
    %v1590 = vmul.f32 %v1520, %v1573
    %v1591 = vmul.f32 %v1521, %v1575
    %v1592 = vmul.f32 %v1522, %v1576
    %v1593 = vmul.f32 %v1523, %v1577
    %v1594 = vmul.f32 %v1524, %v1578
    %v1595 = vmul.f32 %v1525, %v1579
    %v1596 = vmul.f32 %v1526, %v1580
    %v1597 = vmul.f32 %v1527, %v1581
    %v1598 = vperm.slane %v1475, 0
    %v1599 = vmul.f32 %v1590, %v1598
    %v1600 = vmul.f32 %v1591, %v1598
    %v1601 = vmul.f32 %v1592, %v1598
    %v1602 = vmul.f32 %v1593, %v1598
    %v1603 = vmul.f32 %v1594, %v1598
    %v1604 = vmul.f32 %v1595, %v1598
    %v1605 = vmul.f32 %v1596, %v1598
    %v1606 = vmul.f32 %v1597, %v1598
    %v1607 = vperm.slane %v1476, 0
    %v1608 = vadd.f32 %v1599, %v1607
    %v1609 = vadd.f32 %v1600, %v1607
    %v1610 = vadd.f32 %v1601, %v1607
    %v1611 = vadd.f32 %v1602, %v1607
    %v1612 = vadd.f32 %v1603, %v1607
    %v1613 = vadd.f32 %v1604, %v1607
    %v1614 = vadd.f32 %v1605, %v1607
    %v1615 = vadd.f32 %v1606, %v1607
    %v1616 = vld [vmem:[#allocation5 + $0xe0] sm:$0xff]
    %v1617 = vld [vmem:[#allocation5 + $0xe8] sm:$0xff]
    %v1618 = vld [vmem:[#allocation5 + $0xf0] sm:$0xff]
    %v1619 = vld [vmem:[#allocation5 + $0xf8] sm:$0xff]
    %v1620 = vld [vmem:[#allocation7 + $0x1c] sm:$0x1]
    %v1621 = vld [vmem:[#allocation5 + $0x100] sm:$0xff]
    %v1622 = vld [vmem:[#allocation5 + $0x108] sm:$0xff]
    %v1623 = vld [vmem:[#allocation5 + $0x110] sm:$0xff]
    %v1624 = vld [vmem:[#allocation5 + $0x118] sm:$0xff]
    %v1625 = vld [vmem:[#allocation5 + $0x120] sm:$0xff]
    %v1626 = vld [vmem:[#allocation5 + $0x128] sm:$0xff]
    %v1627 = vld [vmem:[#allocation5 + $0x130] sm:$0xff]
    %v1628 = vld [vmem:[#allocation5 + $0x138] sm:$0xff]
    %v1629 = vld [vmem:[#allocation7 + $0x1d] sm:$0x1]
    %v1630 = vperm.slane %v1620, 0
    %v1639 = vrot.slane %v1609, 7
    %v1640 = vsel %vm116, %v1639, %v1608
    %v1641 = vrot.slane %v1610, 6
    %v1642 = vsel %vm119, %v1641, %v1640
    %v1643 = vrot.slane %v1611, 5
    %v1644 = vsel %vm122, %v1643, %v1642
    %v1645 = vrot.slane %v1612, 4
    %v1646 = vsel %vm125, %v1645, %v1644
    %v1647 = vrot.slane %v1613, 3
    %v1648 = vsel %vm128, %v1647, %v1646
    %v1649 = vrot.slane %v1614, 2
    %v1650 = vsel %vm131, %v1649, %v1648
    %v1651 = vrot.slane %v1615, 1
    %v1652 = vsel %vm134, %v1651, %v1650
    %v1653 = vsel %vm136, %v1652, 0
    %1655 = vmatpush.msra.mxu0 0.0
    %1656 = vmatpush.msra.mxu0 0.0
    %1657 = vmatpush.msra.mxu0 0.0
    %1658 = vmatpush.msra.mxu0 0.0
    %1659 = vmatpush.msra.mxu0 0.0
    %1660 = vmatpush.msra.mxu0 0.0
    %1661 = vmatpush.msra.mxu0 0.0
    %1662 = vmatpush.msra.mxu0 0.0
    %1663 = vmatpush.msra.mxu0 0.0
    %1664 = vmatpush.msra.mxu0 0.0
    %1665 = vmatpush.msra.mxu0 0.0
    %1666 = vmatpush.msra.mxu0 0.0
    %1667 = vmatpush.msra.mxu0 %v1619
    %1668 = vmatpush.msra.mxu0 %v1618
    %1669 = vmatpush.msra.mxu0 %v1617
    %1670 = vmatpush.msra.mxu0 %v1616
    %1671 = vmatmul.f32.gmra.mxu0 %v1653
    %v1672 = vpop.f32.mrf.mxu0
    %v1673 = vadd.f32 %v1630, %v1672
    %1674 = vdwg.mxu0
    %v1675 = vmax.f32 %v1673, 0.0
    %v1676 = vperm.slane %v1629, 0
    %v1678 = vsel %vm800, %v1675, 0
    %1680 = vmatpush.msra.mxu0 0.0
    %1681 = vmatpush.msra.mxu0 0.0
    %1682 = vmatpush.msra.mxu0 0.0
    %1683 = vmatpush.msra.mxu0 0.0
    %1684 = vmatpush.msra.mxu0 0.0
    %1685 = vmatpush.msra.mxu0 0.0
    %1686 = vmatpush.msra.mxu0 0.0
    %1687 = vmatpush.msra.mxu0 0.0
    %1688 = vmatpush.msra.mxu0 %v1628
    %1689 = vmatpush.msra.mxu0 %v1627
    %1690 = vmatpush.msra.mxu0 %v1626
    %1691 = vmatpush.msra.mxu0 %v1625
    %1692 = vmatpush.msra.mxu0 %v1624
    %1693 = vmatpush.msra.mxu0 %v1623
    %1694 = vmatpush.msra.mxu0 %v1622
    %1695 = vmatpush.msra.mxu0 %v1621
    %1696 = vmatmul.f32.gmra.mxu0 %v1678
    %v1697 = vpop.f32.mrf.mxu0
    %v1698 = vadd.f32 %v1676, %v1697
    %1699 = vdwg.mxu0
    %v1701 = vrot.slane %v1698, 1
    %v1702 = vrot.slane %v1698, 2
    %v1703 = vrot.slane %v1698, 3
    %v1704 = vrot.slane %v1698, 4
    %v1705 = vrot.slane %v1698, 5
    %v1706 = vrot.slane %v1698, 6
    %v1707 = vrot.slane %v1698, 7
    %v1716 = vadd.f32 %v1608, %v1698
    %v1717 = vadd.f32 %v1609, %v1701
    %v1718 = vadd.f32 %v1610, %v1702
    %v1719 = vadd.f32 %v1611, %v1703
    %v1720 = vadd.f32 %v1612, %v1704
    %v1721 = vadd.f32 %v1613, %v1705
    %v1722 = vadd.f32 %v1614, %v1706
    %v1723 = vadd.f32 %v1615, %v1707
    %v1724 = vld [vmem:[#allocation7 + $0x1e] sm:$0x1]
    %v1725 = vld [vmem:[#allocation7 + $0x1f] sm:$0x1]
    %v1734 = vrot.slane %v1717, 7
    %v1735 = vsel %vm116, %v1734, %v1716
    %v1736 = vrot.slane %v1718, 6
    %v1737 = vsel %vm119, %v1736, %v1735
    %v1738 = vrot.slane %v1719, 5
    %v1739 = vsel %vm122, %v1738, %v1737
    %v1740 = vrot.slane %v1720, 4
    %v1741 = vsel %vm125, %v1740, %v1739
    %v1742 = vrot.slane %v1721, 3
    %v1743 = vsel %vm128, %v1742, %v1741
    %v1744 = vrot.slane %v1722, 2
    %v1745 = vsel %vm131, %v1744, %v1743
    %v1746 = vrot.slane %v1723, 1
    %v1747 = vsel %vm134, %v1746, %v1745
    %v1749 = vsel %vm136, %v1747, 0.0
    %1750 = vadd.xlane.f32.xlu0 %v1749
    %v1751 = vpop.xlane.xlu0 %1750
    %v1752 = vmul.f32 %v1751, %v625
    %v1754 = vrot.slane %v1752, 1
    %v1755 = vrot.slane %v1752, 2
    %v1756 = vrot.slane %v1752, 3
    %v1757 = vrot.slane %v1752, 4
    %v1758 = vrot.slane %v1752, 5
    %v1759 = vrot.slane %v1752, 6
    %v1760 = vrot.slane %v1752, 7
    %v1769 = vsub.f32 %v1716, %v1752
    %v1770 = vsub.f32 %v1717, %v1754
    %v1771 = vsub.f32 %v1718, %v1755
    %v1772 = vsub.f32 %v1719, %v1756
    %v1773 = vsub.f32 %v1720, %v1757
    %v1774 = vsub.f32 %v1721, %v1758
    %v1775 = vsub.f32 %v1722, %v1759
    %v1776 = vsub.f32 %v1723, %v1760
    %v1777 = vmul.f32 %v1769, %v1769
    %v1778 = vmul.f32 %v1770, %v1770
    %v1779 = vmul.f32 %v1771, %v1771
    %v1780 = vmul.f32 %v1772, %v1772
    %v1781 = vmul.f32 %v1773, %v1773
    %v1782 = vmul.f32 %v1774, %v1774
    %v1783 = vmul.f32 %v1775, %v1775
    %v1784 = vmul.f32 %v1776, %v1776
    %v1793 = vrot.slane %v1778, 7
    %v1794 = vsel %vm116, %v1793, %v1777
    %v1795 = vrot.slane %v1779, 6
    %v1796 = vsel %vm119, %v1795, %v1794
    %v1797 = vrot.slane %v1780, 5
    %v1798 = vsel %vm122, %v1797, %v1796
    %v1799 = vrot.slane %v1781, 4
    %v1800 = vsel %vm125, %v1799, %v1798
    %v1801 = vrot.slane %v1782, 3
    %v1802 = vsel %vm128, %v1801, %v1800
    %v1803 = vrot.slane %v1783, 2
    %v1804 = vsel %vm131, %v1803, %v1802
    %v1805 = vrot.slane %v1784, 1
    %v1806 = vsel %vm134, %v1805, %v1804
    %v1808 = vsel %vm136, %v1806, 0.0
    %1809 = vadd.xlane.f32.xlu0 %v1808
    %v1810 = vpop.xlane.xlu0 %1809
    %v1811 = vmul.f32 %v1810, %v625
    %v1812 = vadd.f32 %v1811, 1e-05
    %v1813 = vrsqrt.pop %v1812
    %v1814 = vmul.f32 %v1813, %v1812
    %v1815 = vmul.f32 %v1814, %v1813
    %v1816 = vmul.f32 0.5, %v1815
    %v1817 = vsub.f32 1.5, %v1816
    %v1818 = vmul.f32 %v1813, %v1817
    %vm1819 = vweird.f32 %v1812
    %vm1820 = vweird.f32 %v1813
    %vm1821 = vmor %vm1819, %vm1820
    %v1822 = vsel %vm1821, %v1813, %v1818
    %v1824 = vrot.slane %v1822, 1
    %v1825 = vrot.slane %v1822, 2
    %v1826 = vrot.slane %v1822, 3
    %v1827 = vrot.slane %v1822, 4
    %v1828 = vrot.slane %v1822, 5
    %v1829 = vrot.slane %v1822, 6
    %v1830 = vrot.slane %v1822, 7
    %v1839 = vmul.f32 %v1769, %v1822
    %v1840 = vmul.f32 %v1770, %v1824
    %v1841 = vmul.f32 %v1771, %v1825
    %v1842 = vmul.f32 %v1772, %v1826
    %v1843 = vmul.f32 %v1773, %v1827
    %v1844 = vmul.f32 %v1774, %v1828
    %v1845 = vmul.f32 %v1775, %v1829
    %v1846 = vmul.f32 %v1776, %v1830
    %v1847 = vperm.slane %v1724, 0
    %v1848 = vmul.f32 %v1839, %v1847
    %v1849 = vmul.f32 %v1840, %v1847
    %v1850 = vmul.f32 %v1841, %v1847
    %v1851 = vmul.f32 %v1842, %v1847
    %v1852 = vmul.f32 %v1843, %v1847
    %v1853 = vmul.f32 %v1844, %v1847
    %v1854 = vmul.f32 %v1845, %v1847
    %v1855 = vmul.f32 %v1846, %v1847
    %v1856 = vperm.slane %v1725, 0
    %v1857 = vadd.f32 %v1848, %v1856
    %v1858 = vadd.f32 %v1849, %v1856
    %v1859 = vadd.f32 %v1850, %v1856
    %v1860 = vadd.f32 %v1851, %v1856
    %v1861 = vadd.f32 %v1852, %v1856
    %v1862 = vadd.f32 %v1853, %v1856
    %v1863 = vadd.f32 %v1854, %v1856
    %v1864 = vadd.f32 %v1855, %v1856
    %v1865 = vld [vmem:[#allocation7 + $0x20] sm:$0x1]
    %v1866 = vld [vmem:[#allocation7 + $0x21] sm:$0x1]
    %v1875 = vrot.slane %v1858, 7
    %v1876 = vsel %vm116, %v1875, %v1857
    %v1877 = vrot.slane %v1859, 6
    %v1878 = vsel %vm119, %v1877, %v1876
    %v1879 = vrot.slane %v1860, 5
    %v1880 = vsel %vm122, %v1879, %v1878
    %v1881 = vrot.slane %v1861, 4
    %v1882 = vsel %vm125, %v1881, %v1880
    %v1883 = vrot.slane %v1862, 3
    %v1884 = vsel %vm128, %v1883, %v1882
    %v1885 = vrot.slane %v1863, 2
    %v1886 = vsel %vm131, %v1885, %v1884
    %v1887 = vrot.slane %v1864, 1
    %v1888 = vsel %vm134, %v1887, %v1886
    %v1890 = vsel %vm136, %v1888, 0.0
    %1891 = vadd.xlane.f32.xlu0 %v1890
    %v1892 = vpop.xlane.xlu0 %1891
    %v1893 = vmul.f32 %v1892, %v625
    %v1895 = vrot.slane %v1893, 1
    %v1896 = vrot.slane %v1893, 2
    %v1897 = vrot.slane %v1893, 3
    %v1898 = vrot.slane %v1893, 4
    %v1899 = vrot.slane %v1893, 5
    %v1900 = vrot.slane %v1893, 6
    %v1901 = vrot.slane %v1893, 7
    %v1910 = vsub.f32 %v1857, %v1893
    %v1911 = vsub.f32 %v1858, %v1895
    %v1912 = vsub.f32 %v1859, %v1896
    %v1913 = vsub.f32 %v1860, %v1897
    %v1914 = vsub.f32 %v1861, %v1898
    %v1915 = vsub.f32 %v1862, %v1899
    %v1916 = vsub.f32 %v1863, %v1900
    %v1917 = vsub.f32 %v1864, %v1901
    %v1918 = vmul.f32 %v1910, %v1910
    %v1919 = vmul.f32 %v1911, %v1911
    %v1920 = vmul.f32 %v1912, %v1912
    %v1921 = vmul.f32 %v1913, %v1913
    %v1922 = vmul.f32 %v1914, %v1914
    %v1923 = vmul.f32 %v1915, %v1915
    %v1924 = vmul.f32 %v1916, %v1916
    %v1925 = vmul.f32 %v1917, %v1917
    %v1934 = vrot.slane %v1919, 7
    %v1935 = vsel %vm116, %v1934, %v1918
    %v1936 = vrot.slane %v1920, 6
    %v1937 = vsel %vm119, %v1936, %v1935
    %v1938 = vrot.slane %v1921, 5
    %v1939 = vsel %vm122, %v1938, %v1937
    %v1940 = vrot.slane %v1922, 4
    %v1941 = vsel %vm125, %v1940, %v1939
    %v1942 = vrot.slane %v1923, 3
    %v1943 = vsel %vm128, %v1942, %v1941
    %v1944 = vrot.slane %v1924, 2
    %v1945 = vsel %vm131, %v1944, %v1943
    %v1946 = vrot.slane %v1925, 1
    %v1947 = vsel %vm134, %v1946, %v1945
    %v1949 = vsel %vm136, %v1947, 0.0
    %1950 = vadd.xlane.f32.xlu0 %v1949
    %v1951 = vpop.xlane.xlu0 %1950
    %v1952 = vmul.f32 %v1951, %v625
    %v1953 = vadd.f32 %v1952, 1e-05
    %v1954 = vrsqrt.pop %v1953
    %v1955 = vmul.f32 %v1954, %v1953
    %v1956 = vmul.f32 %v1955, %v1954
    %v1957 = vmul.f32 0.5, %v1956
    %v1958 = vsub.f32 1.5, %v1957
    %v1959 = vmul.f32 %v1954, %v1958
    %vm1960 = vweird.f32 %v1953
    %vm1961 = vweird.f32 %v1954
    %vm1962 = vmor %vm1960, %vm1961
    %v1963 = vsel %vm1962, %v1954, %v1959
    %v1965 = vrot.slane %v1963, 1
    %v1966 = vrot.slane %v1963, 2
    %v1967 = vrot.slane %v1963, 3
    %v1968 = vrot.slane %v1963, 4
    %v1969 = vrot.slane %v1963, 5
    %v1970 = vrot.slane %v1963, 6
    %v1971 = vrot.slane %v1963, 7
    %v1980 = vmul.f32 %v1910, %v1963
    %v1981 = vmul.f32 %v1911, %v1965
    %v1982 = vmul.f32 %v1912, %v1966
    %v1983 = vmul.f32 %v1913, %v1967
    %v1984 = vmul.f32 %v1914, %v1968
    %v1985 = vmul.f32 %v1915, %v1969
    %v1986 = vmul.f32 %v1916, %v1970
    %v1987 = vmul.f32 %v1917, %v1971
    %v1988 = vperm.slane %v1865, 0
    %v1989 = vmul.f32 %v1980, %v1988
    %v1990 = vmul.f32 %v1981, %v1988
    %v1991 = vmul.f32 %v1982, %v1988
    %v1992 = vmul.f32 %v1983, %v1988
    %v1993 = vmul.f32 %v1984, %v1988
    %v1994 = vmul.f32 %v1985, %v1988
    %v1995 = vmul.f32 %v1986, %v1988
    %v1996 = vmul.f32 %v1987, %v1988
    %v1997 = vperm.slane %v1866, 0
    %v1998 = vadd.f32 %v1989, %v1997
    %v1999 = vadd.f32 %v1990, %v1997
    %v2000 = vadd.f32 %v1991, %v1997
    %v2001 = vadd.f32 %v1992, %v1997
    %v2002 = vadd.f32 %v1993, %v1997
    %v2003 = vadd.f32 %v1994, %v1997
    %v2004 = vadd.f32 %v1995, %v1997
    %v2005 = vadd.f32 %v1996, %v1997
    %v2006 = vld [vmem:[#allocation5 + $0x140] sm:$0xff]
    %v2007 = vld [vmem:[#allocation5 + $0x148] sm:$0xff]
    %v2008 = vld [vmem:[#allocation5 + $0x150] sm:$0xff]
    %v2009 = vld [vmem:[#allocation5 + $0x158] sm:$0xff]
    %v2010 = vld [vmem:[#allocation7 + $0x22] sm:$0x1]
    %v2011 = vld [vmem:[#allocation5 + $0x160] sm:$0xff]
    %v2012 = vld [vmem:[#allocation5 + $0x168] sm:$0xff]
    %v2013 = vld [vmem:[#allocation5 + $0x170] sm:$0xff]
    %v2014 = vld [vmem:[#allocation5 + $0x178] sm:$0xff]
    %v2015 = vld [vmem:[#allocation7 + $0x23] sm:$0x1]
    %v2016 = vperm.slane %v2010, 0
    %2017 = vmatpush.msra.mxu0 0.0
    %2018 = vmatpush.msra.mxu0 0.0
    %2019 = vmatpush.msra.mxu0 0.0
    %2020 = vmatpush.msra.mxu0 0.0
    %2021 = vmatpush.msra.mxu0 0.0
    %2022 = vmatpush.msra.mxu0 0.0
    %2023 = vmatpush.msra.mxu0 0.0
    %2024 = vmatpush.msra.mxu0 0.0
    %2025 = vmatpush.msra.mxu0 0.0
    %2026 = vmatpush.msra.mxu0 0.0
    %2027 = vmatpush.msra.mxu0 0.0
    %2028 = vmatpush.msra.mxu0 0.0
    %2029 = vmatpush.msra.mxu0 %v2009
    %2030 = vmatpush.msra.mxu0 %v2008
    %2031 = vmatpush.msra.mxu0 %v2007
    %2032 = vmatpush.msra.mxu0 %v2006
    %2033 = vmatmul.f32.gmra.mxu0 %v137
    %v2034 = vpop.f32.mrf.mxu0
    %v2035 = vadd.f32 %v2016, %v2034
    %2036 = vdwg.mxu0
    %2038 = vrot.lane.b32.xlu0 %v2035, 96
    %v2039 = vpop.permute.xlu0 %2038
    %v2040 = vsel %vm162, %v2035, 0
    %v2042 = vsel %vm162, %v2039, 0
    %2044 = vmatpush.xpose.msra.mxu0 0.0
    %2045 = vmatpush.xpose.msra.mxu0 0.0
    %2046 = vmatpush.xpose.msra.mxu0 0.0
    %2047 = vmatpush.xpose.msra.mxu0 0.0
    %2048 = vmatpush.xpose.msra.mxu0 0.0
    %2049 = vmatpush.xpose.msra.mxu0 0.0
    %2050 = vmatpush.xpose.msra.mxu0 0.0
    %2051 = vmatpush.xpose.msra.mxu0 0.0
    %2052 = vmatpush.xpose.msra.mxu0 0.0
    %2053 = vmatpush.xpose.msra.mxu0 0.0
    %2054 = vmatpush.xpose.msra.mxu0 0.0
    %2055 = vmatpush.xpose.msra.mxu0 0.0
    %2056 = vmatpush.xpose.msra.mxu0 0.0
    %2057 = vmatpush.xpose.msra.mxu0 0.0
    %2058 = vmatpush.xpose.msra.mxu0 0.0
    %2059 = vmatpush.xpose.msra.mxu0 %v2042
    %2060 = vmatmul.f32.gmra.mxu0 %v2040
    %v2061 = vpop.f32.mrf.mxu0
    %v2062 = vadd.f32 0.0, %v2061
    %2063 = vdwg.mxu0
    %v2064 = vsel %vm162, %v2062, -inf
    %2065 = vmax.xlane.f32.xlu0 %v2064
    %v2066 = vpop.xlane.xlu0 %2065
    %v2067 = vsub.f32 %v2062, %v2066
    %v2068 = vmul.f32 %v2067, 1.442695
    %v2069 = vpow.pop %v2068
    %v2070 = vsel %vm162, %v2069, 0.0
    %2071 = vadd.xlane.f32.xlu0 %v2070
    %v2072 = vpop.xlane.xlu0 %2071
    %v2073 = vrcp.pop %v2072
    %v2074 = vmul.f32 %v2072, %v2073
    %v2075 = vsub.f32 1.0, %v2074
    %v2076 = vmul.f32 %v2073, %v2075
    %v2077 = vadd.f32 %v2073, %v2076
    %vm2078 = vweird.f32 %v2072
    %vm2079 = vweird.f32 %v2073
    %vm2080 = vmor %vm2078, %vm2079
    %v2081 = vsel %vm2080, %v2073, %v2077
    %v2082 = vand.u32 2147483647, %v2072
    %vm2083 = vcmp.eq.f32.partialorder %v2082, 8.507059e+37
    %v2084 = vand.u32 %v2072, 2147483648
    %v2085 = vor.u32 1.1754944e-38, %v2084
    %v2086 = vsel %vm2083, %v2085, %v2081
    %v2087 = vmul.f32 %v2069, %v2086
    %2088 = vrot.lane.b32.xlu0 %v2035, 64
    %v2089 = vpop.permute.xlu0 %2088
    %v2092 = vsel %vm162, %v2087, 0
    %2094 = vmatpush.msra.mxu0 0.0
    %2095 = vmatpush.msra.mxu0 0.0
    %2096 = vmatpush.msra.mxu0 0.0
    %2097 = vmatpush.msra.mxu0 0.0
    %2098 = vmatpush.msra.mxu0 0.0
    %2099 = vmatpush.msra.mxu0 0.0
    %2100 = vmatpush.msra.mxu0 0.0
    %2101 = vmatpush.msra.mxu0 0.0
    %2102 = vmatpush.msra.mxu0 0.0
    %2103 = vmatpush.msra.mxu0 0.0
    %2104 = vmatpush.msra.mxu0 0.0
    %2105 = vmatpush.msra.mxu0 0.0
    %2106 = vmatpush.msra.mxu0 0.0
    %2107 = vmatpush.msra.mxu0 0.0
    %2108 = vmatpush.msra.mxu0 0.0
    %2109 = vmatpush.msra.mxu0 %v2089
    %2110 = vmatmul.f32.gmra.mxu0 %v2092
    %v2111 = vpop.f32.mrf.mxu0
    %v2112 = vadd.f32 0.0, %v2111
    %2113 = vdwg.mxu0
    %2114 = vrot.lane.b32.xlu0 %v2035, 120
    %v2115 = vpop.permute.xlu0 %2114
    %2116 = vrot.lane.b32.xlu0 %v2035, 88
    %v2117 = vpop.permute.xlu0 %2116
    %v2118 = vsel %vm162, %v2115, 0
    %v2120 = vsel %vm162, %v2117, 0
    %2122 = vmatpush.xpose.msra.mxu0 0.0
    %2123 = vmatpush.xpose.msra.mxu0 0.0
    %2124 = vmatpush.xpose.msra.mxu0 0.0
    %2125 = vmatpush.xpose.msra.mxu0 0.0
    %2126 = vmatpush.xpose.msra.mxu0 0.0
    %2127 = vmatpush.xpose.msra.mxu0 0.0
    %2128 = vmatpush.xpose.msra.mxu0 0.0
    %2129 = vmatpush.xpose.msra.mxu0 0.0
    %2130 = vmatpush.xpose.msra.mxu0 0.0
    %2131 = vmatpush.xpose.msra.mxu0 0.0
    %2132 = vmatpush.xpose.msra.mxu0 0.0
    %2133 = vmatpush.xpose.msra.mxu0 0.0
    %2134 = vmatpush.xpose.msra.mxu0 0.0
    %2135 = vmatpush.xpose.msra.mxu0 0.0
    %2136 = vmatpush.xpose.msra.mxu0 0.0
    %2137 = vmatpush.xpose.msra.mxu0 %v2120
    %2138 = vmatmul.f32.gmra.mxu0 %v2118
    %v2139 = vpop.f32.mrf.mxu0
    %v2140 = vadd.f32 0.0, %v2139
    %2141 = vdwg.mxu0
    %v2142 = vsel %vm162, %v2140, -inf
    %2143 = vmax.xlane.f32.xlu0 %v2142
    %v2144 = vpop.xlane.xlu0 %2143
    %v2145 = vsub.f32 %v2140, %v2144
    %v2146 = vmul.f32 %v2145, 1.442695
    %v2147 = vpow.pop %v2146
    %v2148 = vsel %vm162, %v2147, 0.0
    %2149 = vadd.xlane.f32.xlu0 %v2148
    %v2150 = vpop.xlane.xlu0 %2149
    %v2151 = vrcp.pop %v2150
    %v2152 = vmul.f32 %v2150, %v2151
    %v2153 = vsub.f32 1.0, %v2152
    %v2154 = vmul.f32 %v2151, %v2153
    %v2155 = vadd.f32 %v2151, %v2154
    %vm2156 = vweird.f32 %v2150
    %vm2157 = vweird.f32 %v2151
    %vm2158 = vmor %vm2156, %vm2157
    %v2159 = vsel %vm2158, %v2151, %v2155
    %v2160 = vand.u32 2147483647, %v2150
    %vm2161 = vcmp.eq.f32.partialorder %v2160, 8.507059e+37
    %v2162 = vand.u32 %v2150, 2147483648
    %v2163 = vor.u32 1.1754944e-38, %v2162
    %v2164 = vsel %vm2161, %v2163, %v2159
    %v2165 = vmul.f32 %v2147, %v2164
    %2166 = vrot.lane.b32.xlu0 %v2035, 56
    %v2167 = vpop.permute.xlu0 %2166
    %v2170 = vsel %vm162, %v2165, 0
    %2172 = vmatpush.msra.mxu0 0.0
    %2173 = vmatpush.msra.mxu0 0.0
    %2174 = vmatpush.msra.mxu0 0.0
    %2175 = vmatpush.msra.mxu0 0.0
    %2176 = vmatpush.msra.mxu0 0.0
    %2177 = vmatpush.msra.mxu0 0.0
    %2178 = vmatpush.msra.mxu0 0.0
    %2179 = vmatpush.msra.mxu0 0.0
    %2180 = vmatpush.msra.mxu0 0.0
    %2181 = vmatpush.msra.mxu0 0.0
    %2182 = vmatpush.msra.mxu0 0.0
    %2183 = vmatpush.msra.mxu0 0.0
    %2184 = vmatpush.msra.mxu0 0.0
    %2185 = vmatpush.msra.mxu0 0.0
    %2186 = vmatpush.msra.mxu0 0.0
    %2187 = vmatpush.msra.mxu0 %v2167
    %2188 = vmatmul.f32.gmra.mxu0 %v2170
    %v2189 = vpop.f32.mrf.mxu0
    %v2190 = vadd.f32 0.0, %v2189
    %2191 = vdwg.mxu0
    %v2193 = vsel %vm162, %v2190, 0
    %2195 = vmatpush.msra.mxu0 0.0
    %2196 = vmatpush.msra.mxu0 0.0
    %2197 = vmatpush.msra.mxu0 0.0
    %2198 = vmatpush.msra.mxu0 0.0
    %2199 = vmatpush.msra.mxu0 0.0
    %2200 = vmatpush.msra.mxu0 0.0
    %2201 = vmatpush.msra.mxu0 0.0
    %2202 = vmatpush.msra.mxu0 0.0
    %2203 = vmatpush.msra.mxu0 0.0
    %2204 = vmatpush.msra.mxu0 0.0
    %2205 = vmatpush.msra.mxu0 0.0
    %2206 = vmatpush.msra.mxu0 0.0
    %2207 = vmatpush.msra.mxu0 0.0
    %2208 = vmatpush.msra.mxu0 0.0
    %2209 = vmatpush.msra.mxu0 0.0
    %2210 = vmatpush.msra.mxu0 %v2012
    %2211 = vmatmul.f32.gmra.mxu0 %v2193
    %v2212 = vpop.f32.mrf.mxu0
    %v2213 = vadd.f32 0.0, %v2212
    %2214 = vdwg.mxu0
    %v2216 = vsel %vm162, %v2112, 0
    %2218 = vmatpush.msra.mxu0 0.0
    %2219 = vmatpush.msra.mxu0 0.0
    %2220 = vmatpush.msra.mxu0 0.0
    %2221 = vmatpush.msra.mxu0 0.0
    %2222 = vmatpush.msra.mxu0 0.0
    %2223 = vmatpush.msra.mxu0 0.0
    %2224 = vmatpush.msra.mxu0 0.0
    %2225 = vmatpush.msra.mxu0 0.0
    %2226 = vmatpush.msra.mxu0 0.0
    %2227 = vmatpush.msra.mxu0 0.0
    %2228 = vmatpush.msra.mxu0 0.0
    %2229 = vmatpush.msra.mxu0 0.0
    %2230 = vmatpush.msra.mxu0 0.0
    %2231 = vmatpush.msra.mxu0 0.0
    %2232 = vmatpush.msra.mxu0 0.0
    %2233 = vmatpush.msra.mxu0 %v2011
    %2234 = vmatmul.f32.gmra.mxu0 %v2216
    %v2235 = vpop.f32.mrf.mxu0
    %v2236 = vadd.f32 %v2213, %v2235
    %2237 = vdwg.mxu0
    %2238 = vrot.lane.b32.xlu0 %v2035, 112
    %v2239 = vpop.permute.xlu0 %2238
    %2240 = vrot.lane.b32.xlu0 %v2035, 80
    %v2241 = vpop.permute.xlu0 %2240
    %v2242 = vsel %vm162, %v2239, 0
    %v2244 = vsel %vm162, %v2241, 0
    %2246 = vmatpush.xpose.msra.mxu0 0.0
    %2247 = vmatpush.xpose.msra.mxu0 0.0
    %2248 = vmatpush.xpose.msra.mxu0 0.0
    %2249 = vmatpush.xpose.msra.mxu0 0.0
    %2250 = vmatpush.xpose.msra.mxu0 0.0
    %2251 = vmatpush.xpose.msra.mxu0 0.0
    %2252 = vmatpush.xpose.msra.mxu0 0.0
    %2253 = vmatpush.xpose.msra.mxu0 0.0
    %2254 = vmatpush.xpose.msra.mxu0 0.0
    %2255 = vmatpush.xpose.msra.mxu0 0.0
    %2256 = vmatpush.xpose.msra.mxu0 0.0
    %2257 = vmatpush.xpose.msra.mxu0 0.0
    %2258 = vmatpush.xpose.msra.mxu0 0.0
    %2259 = vmatpush.xpose.msra.mxu0 0.0
    %2260 = vmatpush.xpose.msra.mxu0 0.0
    %2261 = vmatpush.xpose.msra.mxu0 %v2244
    %2262 = vmatmul.f32.gmra.mxu0 %v2242
    %v2263 = vpop.f32.mrf.mxu0
    %v2264 = vadd.f32 0.0, %v2263
    %2265 = vdwg.mxu0
    %v2266 = vsel %vm162, %v2264, -inf
    %2267 = vmax.xlane.f32.xlu0 %v2266
    %v2268 = vpop.xlane.xlu0 %2267
    %v2269 = vsub.f32 %v2264, %v2268
    %v2270 = vmul.f32 %v2269, 1.442695
    %v2271 = vpow.pop %v2270
    %v2272 = vsel %vm162, %v2271, 0.0
    %2273 = vadd.xlane.f32.xlu0 %v2272
    %v2274 = vpop.xlane.xlu0 %2273
    %v2275 = vrcp.pop %v2274
    %v2276 = vmul.f32 %v2274, %v2275
    %v2277 = vsub.f32 1.0, %v2276
    %v2278 = vmul.f32 %v2275, %v2277
    %v2279 = vadd.f32 %v2275, %v2278
    %vm2280 = vweird.f32 %v2274
    %vm2281 = vweird.f32 %v2275
    %vm2282 = vmor %vm2280, %vm2281
    %v2283 = vsel %vm2282, %v2275, %v2279
    %v2284 = vand.u32 2147483647, %v2274
    %vm2285 = vcmp.eq.f32.partialorder %v2284, 8.507059e+37
    %v2286 = vand.u32 %v2274, 2147483648
    %v2287 = vor.u32 1.1754944e-38, %v2286
    %v2288 = vsel %vm2285, %v2287, %v2283
    %v2289 = vmul.f32 %v2271, %v2288
    %2290 = vrot.lane.b32.xlu0 %v2035, 48
    %v2291 = vpop.permute.xlu0 %2290
    %v2294 = vsel %vm162, %v2289, 0
    %2296 = vmatpush.msra.mxu0 0.0
    %2297 = vmatpush.msra.mxu0 0.0
    %2298 = vmatpush.msra.mxu0 0.0
    %2299 = vmatpush.msra.mxu0 0.0
    %2300 = vmatpush.msra.mxu0 0.0
    %2301 = vmatpush.msra.mxu0 0.0
    %2302 = vmatpush.msra.mxu0 0.0
    %2303 = vmatpush.msra.mxu0 0.0
    %2304 = vmatpush.msra.mxu0 0.0
    %2305 = vmatpush.msra.mxu0 0.0
    %2306 = vmatpush.msra.mxu0 0.0
    %2307 = vmatpush.msra.mxu0 0.0
    %2308 = vmatpush.msra.mxu0 0.0
    %2309 = vmatpush.msra.mxu0 0.0
    %2310 = vmatpush.msra.mxu0 0.0
    %2311 = vmatpush.msra.mxu0 %v2291
    %2312 = vmatmul.f32.gmra.mxu0 %v2294
    %v2313 = vpop.f32.mrf.mxu0
    %v2314 = vadd.f32 0.0, %v2313
    %2315 = vdwg.mxu0
    %v2317 = vsel %vm162, %v2314, 0
    %2319 = vmatpush.msra.mxu0 0.0
    %2320 = vmatpush.msra.mxu0 0.0
    %2321 = vmatpush.msra.mxu0 0.0
    %2322 = vmatpush.msra.mxu0 0.0
    %2323 = vmatpush.msra.mxu0 0.0
    %2324 = vmatpush.msra.mxu0 0.0
    %2325 = vmatpush.msra.mxu0 0.0
    %2326 = vmatpush.msra.mxu0 0.0
    %2327 = vmatpush.msra.mxu0 0.0
    %2328 = vmatpush.msra.mxu0 0.0
    %2329 = vmatpush.msra.mxu0 0.0
    %2330 = vmatpush.msra.mxu0 0.0
    %2331 = vmatpush.msra.mxu0 0.0
    %2332 = vmatpush.msra.mxu0 0.0
    %2333 = vmatpush.msra.mxu0 0.0
    %2334 = vmatpush.msra.mxu0 %v2013
    %2335 = vmatmul.f32.gmra.mxu0 %v2317
    %v2336 = vpop.f32.mrf.mxu0
    %v2337 = vadd.f32 0.0, %v2336
    %2338 = vdwg.mxu0
    %v2339 = vadd.f32 %v2236, %v2337
    %2340 = vrot.lane.b32.xlu0 %v2035, 104
    %v2341 = vpop.permute.xlu0 %2340
    %2342 = vrot.lane.b32.xlu0 %v2035, 72
    %v2343 = vpop.permute.xlu0 %2342
    %v2344 = vsel %vm162, %v2341, 0
    %v2346 = vsel %vm162, %v2343, 0
    %2348 = vmatpush.xpose.msra.mxu0 0.0
    %2349 = vmatpush.xpose.msra.mxu0 0.0
    %2350 = vmatpush.xpose.msra.mxu0 0.0
    %2351 = vmatpush.xpose.msra.mxu0 0.0
    %2352 = vmatpush.xpose.msra.mxu0 0.0
    %2353 = vmatpush.xpose.msra.mxu0 0.0
    %2354 = vmatpush.xpose.msra.mxu0 0.0
    %2355 = vmatpush.xpose.msra.mxu0 0.0
    %2356 = vmatpush.xpose.msra.mxu0 0.0
    %2357 = vmatpush.xpose.msra.mxu0 0.0
    %2358 = vmatpush.xpose.msra.mxu0 0.0
    %2359 = vmatpush.xpose.msra.mxu0 0.0
    %2360 = vmatpush.xpose.msra.mxu0 0.0
    %2361 = vmatpush.xpose.msra.mxu0 0.0
    %2362 = vmatpush.xpose.msra.mxu0 0.0
    %2363 = vmatpush.xpose.msra.mxu0 %v2346
    %2364 = vmatmul.f32.gmra.mxu0 %v2344
    %v2365 = vpop.f32.mrf.mxu0
    %v2366 = vadd.f32 0.0, %v2365
    %2367 = vdwg.mxu0
    %v2368 = vsel %vm162, %v2366, -inf
    %2369 = vmax.xlane.f32.xlu0 %v2368
    %v2370 = vpop.xlane.xlu0 %2369
    %v2371 = vsub.f32 %v2366, %v2370
    %v2372 = vmul.f32 %v2371, 1.442695
    %v2373 = vpow.pop %v2372
    %v2374 = vsel %vm162, %v2373, 0.0
    %2375 = vadd.xlane.f32.xlu0 %v2374
    %v2376 = vpop.xlane.xlu0 %2375
    %v2377 = vrcp.pop %v2376
    %v2378 = vmul.f32 %v2376, %v2377
    %v2379 = vsub.f32 1.0, %v2378
    %v2380 = vmul.f32 %v2377, %v2379
    %v2381 = vadd.f32 %v2377, %v2380
    %vm2382 = vweird.f32 %v2376
    %vm2383 = vweird.f32 %v2377
    %vm2384 = vmor %vm2382, %vm2383
    %v2385 = vsel %vm2384, %v2377, %v2381
    %v2386 = vand.u32 2147483647, %v2376
    %vm2387 = vcmp.eq.f32.partialorder %v2386, 8.507059e+37
    %v2388 = vand.u32 %v2376, 2147483648
    %v2389 = vor.u32 1.1754944e-38, %v2388
    %v2390 = vsel %vm2387, %v2389, %v2385
    %v2391 = vmul.f32 %v2373, %v2390
    %2392 = vrot.lane.b32.xlu0 %v2035, 40
    %v2393 = vpop.permute.xlu0 %2392
    %v2396 = vsel %vm162, %v2391, 0
    %2398 = vmatpush.msra.mxu0 0.0
    %2399 = vmatpush.msra.mxu0 0.0
    %2400 = vmatpush.msra.mxu0 0.0
    %2401 = vmatpush.msra.mxu0 0.0
    %2402 = vmatpush.msra.mxu0 0.0
    %2403 = vmatpush.msra.mxu0 0.0
    %2404 = vmatpush.msra.mxu0 0.0
    %2405 = vmatpush.msra.mxu0 0.0
    %2406 = vmatpush.msra.mxu0 0.0
    %2407 = vmatpush.msra.mxu0 0.0
    %2408 = vmatpush.msra.mxu0 0.0
    %2409 = vmatpush.msra.mxu0 0.0
    %2410 = vmatpush.msra.mxu0 0.0
    %2411 = vmatpush.msra.mxu0 0.0
    %2412 = vmatpush.msra.mxu0 0.0
    %2413 = vmatpush.msra.mxu0 %v2393
    %2414 = vmatmul.f32.gmra.mxu0 %v2396
    %v2415 = vpop.f32.mrf.mxu0
    %v2416 = vadd.f32 0.0, %v2415
    %2417 = vdwg.mxu0
    %v2419 = vsel %vm162, %v2416, 0
    %2421 = vmatpush.msra.mxu0 0.0
    %2422 = vmatpush.msra.mxu0 0.0
    %2423 = vmatpush.msra.mxu0 0.0
    %2424 = vmatpush.msra.mxu0 0.0
    %2425 = vmatpush.msra.mxu0 0.0
    %2426 = vmatpush.msra.mxu0 0.0
    %2427 = vmatpush.msra.mxu0 0.0
    %2428 = vmatpush.msra.mxu0 0.0
    %2429 = vmatpush.msra.mxu0 0.0
    %2430 = vmatpush.msra.mxu0 0.0
    %2431 = vmatpush.msra.mxu0 0.0
    %2432 = vmatpush.msra.mxu0 0.0
    %2433 = vmatpush.msra.mxu0 0.0
    %2434 = vmatpush.msra.mxu0 0.0
    %2435 = vmatpush.msra.mxu0 0.0
    %2436 = vmatpush.msra.mxu0 %v2014
    %2437 = vmatmul.f32.gmra.mxu0 %v2419
    %v2438 = vpop.f32.mrf.mxu0
    %v2439 = vadd.f32 0.0, %v2438
    %2440 = vdwg.mxu0
    %v2441 = vadd.f32 %v2339, %v2439
    %v2442 = vperm.slane %v2015, 0
    %v2443 = vadd.f32 %v2441, %v2442
    %v2445 = vrot.slane %v2443, 1
    %v2446 = vrot.slane %v2443, 2
    %v2447 = vrot.slane %v2443, 3
    %v2448 = vrot.slane %v2443, 4
    %v2449 = vrot.slane %v2443, 5
    %v2450 = vrot.slane %v2443, 6
    %v2451 = vrot.slane %v2443, 7
    %v2460 = vadd.f32 %v87, %v2443
    %v2461 = vadd.f32 %v88, %v2445
    %v2462 = vadd.f32 %v89, %v2446
    %v2463 = vadd.f32 %v90, %v2447
    %v2464 = vadd.f32 %v91, %v2448
    %v2465 = vadd.f32 %v92, %v2449
    %v2466 = vadd.f32 %v93, %v2450
    %v2467 = vadd.f32 %v94, %v2451
    %v2468 = vld [vmem:[#allocation7 + $0x24] sm:$0x1]
    %v2469 = vld [vmem:[#allocation7 + $0x25] sm:$0x1]
    %v2478 = vrot.slane %v2461, 7
    %v2479 = vsel %vm116, %v2478, %v2460
    %v2480 = vrot.slane %v2462, 6
    %v2481 = vsel %vm119, %v2480, %v2479
    %v2482 = vrot.slane %v2463, 5
    %v2483 = vsel %vm122, %v2482, %v2481
    %v2484 = vrot.slane %v2464, 4
    %v2485 = vsel %vm125, %v2484, %v2483
    %v2486 = vrot.slane %v2465, 3
    %v2487 = vsel %vm128, %v2486, %v2485
    %v2488 = vrot.slane %v2466, 2
    %v2489 = vsel %vm131, %v2488, %v2487
    %v2490 = vrot.slane %v2467, 1
    %v2491 = vsel %vm134, %v2490, %v2489
    %v2493 = vsel %vm136, %v2491, 0.0
    %2494 = vadd.xlane.f32.xlu0 %v2493
    %v2495 = vpop.xlane.xlu0 %2494
    %v2496 = vmul.f32 %v2495, %v625
    %v2498 = vrot.slane %v2496, 1
    %v2499 = vrot.slane %v2496, 2
    %v2500 = vrot.slane %v2496, 3
    %v2501 = vrot.slane %v2496, 4
    %v2502 = vrot.slane %v2496, 5
    %v2503 = vrot.slane %v2496, 6
    %v2504 = vrot.slane %v2496, 7
    %v2513 = vsub.f32 %v2460, %v2496
    %v2514 = vsub.f32 %v2461, %v2498
    %v2515 = vsub.f32 %v2462, %v2499
    %v2516 = vsub.f32 %v2463, %v2500
    %v2517 = vsub.f32 %v2464, %v2501
    %v2518 = vsub.f32 %v2465, %v2502
    %v2519 = vsub.f32 %v2466, %v2503
    %v2520 = vsub.f32 %v2467, %v2504
    %v2521 = vmul.f32 %v2513, %v2513
    %v2522 = vmul.f32 %v2514, %v2514
    %v2523 = vmul.f32 %v2515, %v2515
    %v2524 = vmul.f32 %v2516, %v2516
    %v2525 = vmul.f32 %v2517, %v2517
    %v2526 = vmul.f32 %v2518, %v2518
    %v2527 = vmul.f32 %v2519, %v2519
    %v2528 = vmul.f32 %v2520, %v2520
    %v2537 = vrot.slane %v2522, 7
    %v2538 = vsel %vm116, %v2537, %v2521
    %v2539 = vrot.slane %v2523, 6
    %v2540 = vsel %vm119, %v2539, %v2538
    %v2541 = vrot.slane %v2524, 5
    %v2542 = vsel %vm122, %v2541, %v2540
    %v2543 = vrot.slane %v2525, 4
    %v2544 = vsel %vm125, %v2543, %v2542
    %v2545 = vrot.slane %v2526, 3
    %v2546 = vsel %vm128, %v2545, %v2544
    %v2547 = vrot.slane %v2527, 2
    %v2548 = vsel %vm131, %v2547, %v2546
    %v2549 = vrot.slane %v2528, 1
    %v2550 = vsel %vm134, %v2549, %v2548
    %v2552 = vsel %vm136, %v2550, 0.0
    %2553 = vadd.xlane.f32.xlu0 %v2552
    %v2554 = vpop.xlane.xlu0 %2553
    %v2555 = vmul.f32 %v2554, %v625
    %v2556 = vadd.f32 %v2555, 1e-05
    %v2557 = vrsqrt.pop %v2556
    %v2558 = vmul.f32 %v2557, %v2556
    %v2559 = vmul.f32 %v2558, %v2557
    %v2560 = vmul.f32 0.5, %v2559
    %v2561 = vsub.f32 1.5, %v2560
    %v2562 = vmul.f32 %v2557, %v2561
    %vm2563 = vweird.f32 %v2556
    %vm2564 = vweird.f32 %v2557
    %vm2565 = vmor %vm2563, %vm2564
    %v2566 = vsel %vm2565, %v2557, %v2562
    %v2568 = vrot.slane %v2566, 1
    %v2569 = vrot.slane %v2566, 2
    %v2570 = vrot.slane %v2566, 3
    %v2571 = vrot.slane %v2566, 4
    %v2572 = vrot.slane %v2566, 5
    %v2573 = vrot.slane %v2566, 6
    %v2574 = vrot.slane %v2566, 7
    %v2583 = vmul.f32 %v2513, %v2566
    %v2584 = vmul.f32 %v2514, %v2568
    %v2585 = vmul.f32 %v2515, %v2569
    %v2586 = vmul.f32 %v2516, %v2570
    %v2587 = vmul.f32 %v2517, %v2571
    %v2588 = vmul.f32 %v2518, %v2572
    %v2589 = vmul.f32 %v2519, %v2573
    %v2590 = vmul.f32 %v2520, %v2574
    %v2591 = vperm.slane %v2468, 0
    %v2592 = vmul.f32 %v2583, %v2591
    %v2593 = vmul.f32 %v2584, %v2591
    %v2594 = vmul.f32 %v2585, %v2591
    %v2595 = vmul.f32 %v2586, %v2591
    %v2596 = vmul.f32 %v2587, %v2591
    %v2597 = vmul.f32 %v2588, %v2591
    %v2598 = vmul.f32 %v2589, %v2591
    %v2599 = vmul.f32 %v2590, %v2591
    %v2600 = vperm.slane %v2469, 0
    %v2601 = vadd.f32 %v2592, %v2600
    %v2602 = vadd.f32 %v2593, %v2600
    %v2603 = vadd.f32 %v2594, %v2600
    %v2604 = vadd.f32 %v2595, %v2600
    %v2605 = vadd.f32 %v2596, %v2600
    %v2606 = vadd.f32 %v2597, %v2600
    %v2607 = vadd.f32 %v2598, %v2600
    %v2608 = vadd.f32 %v2599, %v2600
    %v2609 = vld [vmem:[#allocation5 + $0x180] sm:$0xff]
    %v2610 = vld [vmem:[#allocation5 + $0x188] sm:$0xff]
    %v2611 = vld [vmem:[#allocation5 + $0x190] sm:$0xff]
    %v2612 = vld [vmem:[#allocation5 + $0x198] sm:$0xff]
    %v2613 = vld [vmem:[#allocation7 + $0x26] sm:$0x1]
    %v2614 = vld [vmem:[#allocation5 + $0x1a0] sm:$0xff]
    %v2615 = vld [vmem:[#allocation5 + $0x1a8] sm:$0xff]
    %v2616 = vld [vmem:[#allocation5 + $0x1b0] sm:$0xff]
    %v2617 = vld [vmem:[#allocation5 + $0x1b8] sm:$0xff]
    %v2618 = vld [vmem:[#allocation7 + $0x27] sm:$0x1]
    %v2619 = vperm.slane %v2613, 0
    %v2628 = vrot.slane %v2602, 7
    %v2629 = vsel %vm116, %v2628, %v2601
    %v2630 = vrot.slane %v2603, 6
    %v2631 = vsel %vm119, %v2630, %v2629
    %v2632 = vrot.slane %v2604, 5
    %v2633 = vsel %vm122, %v2632, %v2631
    %v2634 = vrot.slane %v2605, 4
    %v2635 = vsel %vm125, %v2634, %v2633
    %v2636 = vrot.slane %v2606, 3
    %v2637 = vsel %vm128, %v2636, %v2635
    %v2638 = vrot.slane %v2607, 2
    %v2639 = vsel %vm131, %v2638, %v2637
    %v2640 = vrot.slane %v2608, 1
    %v2641 = vsel %vm134, %v2640, %v2639
    %v2642 = vsel %vm136, %v2641, 0
    %2644 = vmatpush.msra.mxu0 0.0
    %2645 = vmatpush.msra.mxu0 0.0
    %2646 = vmatpush.msra.mxu0 0.0
    %2647 = vmatpush.msra.mxu0 0.0
    %2648 = vmatpush.msra.mxu0 0.0
    %2649 = vmatpush.msra.mxu0 0.0
    %2650 = vmatpush.msra.mxu0 0.0
    %2651 = vmatpush.msra.mxu0 0.0
    %2652 = vmatpush.msra.mxu0 0.0
    %2653 = vmatpush.msra.mxu0 0.0
    %2654 = vmatpush.msra.mxu0 0.0
    %2655 = vmatpush.msra.mxu0 0.0
    %2656 = vmatpush.msra.mxu0 %v2612
    %2657 = vmatpush.msra.mxu0 %v2611
    %2658 = vmatpush.msra.mxu0 %v2610
    %2659 = vmatpush.msra.mxu0 %v2609
    %2660 = vmatmul.f32.gmra.mxu0 %v2642
    %v2661 = vpop.f32.mrf.mxu0
    %v2662 = vadd.f32 %v2619, %v2661
    %2663 = vdwg.mxu0
    %v2672 = vrot.slane %v1999, 7
    %v2673 = vsel %vm116, %v2672, %v1998
    %v2674 = vrot.slane %v2000, 6
    %v2675 = vsel %vm119, %v2674, %v2673
    %v2676 = vrot.slane %v2001, 5
    %v2677 = vsel %vm122, %v2676, %v2675
    %v2678 = vrot.slane %v2002, 4
    %v2679 = vsel %vm125, %v2678, %v2677
    %v2680 = vrot.slane %v2003, 3
    %v2681 = vsel %vm128, %v2680, %v2679
    %v2682 = vrot.slane %v2004, 2
    %v2683 = vsel %vm131, %v2682, %v2681
    %v2684 = vrot.slane %v2005, 1
    %v2685 = vsel %vm134, %v2684, %v2683
    %2690 = vrot.lane.b32.xlu0 %v2609, 96
    %v2691 = vpop.permute.xlu0 %2690
    %2692 = vrot.lane.b32.xlu0 %v2610, 96
    %v2693 = vpop.permute.xlu0 %2692
    %2694 = vrot.lane.b32.xlu0 %v2611, 96
    %v2695 = vpop.permute.xlu0 %2694
    %2696 = vrot.lane.b32.xlu0 %v2612, 96
    %v2697 = vpop.permute.xlu0 %2696
    %2703 = vrot.lane.b32.xlu0 %v2619, 96
    %v2704 = vpop.permute.xlu0 %2703
    %v2706 = vsel %vm136, %v2685, 0
    %2708 = vmatpush.msra.mxu0 0.0
    %2709 = vmatpush.msra.mxu0 0.0
    %2710 = vmatpush.msra.mxu0 0.0
    %2711 = vmatpush.msra.mxu0 0.0
    %2712 = vmatpush.msra.mxu0 0.0
    %2713 = vmatpush.msra.mxu0 0.0
    %2714 = vmatpush.msra.mxu0 0.0
    %2715 = vmatpush.msra.mxu0 0.0
    %2716 = vmatpush.msra.mxu0 0.0
    %2717 = vmatpush.msra.mxu0 0.0
    %2718 = vmatpush.msra.mxu0 0.0
    %2719 = vmatpush.msra.mxu0 0.0
    %2720 = vmatpush.msra.mxu0 %v2697
    %2721 = vmatpush.msra.mxu0 %v2695
    %2722 = vmatpush.msra.mxu0 %v2693
    %2723 = vmatpush.msra.mxu0 %v2691
    %2724 = vmatmul.f32.gmra.mxu0 %v2706
    %v2725 = vpop.f32.mrf.mxu0
    %v2726 = vadd.f32 %v2704, %v2725
    %2727 = vdwg.mxu0
    %v2729 = vsel %vm162, %v2662, 0
    %v2732 = vsel %vm162, %v2726, 0
    %2734 = vmatpush.xpose.msra.mxu0 0.0
    %2735 = vmatpush.xpose.msra.mxu0 0.0
    %2736 = vmatpush.xpose.msra.mxu0 0.0
    %2737 = vmatpush.xpose.msra.mxu0 0.0
    %2738 = vmatpush.xpose.msra.mxu0 0.0
    %2739 = vmatpush.xpose.msra.mxu0 0.0
    %2740 = vmatpush.xpose.msra.mxu0 0.0
    %2741 = vmatpush.xpose.msra.mxu0 0.0
    %2742 = vmatpush.xpose.msra.mxu0 0.0
    %2743 = vmatpush.xpose.msra.mxu0 0.0
    %2744 = vmatpush.xpose.msra.mxu0 0.0
    %2745 = vmatpush.xpose.msra.mxu0 0.0
    %2746 = vmatpush.xpose.msra.mxu0 0.0
    %2747 = vmatpush.xpose.msra.mxu0 0.0
    %2748 = vmatpush.xpose.msra.mxu0 0.0
    %2749 = vmatpush.xpose.msra.mxu0 %v2732
    %2750 = vmatmul.f32.gmra.mxu0 %v2729
    %v2751 = vpop.f32.mrf.mxu0
    %v2752 = vadd.f32 0.0, %v2751
    %2753 = vdwg.mxu0
    %v2754 = vsel %vm162, %v2752, -inf
    %2755 = vmax.xlane.f32.xlu0 %v2754
    %v2756 = vpop.xlane.xlu0 %2755
    %v2757 = vsub.f32 %v2752, %v2756
    %v2758 = vmul.f32 %v2757, 1.442695
    %v2759 = vpow.pop %v2758
    %v2760 = vsel %vm162, %v2759, 0.0
    %2761 = vadd.xlane.f32.xlu0 %v2760
    %v2762 = vpop.xlane.xlu0 %2761
    %v2763 = vrcp.pop %v2762
    %v2764 = vmul.f32 %v2762, %v2763
    %v2765 = vsub.f32 1.0, %v2764
    %v2766 = vmul.f32 %v2763, %v2765
    %v2767 = vadd.f32 %v2763, %v2766
    %vm2768 = vweird.f32 %v2762
    %vm2769 = vweird.f32 %v2763
    %vm2770 = vmor %vm2768, %vm2769
    %v2771 = vsel %vm2770, %v2763, %v2767
    %v2772 = vand.u32 2147483647, %v2762
    %vm2773 = vcmp.eq.f32.partialorder %v2772, 8.507059e+37
    %v2774 = vand.u32 %v2762, 2147483648
    %v2775 = vor.u32 1.1754944e-38, %v2774
    %v2776 = vsel %vm2773, %v2775, %v2771
    %v2777 = vmul.f32 %v2759, %v2776
    %2778 = vrot.lane.b32.xlu0 %v2726, 96
    %v2779 = vpop.permute.xlu0 %2778
    %v2782 = vsel %vm162, %v2777, 0
    %2784 = vmatpush.msra.mxu0 0.0
    %2785 = vmatpush.msra.mxu0 0.0
    %2786 = vmatpush.msra.mxu0 0.0
    %2787 = vmatpush.msra.mxu0 0.0
    %2788 = vmatpush.msra.mxu0 0.0
    %2789 = vmatpush.msra.mxu0 0.0
    %2790 = vmatpush.msra.mxu0 0.0
    %2791 = vmatpush.msra.mxu0 0.0
    %2792 = vmatpush.msra.mxu0 0.0
    %2793 = vmatpush.msra.mxu0 0.0
    %2794 = vmatpush.msra.mxu0 0.0
    %2795 = vmatpush.msra.mxu0 0.0
    %2796 = vmatpush.msra.mxu0 0.0
    %2797 = vmatpush.msra.mxu0 0.0
    %2798 = vmatpush.msra.mxu0 0.0
    %2799 = vmatpush.msra.mxu0 %v2779
    %2800 = vmatmul.f32.gmra.mxu0 %v2782
    %v2801 = vpop.f32.mrf.mxu0
    %v2802 = vadd.f32 0.0, %v2801
    %2803 = vdwg.mxu0
    %2804 = vrot.lane.b32.xlu0 %v2662, 120
    %v2805 = vpop.permute.xlu0 %2804
    %2806 = vrot.lane.b32.xlu0 %v2726, 120
    %v2807 = vpop.permute.xlu0 %2806
    %v2808 = vsel %vm162, %v2805, 0
    %v2810 = vsel %vm162, %v2807, 0
    %2812 = vmatpush.xpose.msra.mxu0 0.0
    %2813 = vmatpush.xpose.msra.mxu0 0.0
    %2814 = vmatpush.xpose.msra.mxu0 0.0
    %2815 = vmatpush.xpose.msra.mxu0 0.0
    %2816 = vmatpush.xpose.msra.mxu0 0.0
    %2817 = vmatpush.xpose.msra.mxu0 0.0
    %2818 = vmatpush.xpose.msra.mxu0 0.0
    %2819 = vmatpush.xpose.msra.mxu0 0.0
    %2820 = vmatpush.xpose.msra.mxu0 0.0
    %2821 = vmatpush.xpose.msra.mxu0 0.0
    %2822 = vmatpush.xpose.msra.mxu0 0.0
    %2823 = vmatpush.xpose.msra.mxu0 0.0
    %2824 = vmatpush.xpose.msra.mxu0 0.0
    %2825 = vmatpush.xpose.msra.mxu0 0.0
    %2826 = vmatpush.xpose.msra.mxu0 0.0
    %2827 = vmatpush.xpose.msra.mxu0 %v2810
    %2828 = vmatmul.f32.gmra.mxu0 %v2808
    %v2829 = vpop.f32.mrf.mxu0
    %v2830 = vadd.f32 0.0, %v2829
    %2831 = vdwg.mxu0
    %v2832 = vsel %vm162, %v2830, -inf
    %2833 = vmax.xlane.f32.xlu0 %v2832
    %v2834 = vpop.xlane.xlu0 %2833
    %v2835 = vsub.f32 %v2830, %v2834
    %v2836 = vmul.f32 %v2835, 1.442695
    %v2837 = vpow.pop %v2836
    %v2838 = vsel %vm162, %v2837, 0.0
    %2839 = vadd.xlane.f32.xlu0 %v2838
    %v2840 = vpop.xlane.xlu0 %2839
    %v2841 = vrcp.pop %v2840
    %v2842 = vmul.f32 %v2840, %v2841
    %v2843 = vsub.f32 1.0, %v2842
    %v2844 = vmul.f32 %v2841, %v2843
    %v2845 = vadd.f32 %v2841, %v2844
    %vm2846 = vweird.f32 %v2840
    %vm2847 = vweird.f32 %v2841
    %vm2848 = vmor %vm2846, %vm2847
    %v2849 = vsel %vm2848, %v2841, %v2845
    %v2850 = vand.u32 2147483647, %v2840
    %vm2851 = vcmp.eq.f32.partialorder %v2850, 8.507059e+37
    %v2852 = vand.u32 %v2840, 2147483648
    %v2853 = vor.u32 1.1754944e-38, %v2852
    %v2854 = vsel %vm2851, %v2853, %v2849
    %v2855 = vmul.f32 %v2837, %v2854
    %2856 = vrot.lane.b32.xlu0 %v2726, 88
    %v2857 = vpop.permute.xlu0 %2856
    %v2860 = vsel %vm162, %v2855, 0
    %2862 = vmatpush.msra.mxu0 0.0
    %2863 = vmatpush.msra.mxu0 0.0
    %2864 = vmatpush.msra.mxu0 0.0
    %2865 = vmatpush.msra.mxu0 0.0
    %2866 = vmatpush.msra.mxu0 0.0
    %2867 = vmatpush.msra.mxu0 0.0
    %2868 = vmatpush.msra.mxu0 0.0
    %2869 = vmatpush.msra.mxu0 0.0
    %2870 = vmatpush.msra.mxu0 0.0
    %2871 = vmatpush.msra.mxu0 0.0
    %2872 = vmatpush.msra.mxu0 0.0
    %2873 = vmatpush.msra.mxu0 0.0
    %2874 = vmatpush.msra.mxu0 0.0
    %2875 = vmatpush.msra.mxu0 0.0
    %2876 = vmatpush.msra.mxu0 0.0
    %2877 = vmatpush.msra.mxu0 %v2857
    %2878 = vmatmul.f32.gmra.mxu0 %v2860
    %v2879 = vpop.f32.mrf.mxu0
    %v2880 = vadd.f32 0.0, %v2879
    %2881 = vdwg.mxu0
    %v2883 = vsel %vm162, %v2880, 0
    %2885 = vmatpush.msra.mxu0 0.0
    %2886 = vmatpush.msra.mxu0 0.0
    %2887 = vmatpush.msra.mxu0 0.0
    %2888 = vmatpush.msra.mxu0 0.0
    %2889 = vmatpush.msra.mxu0 0.0
    %2890 = vmatpush.msra.mxu0 0.0
    %2891 = vmatpush.msra.mxu0 0.0
    %2892 = vmatpush.msra.mxu0 0.0
    %2893 = vmatpush.msra.mxu0 0.0
    %2894 = vmatpush.msra.mxu0 0.0
    %2895 = vmatpush.msra.mxu0 0.0
    %2896 = vmatpush.msra.mxu0 0.0
    %2897 = vmatpush.msra.mxu0 0.0
    %2898 = vmatpush.msra.mxu0 0.0
    %2899 = vmatpush.msra.mxu0 0.0
    %2900 = vmatpush.msra.mxu0 %v2615
    %2901 = vmatmul.f32.gmra.mxu0 %v2883
    %v2902 = vpop.f32.mrf.mxu0
    %v2903 = vadd.f32 0.0, %v2902
    %2904 = vdwg.mxu0
    %v2906 = vsel %vm162, %v2802, 0
    %2908 = vmatpush.msra.mxu0 0.0
    %2909 = vmatpush.msra.mxu0 0.0
    %2910 = vmatpush.msra.mxu0 0.0
    %2911 = vmatpush.msra.mxu0 0.0
    %2912 = vmatpush.msra.mxu0 0.0
    %2913 = vmatpush.msra.mxu0 0.0
    %2914 = vmatpush.msra.mxu0 0.0
    %2915 = vmatpush.msra.mxu0 0.0
    %2916 = vmatpush.msra.mxu0 0.0
    %2917 = vmatpush.msra.mxu0 0.0
    %2918 = vmatpush.msra.mxu0 0.0
    %2919 = vmatpush.msra.mxu0 0.0
    %2920 = vmatpush.msra.mxu0 0.0
    %2921 = vmatpush.msra.mxu0 0.0
    %2922 = vmatpush.msra.mxu0 0.0
    %2923 = vmatpush.msra.mxu0 %v2614
    %2924 = vmatmul.f32.gmra.mxu0 %v2906
    %v2925 = vpop.f32.mrf.mxu0
    %v2926 = vadd.f32 %v2903, %v2925
    %2927 = vdwg.mxu0
    %2928 = vrot.lane.b32.xlu0 %v2662, 112
    %v2929 = vpop.permute.xlu0 %2928
    %2930 = vrot.lane.b32.xlu0 %v2726, 112
    %v2931 = vpop.permute.xlu0 %2930
    %v2932 = vsel %vm162, %v2929, 0
    %v2934 = vsel %vm162, %v2931, 0
    %2936 = vmatpush.xpose.msra.mxu0 0.0
    %2937 = vmatpush.xpose.msra.mxu0 0.0
    %2938 = vmatpush.xpose.msra.mxu0 0.0
    %2939 = vmatpush.xpose.msra.mxu0 0.0
    %2940 = vmatpush.xpose.msra.mxu0 0.0
    %2941 = vmatpush.xpose.msra.mxu0 0.0
    %2942 = vmatpush.xpose.msra.mxu0 0.0
    %2943 = vmatpush.xpose.msra.mxu0 0.0
    %2944 = vmatpush.xpose.msra.mxu0 0.0
    %2945 = vmatpush.xpose.msra.mxu0 0.0
    %2946 = vmatpush.xpose.msra.mxu0 0.0
    %2947 = vmatpush.xpose.msra.mxu0 0.0
    %2948 = vmatpush.xpose.msra.mxu0 0.0
    %2949 = vmatpush.xpose.msra.mxu0 0.0
    %2950 = vmatpush.xpose.msra.mxu0 0.0
    %2951 = vmatpush.xpose.msra.mxu0 %v2934
    %2952 = vmatmul.f32.gmra.mxu0 %v2932
    %v2953 = vpop.f32.mrf.mxu0
    %v2954 = vadd.f32 0.0, %v2953
    %2955 = vdwg.mxu0
    %v2956 = vsel %vm162, %v2954, -inf
    %2957 = vmax.xlane.f32.xlu0 %v2956
    %v2958 = vpop.xlane.xlu0 %2957
    %v2959 = vsub.f32 %v2954, %v2958
    %v2960 = vmul.f32 %v2959, 1.442695
    %v2961 = vpow.pop %v2960
    %v2962 = vsel %vm162, %v2961, 0.0
    %2963 = vadd.xlane.f32.xlu0 %v2962
    %v2964 = vpop.xlane.xlu0 %2963
    %v2965 = vrcp.pop %v2964
    %v2966 = vmul.f32 %v2964, %v2965
    %v2967 = vsub.f32 1.0, %v2966
    %v2968 = vmul.f32 %v2965, %v2967
    %v2969 = vadd.f32 %v2965, %v2968
    %vm2970 = vweird.f32 %v2964
    %vm2971 = vweird.f32 %v2965
    %vm2972 = vmor %vm2970, %vm2971
    %v2973 = vsel %vm2972, %v2965, %v2969
    %v2974 = vand.u32 2147483647, %v2964
    %vm2975 = vcmp.eq.f32.partialorder %v2974, 8.507059e+37
    %v2976 = vand.u32 %v2964, 2147483648
    %v2977 = vor.u32 1.1754944e-38, %v2976
    %v2978 = vsel %vm2975, %v2977, %v2973
    %v2979 = vmul.f32 %v2961, %v2978
    %2980 = vrot.lane.b32.xlu0 %v2726, 80
    %v2981 = vpop.permute.xlu0 %2980
    %v2984 = vsel %vm162, %v2979, 0
    %2986 = vmatpush.msra.mxu0 0.0
    %2987 = vmatpush.msra.mxu0 0.0
    %2988 = vmatpush.msra.mxu0 0.0
    %2989 = vmatpush.msra.mxu0 0.0
    %2990 = vmatpush.msra.mxu0 0.0
    %2991 = vmatpush.msra.mxu0 0.0
    %2992 = vmatpush.msra.mxu0 0.0
    %2993 = vmatpush.msra.mxu0 0.0
    %2994 = vmatpush.msra.mxu0 0.0
    %2995 = vmatpush.msra.mxu0 0.0
    %2996 = vmatpush.msra.mxu0 0.0
    %2997 = vmatpush.msra.mxu0 0.0
    %2998 = vmatpush.msra.mxu0 0.0
    %2999 = vmatpush.msra.mxu0 0.0
    %3000 = vmatpush.msra.mxu0 0.0
    %3001 = vmatpush.msra.mxu0 %v2981
    %3002 = vmatmul.f32.gmra.mxu0 %v2984
    %v3003 = vpop.f32.mrf.mxu0
    %v3004 = vadd.f32 0.0, %v3003
    %3005 = vdwg.mxu0
    %v3007 = vsel %vm162, %v3004, 0
    %3009 = vmatpush.msra.mxu0 0.0
    %3010 = vmatpush.msra.mxu0 0.0
    %3011 = vmatpush.msra.mxu0 0.0
    %3012 = vmatpush.msra.mxu0 0.0
    %3013 = vmatpush.msra.mxu0 0.0
    %3014 = vmatpush.msra.mxu0 0.0
    %3015 = vmatpush.msra.mxu0 0.0
    %3016 = vmatpush.msra.mxu0 0.0
    %3017 = vmatpush.msra.mxu0 0.0
    %3018 = vmatpush.msra.mxu0 0.0
    %3019 = vmatpush.msra.mxu0 0.0
    %3020 = vmatpush.msra.mxu0 0.0
    %3021 = vmatpush.msra.mxu0 0.0
    %3022 = vmatpush.msra.mxu0 0.0
    %3023 = vmatpush.msra.mxu0 0.0
    %3024 = vmatpush.msra.mxu0 %v2616
    %3025 = vmatmul.f32.gmra.mxu0 %v3007
    %v3026 = vpop.f32.mrf.mxu0
    %v3027 = vadd.f32 0.0, %v3026
    %3028 = vdwg.mxu0
    %v3029 = vadd.f32 %v2926, %v3027
    %3030 = vrot.lane.b32.xlu0 %v2662, 104
    %v3031 = vpop.permute.xlu0 %3030
    %3032 = vrot.lane.b32.xlu0 %v2726, 104
    %v3033 = vpop.permute.xlu0 %3032
    %v3034 = vsel %vm162, %v3031, 0
    %v3036 = vsel %vm162, %v3033, 0
    %3038 = vmatpush.xpose.msra.mxu0 0.0
    %3039 = vmatpush.xpose.msra.mxu0 0.0
    %3040 = vmatpush.xpose.msra.mxu0 0.0
    %3041 = vmatpush.xpose.msra.mxu0 0.0
    %3042 = vmatpush.xpose.msra.mxu0 0.0
    %3043 = vmatpush.xpose.msra.mxu0 0.0
    %3044 = vmatpush.xpose.msra.mxu0 0.0
    %3045 = vmatpush.xpose.msra.mxu0 0.0
    %3046 = vmatpush.xpose.msra.mxu0 0.0
    %3047 = vmatpush.xpose.msra.mxu0 0.0
    %3048 = vmatpush.xpose.msra.mxu0 0.0
    %3049 = vmatpush.xpose.msra.mxu0 0.0
    %3050 = vmatpush.xpose.msra.mxu0 0.0
    %3051 = vmatpush.xpose.msra.mxu0 0.0
    %3052 = vmatpush.xpose.msra.mxu0 0.0
    %3053 = vmatpush.xpose.msra.mxu0 %v3036
    %3054 = vmatmul.f32.gmra.mxu0 %v3034
    %v3055 = vpop.f32.mrf.mxu0
    %v3056 = vadd.f32 0.0, %v3055
    %3057 = vdwg.mxu0
    %v3058 = vsel %vm162, %v3056, -inf
    %3059 = vmax.xlane.f32.xlu0 %v3058
    %v3060 = vpop.xlane.xlu0 %3059
    %v3061 = vsub.f32 %v3056, %v3060
    %v3062 = vmul.f32 %v3061, 1.442695
    %v3063 = vpow.pop %v3062
    %v3064 = vsel %vm162, %v3063, 0.0
    %3065 = vadd.xlane.f32.xlu0 %v3064
    %v3066 = vpop.xlane.xlu0 %3065
    %v3067 = vrcp.pop %v3066
    %v3068 = vmul.f32 %v3066, %v3067
    %v3069 = vsub.f32 1.0, %v3068
    %v3070 = vmul.f32 %v3067, %v3069
    %v3071 = vadd.f32 %v3067, %v3070
    %vm3072 = vweird.f32 %v3066
    %vm3073 = vweird.f32 %v3067
    %vm3074 = vmor %vm3072, %vm3073
    %v3075 = vsel %vm3074, %v3067, %v3071
    %v3076 = vand.u32 2147483647, %v3066
    %vm3077 = vcmp.eq.f32.partialorder %v3076, 8.507059e+37
    %v3078 = vand.u32 %v3066, 2147483648
    %v3079 = vor.u32 1.1754944e-38, %v3078
    %v3080 = vsel %vm3077, %v3079, %v3075
    %v3081 = vmul.f32 %v3063, %v3080
    %3082 = vrot.lane.b32.xlu0 %v2726, 72
    %v3083 = vpop.permute.xlu0 %3082
    %v3086 = vsel %vm162, %v3081, 0
    %3088 = vmatpush.msra.mxu0 0.0
    %3089 = vmatpush.msra.mxu0 0.0
    %3090 = vmatpush.msra.mxu0 0.0
    %3091 = vmatpush.msra.mxu0 0.0
    %3092 = vmatpush.msra.mxu0 0.0
    %3093 = vmatpush.msra.mxu0 0.0
    %3094 = vmatpush.msra.mxu0 0.0
    %3095 = vmatpush.msra.mxu0 0.0
    %3096 = vmatpush.msra.mxu0 0.0
    %3097 = vmatpush.msra.mxu0 0.0
    %3098 = vmatpush.msra.mxu0 0.0
    %3099 = vmatpush.msra.mxu0 0.0
    %3100 = vmatpush.msra.mxu0 0.0
    %3101 = vmatpush.msra.mxu0 0.0
    %3102 = vmatpush.msra.mxu0 0.0
    %3103 = vmatpush.msra.mxu0 %v3083
    %3104 = vmatmul.f32.gmra.mxu0 %v3086
    %v3105 = vpop.f32.mrf.mxu0
    %v3106 = vadd.f32 0.0, %v3105
    %3107 = vdwg.mxu0
    %v3109 = vsel %vm162, %v3106, 0
    %3111 = vmatpush.msra.mxu0 0.0
    %3112 = vmatpush.msra.mxu0 0.0
    %3113 = vmatpush.msra.mxu0 0.0
    %3114 = vmatpush.msra.mxu0 0.0
    %3115 = vmatpush.msra.mxu0 0.0
    %3116 = vmatpush.msra.mxu0 0.0
    %3117 = vmatpush.msra.mxu0 0.0
    %3118 = vmatpush.msra.mxu0 0.0
    %3119 = vmatpush.msra.mxu0 0.0
    %3120 = vmatpush.msra.mxu0 0.0
    %3121 = vmatpush.msra.mxu0 0.0
    %3122 = vmatpush.msra.mxu0 0.0
    %3123 = vmatpush.msra.mxu0 0.0
    %3124 = vmatpush.msra.mxu0 0.0
    %3125 = vmatpush.msra.mxu0 0.0
    %3126 = vmatpush.msra.mxu0 %v2617
    %3127 = vmatmul.f32.gmra.mxu0 %v3109
    %v3128 = vpop.f32.mrf.mxu0
    %v3129 = vadd.f32 0.0, %v3128
    %3130 = vdwg.mxu0
    %v3131 = vadd.f32 %v3029, %v3129
    %v3132 = vperm.slane %v2618, 0
    %v3133 = vadd.f32 %v3131, %v3132
    %v3135 = vrot.slane %v3133, 1
    %v3136 = vrot.slane %v3133, 2
    %v3137 = vrot.slane %v3133, 3
    %v3138 = vrot.slane %v3133, 4
    %v3139 = vrot.slane %v3133, 5
    %v3140 = vrot.slane %v3133, 6
    %v3141 = vrot.slane %v3133, 7
    %v3150 = vadd.f32 %v2601, %v3133
    %v3151 = vadd.f32 %v2602, %v3135
    %v3152 = vadd.f32 %v2603, %v3136
    %v3153 = vadd.f32 %v2604, %v3137
    %v3154 = vadd.f32 %v2605, %v3138
    %v3155 = vadd.f32 %v2606, %v3139
    %v3156 = vadd.f32 %v2607, %v3140
    %v3157 = vadd.f32 %v2608, %v3141
    %v3158 = vld [vmem:[#allocation7 + $0x28] sm:$0x1]
    %v3159 = vld [vmem:[#allocation7 + $0x29] sm:$0x1]
    %v3168 = vrot.slane %v3151, 7
    %v3169 = vsel %vm116, %v3168, %v3150
    %v3170 = vrot.slane %v3152, 6
    %v3171 = vsel %vm119, %v3170, %v3169
    %v3172 = vrot.slane %v3153, 5
    %v3173 = vsel %vm122, %v3172, %v3171
    %v3174 = vrot.slane %v3154, 4
    %v3175 = vsel %vm125, %v3174, %v3173
    %v3176 = vrot.slane %v3155, 3
    %v3177 = vsel %vm128, %v3176, %v3175
    %v3178 = vrot.slane %v3156, 2
    %v3179 = vsel %vm131, %v3178, %v3177
    %v3180 = vrot.slane %v3157, 1
    %v3181 = vsel %vm134, %v3180, %v3179
    %v3183 = vsel %vm136, %v3181, 0.0
    %3184 = vadd.xlane.f32.xlu0 %v3183
    %v3185 = vpop.xlane.xlu0 %3184
    %v3186 = vmul.f32 %v3185, %v625
    %v3188 = vrot.slane %v3186, 1
    %v3189 = vrot.slane %v3186, 2
    %v3190 = vrot.slane %v3186, 3
    %v3191 = vrot.slane %v3186, 4
    %v3192 = vrot.slane %v3186, 5
    %v3193 = vrot.slane %v3186, 6
    %v3194 = vrot.slane %v3186, 7
    %v3203 = vsub.f32 %v3150, %v3186
    %v3204 = vsub.f32 %v3151, %v3188
    %v3205 = vsub.f32 %v3152, %v3189
    %v3206 = vsub.f32 %v3153, %v3190
    %v3207 = vsub.f32 %v3154, %v3191
    %v3208 = vsub.f32 %v3155, %v3192
    %v3209 = vsub.f32 %v3156, %v3193
    %v3210 = vsub.f32 %v3157, %v3194
    %v3211 = vmul.f32 %v3203, %v3203
    %v3212 = vmul.f32 %v3204, %v3204
    %v3213 = vmul.f32 %v3205, %v3205
    %v3214 = vmul.f32 %v3206, %v3206
    %v3215 = vmul.f32 %v3207, %v3207
    %v3216 = vmul.f32 %v3208, %v3208
    %v3217 = vmul.f32 %v3209, %v3209
    %v3218 = vmul.f32 %v3210, %v3210
    %v3227 = vrot.slane %v3212, 7
    %v3228 = vsel %vm116, %v3227, %v3211
    %v3229 = vrot.slane %v3213, 6
    %v3230 = vsel %vm119, %v3229, %v3228
    %v3231 = vrot.slane %v3214, 5
    %v3232 = vsel %vm122, %v3231, %v3230
    %v3233 = vrot.slane %v3215, 4
    %v3234 = vsel %vm125, %v3233, %v3232
    %v3235 = vrot.slane %v3216, 3
    %v3236 = vsel %vm128, %v3235, %v3234
    %v3237 = vrot.slane %v3217, 2
    %v3238 = vsel %vm131, %v3237, %v3236
    %v3239 = vrot.slane %v3218, 1
    %v3240 = vsel %vm134, %v3239, %v3238
    %v3242 = vsel %vm136, %v3240, 0.0
    %3243 = vadd.xlane.f32.xlu0 %v3242
    %v3244 = vpop.xlane.xlu0 %3243
    %v3245 = vmul.f32 %v3244, %v625
    %v3246 = vadd.f32 %v3245, 1e-05
    %v3247 = vrsqrt.pop %v3246
    %v3248 = vmul.f32 %v3247, %v3246
    %v3249 = vmul.f32 %v3248, %v3247
    %v3250 = vmul.f32 0.5, %v3249
    %v3251 = vsub.f32 1.5, %v3250
    %v3252 = vmul.f32 %v3247, %v3251
    %vm3253 = vweird.f32 %v3246
    %vm3254 = vweird.f32 %v3247
    %vm3255 = vmor %vm3253, %vm3254
    %v3256 = vsel %vm3255, %v3247, %v3252
    %v3258 = vrot.slane %v3256, 1
    %v3259 = vrot.slane %v3256, 2
    %v3260 = vrot.slane %v3256, 3
    %v3261 = vrot.slane %v3256, 4
    %v3262 = vrot.slane %v3256, 5
    %v3263 = vrot.slane %v3256, 6
    %v3264 = vrot.slane %v3256, 7
    %v3273 = vmul.f32 %v3203, %v3256
    %v3274 = vmul.f32 %v3204, %v3258
    %v3275 = vmul.f32 %v3205, %v3259
    %v3276 = vmul.f32 %v3206, %v3260
    %v3277 = vmul.f32 %v3207, %v3261
    %v3278 = vmul.f32 %v3208, %v3262
    %v3279 = vmul.f32 %v3209, %v3263
    %v3280 = vmul.f32 %v3210, %v3264
    %v3281 = vperm.slane %v3158, 0
    %v3282 = vmul.f32 %v3273, %v3281
    %v3283 = vmul.f32 %v3274, %v3281
    %v3284 = vmul.f32 %v3275, %v3281
    %v3285 = vmul.f32 %v3276, %v3281
    %v3286 = vmul.f32 %v3277, %v3281
    %v3287 = vmul.f32 %v3278, %v3281
    %v3288 = vmul.f32 %v3279, %v3281
    %v3289 = vmul.f32 %v3280, %v3281
    %v3290 = vperm.slane %v3159, 0
    %v3291 = vadd.f32 %v3282, %v3290
    %v3292 = vadd.f32 %v3283, %v3290
    %v3293 = vadd.f32 %v3284, %v3290
    %v3294 = vadd.f32 %v3285, %v3290
    %v3295 = vadd.f32 %v3286, %v3290
    %v3296 = vadd.f32 %v3287, %v3290
    %v3297 = vadd.f32 %v3288, %v3290
    %v3298 = vadd.f32 %v3289, %v3290
    %v3299 = vld [vmem:[#allocation5 + $0x1c0] sm:$0xff]
    %v3300 = vld [vmem:[#allocation5 + $0x1c8] sm:$0xff]
    %v3301 = vld [vmem:[#allocation5 + $0x1d0] sm:$0xff]
    %v3302 = vld [vmem:[#allocation5 + $0x1d8] sm:$0xff]
    %v3303 = vld [vmem:[#allocation7 + $0x2a] sm:$0x1]
    %v3304 = vld [vmem:[#allocation5 + $0x1e0] sm:$0xff]
    %v3305 = vld [vmem:[#allocation5 + $0x1e8] sm:$0xff]
    %v3306 = vld [vmem:[#allocation5 + $0x1f0] sm:$0xff]
    %v3307 = vld [vmem:[#allocation5 + $0x1f8] sm:$0xff]
    %v3308 = vld [vmem:[#allocation5 + $0x200] sm:$0xff]
    %v3309 = vld [vmem:[#allocation5 + $0x208] sm:$0xff]
    %v3310 = vld [vmem:[#allocation5 + $0x210] sm:$0xff]
    %v3311 = vld [vmem:[#allocation5 + $0x218] sm:$0xff]
    %v3312 = vld [vmem:[#allocation7 + $0x2b] sm:$0x1]
    %v3313 = vperm.slane %v3303, 0
    %v3322 = vrot.slane %v3292, 7
    %v3323 = vsel %vm116, %v3322, %v3291
    %v3324 = vrot.slane %v3293, 6
    %v3325 = vsel %vm119, %v3324, %v3323
    %v3326 = vrot.slane %v3294, 5
    %v3327 = vsel %vm122, %v3326, %v3325
    %v3328 = vrot.slane %v3295, 4
    %v3329 = vsel %vm125, %v3328, %v3327
    %v3330 = vrot.slane %v3296, 3
    %v3331 = vsel %vm128, %v3330, %v3329
    %v3332 = vrot.slane %v3297, 2
    %v3333 = vsel %vm131, %v3332, %v3331
    %v3334 = vrot.slane %v3298, 1
    %v3335 = vsel %vm134, %v3334, %v3333
    %v3336 = vsel %vm136, %v3335, 0
    %3338 = vmatpush.msra.mxu0 0.0
    %3339 = vmatpush.msra.mxu0 0.0
    %3340 = vmatpush.msra.mxu0 0.0
    %3341 = vmatpush.msra.mxu0 0.0
    %3342 = vmatpush.msra.mxu0 0.0
    %3343 = vmatpush.msra.mxu0 0.0
    %3344 = vmatpush.msra.mxu0 0.0
    %3345 = vmatpush.msra.mxu0 0.0
    %3346 = vmatpush.msra.mxu0 0.0
    %3347 = vmatpush.msra.mxu0 0.0
    %3348 = vmatpush.msra.mxu0 0.0
    %3349 = vmatpush.msra.mxu0 0.0
    %3350 = vmatpush.msra.mxu0 %v3302
    %3351 = vmatpush.msra.mxu0 %v3301
    %3352 = vmatpush.msra.mxu0 %v3300
    %3353 = vmatpush.msra.mxu0 %v3299
    %3354 = vmatmul.f32.gmra.mxu0 %v3336
    %v3355 = vpop.f32.mrf.mxu0
    %v3356 = vadd.f32 %v3313, %v3355
    %3357 = vdwg.mxu0
    %v3358 = vmax.f32 %v3356, 0.0
    %v3359 = vperm.slane %v3312, 0
    %v3361 = vsel %vm800, %v3358, 0
    %3363 = vmatpush.msra.mxu0 0.0
    %3364 = vmatpush.msra.mxu0 0.0
    %3365 = vmatpush.msra.mxu0 0.0
    %3366 = vmatpush.msra.mxu0 0.0
    %3367 = vmatpush.msra.mxu0 0.0
    %3368 = vmatpush.msra.mxu0 0.0
    %3369 = vmatpush.msra.mxu0 0.0
    %3370 = vmatpush.msra.mxu0 0.0
    %3371 = vmatpush.msra.mxu0 %v3311
    %3372 = vmatpush.msra.mxu0 %v3310
    %3373 = vmatpush.msra.mxu0 %v3309
    %3374 = vmatpush.msra.mxu0 %v3308
    %3375 = vmatpush.msra.mxu0 %v3307
    %3376 = vmatpush.msra.mxu0 %v3306
    %3377 = vmatpush.msra.mxu0 %v3305
    %3378 = vmatpush.msra.mxu0 %v3304
    %3379 = vmatmul.f32.gmra.mxu0 %v3361
    %v3380 = vpop.f32.mrf.mxu0
    %v3381 = vadd.f32 %v3359, %v3380
    %3382 = vdwg.mxu0
    %v3384 = vrot.slane %v3381, 1
    %v3385 = vrot.slane %v3381, 2
    %v3386 = vrot.slane %v3381, 3
    %v3387 = vrot.slane %v3381, 4
    %v3388 = vrot.slane %v3381, 5
    %v3389 = vrot.slane %v3381, 6
    %v3390 = vrot.slane %v3381, 7
    %v3399 = vadd.f32 %v3291, %v3381
    %v3400 = vadd.f32 %v3292, %v3384
    %v3401 = vadd.f32 %v3293, %v3385
    %v3402 = vadd.f32 %v3294, %v3386
    %v3403 = vadd.f32 %v3295, %v3387
    %v3404 = vadd.f32 %v3296, %v3388
    %v3405 = vadd.f32 %v3297, %v3389
    %v3406 = vadd.f32 %v3298, %v3390
    %v3407 = vld [vmem:[#allocation7 + $0x2c] sm:$0x1]
    %v3408 = vld [vmem:[#allocation7 + $0x2d] sm:$0x1]
    %v3417 = vrot.slane %v3400, 7
    %v3418 = vsel %vm116, %v3417, %v3399
    %v3419 = vrot.slane %v3401, 6
    %v3420 = vsel %vm119, %v3419, %v3418
    %v3421 = vrot.slane %v3402, 5
    %v3422 = vsel %vm122, %v3421, %v3420
    %v3423 = vrot.slane %v3403, 4
    %v3424 = vsel %vm125, %v3423, %v3422
    %v3425 = vrot.slane %v3404, 3
    %v3426 = vsel %vm128, %v3425, %v3424
    %v3427 = vrot.slane %v3405, 2
    %v3428 = vsel %vm131, %v3427, %v3426
    %v3429 = vrot.slane %v3406, 1
    %v3430 = vsel %vm134, %v3429, %v3428
    %v3432 = vsel %vm136, %v3430, 0.0
    %3433 = vadd.xlane.f32.xlu0 %v3432
    %v3434 = vpop.xlane.xlu0 %3433
    %v3435 = vmul.f32 %v3434, %v625
    %v3437 = vrot.slane %v3435, 1
    %v3438 = vrot.slane %v3435, 2
    %v3439 = vrot.slane %v3435, 3
    %v3440 = vrot.slane %v3435, 4
    %v3441 = vrot.slane %v3435, 5
    %v3442 = vrot.slane %v3435, 6
    %v3443 = vrot.slane %v3435, 7
    %v3452 = vsub.f32 %v3399, %v3435
    %v3453 = vsub.f32 %v3400, %v3437
    %v3454 = vsub.f32 %v3401, %v3438
    %v3455 = vsub.f32 %v3402, %v3439
    %v3456 = vsub.f32 %v3403, %v3440
    %v3457 = vsub.f32 %v3404, %v3441
    %v3458 = vsub.f32 %v3405, %v3442
    %v3459 = vsub.f32 %v3406, %v3443
    %v3460 = vmul.f32 %v3452, %v3452
    %v3461 = vmul.f32 %v3453, %v3453
    %v3462 = vmul.f32 %v3454, %v3454
    %v3463 = vmul.f32 %v3455, %v3455
    %v3464 = vmul.f32 %v3456, %v3456
    %v3465 = vmul.f32 %v3457, %v3457
    %v3466 = vmul.f32 %v3458, %v3458
    %v3467 = vmul.f32 %v3459, %v3459
    %v3476 = vrot.slane %v3461, 7
    %v3477 = vsel %vm116, %v3476, %v3460
    %v3478 = vrot.slane %v3462, 6
    %v3479 = vsel %vm119, %v3478, %v3477
    %v3480 = vrot.slane %v3463, 5
    %v3481 = vsel %vm122, %v3480, %v3479
    %v3482 = vrot.slane %v3464, 4
    %v3483 = vsel %vm125, %v3482, %v3481
    %v3484 = vrot.slane %v3465, 3
    %v3485 = vsel %vm128, %v3484, %v3483
    %v3486 = vrot.slane %v3466, 2
    %v3487 = vsel %vm131, %v3486, %v3485
    %v3488 = vrot.slane %v3467, 1
    %v3489 = vsel %vm134, %v3488, %v3487
    %v3491 = vsel %vm136, %v3489, 0.0
    %3492 = vadd.xlane.f32.xlu0 %v3491
    %v3493 = vpop.xlane.xlu0 %3492
    %v3494 = vmul.f32 %v3493, %v625
    %v3495 = vadd.f32 %v3494, 1e-05
    %v3496 = vrsqrt.pop %v3495
    %v3497 = vmul.f32 %v3496, %v3495
    %v3498 = vmul.f32 %v3497, %v3496
    %v3499 = vmul.f32 0.5, %v3498
    %v3500 = vsub.f32 1.5, %v3499
    %v3501 = vmul.f32 %v3496, %v3500
    %vm3502 = vweird.f32 %v3495
    %vm3503 = vweird.f32 %v3496
    %vm3504 = vmor %vm3502, %vm3503
    %v3505 = vsel %vm3504, %v3496, %v3501
    %v3507 = vrot.slane %v3505, 1
    %v3508 = vrot.slane %v3505, 2
    %v3509 = vrot.slane %v3505, 3
    %v3510 = vrot.slane %v3505, 4
    %v3511 = vrot.slane %v3505, 5
    %v3512 = vrot.slane %v3505, 6
    %v3513 = vrot.slane %v3505, 7
    %v3522 = vmul.f32 %v3452, %v3505
    %v3523 = vmul.f32 %v3453, %v3507
    %v3524 = vmul.f32 %v3454, %v3508
    %v3525 = vmul.f32 %v3455, %v3509
    %v3526 = vmul.f32 %v3456, %v3510
    %v3527 = vmul.f32 %v3457, %v3511
    %v3528 = vmul.f32 %v3458, %v3512
    %v3529 = vmul.f32 %v3459, %v3513
    %v3530 = vperm.slane %v3407, 0
    %v3531 = vmul.f32 %v3522, %v3530
    %v3532 = vmul.f32 %v3523, %v3530
    %v3533 = vmul.f32 %v3524, %v3530
    %v3534 = vmul.f32 %v3525, %v3530
    %v3535 = vmul.f32 %v3526, %v3530
    %v3536 = vmul.f32 %v3527, %v3530
    %v3537 = vmul.f32 %v3528, %v3530
    %v3538 = vmul.f32 %v3529, %v3530
    %v3539 = vperm.slane %v3408, 0
    %v3540 = vadd.f32 %v3531, %v3539
    %v3541 = vadd.f32 %v3532, %v3539
    %v3542 = vadd.f32 %v3533, %v3539
    %v3543 = vadd.f32 %v3534, %v3539
    %v3544 = vadd.f32 %v3535, %v3539
    %v3545 = vadd.f32 %v3536, %v3539
    %v3546 = vadd.f32 %v3537, %v3539
    %v3547 = vadd.f32 %v3538, %v3539
    %v3548 = vld [vmem:[#allocation5 + $0x220] sm:$0xff]
    %v3549 = vld [vmem:[#allocation5 + $0x228] sm:$0xff]
    %v3550 = vld [vmem:[#allocation5 + $0x230] sm:$0xff]
    %v3551 = vld [vmem:[#allocation5 + $0x238] sm:$0xff]
    %v3552 = vld [vmem:[#allocation7 + $0x2e] sm:$0x1]
    %v3553 = vld [vmem:[#allocation5 + $0x240] sm:$0xff]
    %v3554 = vld [vmem:[#allocation5 + $0x248] sm:$0xff]
    %v3555 = vld [vmem:[#allocation5 + $0x250] sm:$0xff]
    %v3556 = vld [vmem:[#allocation5 + $0x258] sm:$0xff]
    %v3557 = vld [vmem:[#allocation7 + $0x2f] sm:$0x1]
    %v3558 = vperm.slane %v3552, 0
    %v3567 = vrot.slane %v3541, 7
    %v3568 = vsel %vm116, %v3567, %v3540
    %v3569 = vrot.slane %v3542, 6
    %v3570 = vsel %vm119, %v3569, %v3568
    %v3571 = vrot.slane %v3543, 5
    %v3572 = vsel %vm122, %v3571, %v3570
    %v3573 = vrot.slane %v3544, 4
    %v3574 = vsel %vm125, %v3573, %v3572
    %v3575 = vrot.slane %v3545, 3
    %v3576 = vsel %vm128, %v3575, %v3574
    %v3577 = vrot.slane %v3546, 2
    %v3578 = vsel %vm131, %v3577, %v3576
    %v3579 = vrot.slane %v3547, 1
    %v3580 = vsel %vm134, %v3579, %v3578
    %v3581 = vsel %vm136, %v3580, 0
    %3583 = vmatpush.msra.mxu0 0.0
    %3584 = vmatpush.msra.mxu0 0.0
    %3585 = vmatpush.msra.mxu0 0.0
    %3586 = vmatpush.msra.mxu0 0.0
    %3587 = vmatpush.msra.mxu0 0.0
    %3588 = vmatpush.msra.mxu0 0.0
    %3589 = vmatpush.msra.mxu0 0.0
    %3590 = vmatpush.msra.mxu0 0.0
    %3591 = vmatpush.msra.mxu0 0.0
    %3592 = vmatpush.msra.mxu0 0.0
    %3593 = vmatpush.msra.mxu0 0.0
    %3594 = vmatpush.msra.mxu0 0.0
    %3595 = vmatpush.msra.mxu0 %v3551
    %3596 = vmatpush.msra.mxu0 %v3550
    %3597 = vmatpush.msra.mxu0 %v3549
    %3598 = vmatpush.msra.mxu0 %v3548
    %3599 = vmatmul.f32.gmra.mxu0 %v3581
    %v3600 = vpop.f32.mrf.mxu0
    %v3601 = vadd.f32 %v3558, %v3600
    %3602 = vdwg.mxu0
    %3604 = vrot.lane.b32.xlu0 %v3601, 96
    %v3605 = vpop.permute.xlu0 %3604
    %v3606 = vsel %vm162, %v3601, 0
    %v3608 = vsel %vm162, %v3605, 0
    %3610 = vmatpush.xpose.msra.mxu0 0.0
    %3611 = vmatpush.xpose.msra.mxu0 0.0
    %3612 = vmatpush.xpose.msra.mxu0 0.0
    %3613 = vmatpush.xpose.msra.mxu0 0.0
    %3614 = vmatpush.xpose.msra.mxu0 0.0
    %3615 = vmatpush.xpose.msra.mxu0 0.0
    %3616 = vmatpush.xpose.msra.mxu0 0.0
    %3617 = vmatpush.xpose.msra.mxu0 0.0
    %3618 = vmatpush.xpose.msra.mxu0 0.0
    %3619 = vmatpush.xpose.msra.mxu0 0.0
    %3620 = vmatpush.xpose.msra.mxu0 0.0
    %3621 = vmatpush.xpose.msra.mxu0 0.0
    %3622 = vmatpush.xpose.msra.mxu0 0.0
    %3623 = vmatpush.xpose.msra.mxu0 0.0
    %3624 = vmatpush.xpose.msra.mxu0 0.0
    %3625 = vmatpush.xpose.msra.mxu0 %v3608
    %3626 = vmatmul.f32.gmra.mxu0 %v3606
    %v3627 = vpop.f32.mrf.mxu0
    %v3628 = vadd.f32 0.0, %v3627
    %3629 = vdwg.mxu0
    %v3630 = vsel %vm162, %v3628, -inf
    %3631 = vmax.xlane.f32.xlu0 %v3630
    %v3632 = vpop.xlane.xlu0 %3631
    %v3633 = vsub.f32 %v3628, %v3632
    %v3634 = vmul.f32 %v3633, 1.442695
    %v3635 = vpow.pop %v3634
    %v3636 = vsel %vm162, %v3635, 0.0
    %3637 = vadd.xlane.f32.xlu0 %v3636
    %v3638 = vpop.xlane.xlu0 %3637
    %v3639 = vrcp.pop %v3638
    %v3640 = vmul.f32 %v3638, %v3639
    %v3641 = vsub.f32 1.0, %v3640
    %v3642 = vmul.f32 %v3639, %v3641
    %v3643 = vadd.f32 %v3639, %v3642
    %vm3644 = vweird.f32 %v3638
    %vm3645 = vweird.f32 %v3639
    %vm3646 = vmor %vm3644, %vm3645
    %v3647 = vsel %vm3646, %v3639, %v3643
    %v3648 = vand.u32 2147483647, %v3638
    %vm3649 = vcmp.eq.f32.partialorder %v3648, 8.507059e+37
    %v3650 = vand.u32 %v3638, 2147483648
    %v3651 = vor.u32 1.1754944e-38, %v3650
    %v3652 = vsel %vm3649, %v3651, %v3647
    %v3653 = vmul.f32 %v3635, %v3652
    %3654 = vrot.lane.b32.xlu0 %v3601, 64
    %v3655 = vpop.permute.xlu0 %3654
    %v3658 = vsel %vm162, %v3653, 0
    %3660 = vmatpush.msra.mxu0 0.0
    %3661 = vmatpush.msra.mxu0 0.0
    %3662 = vmatpush.msra.mxu0 0.0
    %3663 = vmatpush.msra.mxu0 0.0
    %3664 = vmatpush.msra.mxu0 0.0
    %3665 = vmatpush.msra.mxu0 0.0
    %3666 = vmatpush.msra.mxu0 0.0
    %3667 = vmatpush.msra.mxu0 0.0
    %3668 = vmatpush.msra.mxu0 0.0
    %3669 = vmatpush.msra.mxu0 0.0
    %3670 = vmatpush.msra.mxu0 0.0
    %3671 = vmatpush.msra.mxu0 0.0
    %3672 = vmatpush.msra.mxu0 0.0
    %3673 = vmatpush.msra.mxu0 0.0
    %3674 = vmatpush.msra.mxu0 0.0
    %3675 = vmatpush.msra.mxu0 %v3655
    %3676 = vmatmul.f32.gmra.mxu0 %v3658
    %v3677 = vpop.f32.mrf.mxu0
    %v3678 = vadd.f32 0.0, %v3677
    %3679 = vdwg.mxu0
    %3680 = vrot.lane.b32.xlu0 %v3601, 120
    %v3681 = vpop.permute.xlu0 %3680
    %3682 = vrot.lane.b32.xlu0 %v3601, 88
    %v3683 = vpop.permute.xlu0 %3682
    %v3684 = vsel %vm162, %v3681, 0
    %v3686 = vsel %vm162, %v3683, 0
    %3688 = vmatpush.xpose.msra.mxu0 0.0
    %3689 = vmatpush.xpose.msra.mxu0 0.0
    %3690 = vmatpush.xpose.msra.mxu0 0.0
    %3691 = vmatpush.xpose.msra.mxu0 0.0
    %3692 = vmatpush.xpose.msra.mxu0 0.0
    %3693 = vmatpush.xpose.msra.mxu0 0.0
    %3694 = vmatpush.xpose.msra.mxu0 0.0
    %3695 = vmatpush.xpose.msra.mxu0 0.0
    %3696 = vmatpush.xpose.msra.mxu0 0.0
    %3697 = vmatpush.xpose.msra.mxu0 0.0
    %3698 = vmatpush.xpose.msra.mxu0 0.0
    %3699 = vmatpush.xpose.msra.mxu0 0.0
    %3700 = vmatpush.xpose.msra.mxu0 0.0
    %3701 = vmatpush.xpose.msra.mxu0 0.0
    %3702 = vmatpush.xpose.msra.mxu0 0.0
    %3703 = vmatpush.xpose.msra.mxu0 %v3686
    %3704 = vmatmul.f32.gmra.mxu0 %v3684
    %v3705 = vpop.f32.mrf.mxu0
    %v3706 = vadd.f32 0.0, %v3705
    %3707 = vdwg.mxu0
    %v3708 = vsel %vm162, %v3706, -inf
    %3709 = vmax.xlane.f32.xlu0 %v3708
    %v3710 = vpop.xlane.xlu0 %3709
    %v3711 = vsub.f32 %v3706, %v3710
    %v3712 = vmul.f32 %v3711, 1.442695
    %v3713 = vpow.pop %v3712
    %v3714 = vsel %vm162, %v3713, 0.0
    %3715 = vadd.xlane.f32.xlu0 %v3714
    %v3716 = vpop.xlane.xlu0 %3715
    %v3717 = vrcp.pop %v3716
    %v3718 = vmul.f32 %v3716, %v3717
    %v3719 = vsub.f32 1.0, %v3718
    %v3720 = vmul.f32 %v3717, %v3719
    %v3721 = vadd.f32 %v3717, %v3720
    %vm3722 = vweird.f32 %v3716
    %vm3723 = vweird.f32 %v3717
    %vm3724 = vmor %vm3722, %vm3723
    %v3725 = vsel %vm3724, %v3717, %v3721
    %v3726 = vand.u32 2147483647, %v3716
    %vm3727 = vcmp.eq.f32.partialorder %v3726, 8.507059e+37
    %v3728 = vand.u32 %v3716, 2147483648
    %v3729 = vor.u32 1.1754944e-38, %v3728
    %v3730 = vsel %vm3727, %v3729, %v3725
    %v3731 = vmul.f32 %v3713, %v3730
    %3732 = vrot.lane.b32.xlu0 %v3601, 56
    %v3733 = vpop.permute.xlu0 %3732
    %v3736 = vsel %vm162, %v3731, 0
    %3738 = vmatpush.msra.mxu0 0.0
    %3739 = vmatpush.msra.mxu0 0.0
    %3740 = vmatpush.msra.mxu0 0.0
    %3741 = vmatpush.msra.mxu0 0.0
    %3742 = vmatpush.msra.mxu0 0.0
    %3743 = vmatpush.msra.mxu0 0.0
    %3744 = vmatpush.msra.mxu0 0.0
    %3745 = vmatpush.msra.mxu0 0.0
    %3746 = vmatpush.msra.mxu0 0.0
    %3747 = vmatpush.msra.mxu0 0.0
    %3748 = vmatpush.msra.mxu0 0.0
    %3749 = vmatpush.msra.mxu0 0.0
    %3750 = vmatpush.msra.mxu0 0.0
    %3751 = vmatpush.msra.mxu0 0.0
    %3752 = vmatpush.msra.mxu0 0.0
    %3753 = vmatpush.msra.mxu0 %v3733
    %3754 = vmatmul.f32.gmra.mxu0 %v3736
    %v3755 = vpop.f32.mrf.mxu0
    %v3756 = vadd.f32 0.0, %v3755
    %3757 = vdwg.mxu0
    %v3759 = vsel %vm162, %v3756, 0
    %3761 = vmatpush.msra.mxu0 0.0
    %3762 = vmatpush.msra.mxu0 0.0
    %3763 = vmatpush.msra.mxu0 0.0
    %3764 = vmatpush.msra.mxu0 0.0
    %3765 = vmatpush.msra.mxu0 0.0
    %3766 = vmatpush.msra.mxu0 0.0
    %3767 = vmatpush.msra.mxu0 0.0
    %3768 = vmatpush.msra.mxu0 0.0
    %3769 = vmatpush.msra.mxu0 0.0
    %3770 = vmatpush.msra.mxu0 0.0
    %3771 = vmatpush.msra.mxu0 0.0
    %3772 = vmatpush.msra.mxu0 0.0
    %3773 = vmatpush.msra.mxu0 0.0
    %3774 = vmatpush.msra.mxu0 0.0
    %3775 = vmatpush.msra.mxu0 0.0
    %3776 = vmatpush.msra.mxu0 %v3554
    %3777 = vmatmul.f32.gmra.mxu0 %v3759
    %v3778 = vpop.f32.mrf.mxu0
    %v3779 = vadd.f32 0.0, %v3778
    %3780 = vdwg.mxu0
    %v3782 = vsel %vm162, %v3678, 0
    %3784 = vmatpush.msra.mxu0 0.0
    %3785 = vmatpush.msra.mxu0 0.0
    %3786 = vmatpush.msra.mxu0 0.0
    %3787 = vmatpush.msra.mxu0 0.0
    %3788 = vmatpush.msra.mxu0 0.0
    %3789 = vmatpush.msra.mxu0 0.0
    %3790 = vmatpush.msra.mxu0 0.0
    %3791 = vmatpush.msra.mxu0 0.0
    %3792 = vmatpush.msra.mxu0 0.0
    %3793 = vmatpush.msra.mxu0 0.0
    %3794 = vmatpush.msra.mxu0 0.0
    %3795 = vmatpush.msra.mxu0 0.0
    %3796 = vmatpush.msra.mxu0 0.0
    %3797 = vmatpush.msra.mxu0 0.0
    %3798 = vmatpush.msra.mxu0 0.0
    %3799 = vmatpush.msra.mxu0 %v3553
    %3800 = vmatmul.f32.gmra.mxu0 %v3782
    %v3801 = vpop.f32.mrf.mxu0
    %v3802 = vadd.f32 %v3779, %v3801
    %3803 = vdwg.mxu0
    %3804 = vrot.lane.b32.xlu0 %v3601, 112
    %v3805 = vpop.permute.xlu0 %3804
    %3806 = vrot.lane.b32.xlu0 %v3601, 80
    %v3807 = vpop.permute.xlu0 %3806
    %v3808 = vsel %vm162, %v3805, 0
    %v3810 = vsel %vm162, %v3807, 0
    %3812 = vmatpush.xpose.msra.mxu0 0.0
    %3813 = vmatpush.xpose.msra.mxu0 0.0
    %3814 = vmatpush.xpose.msra.mxu0 0.0
    %3815 = vmatpush.xpose.msra.mxu0 0.0
    %3816 = vmatpush.xpose.msra.mxu0 0.0
    %3817 = vmatpush.xpose.msra.mxu0 0.0
    %3818 = vmatpush.xpose.msra.mxu0 0.0
    %3819 = vmatpush.xpose.msra.mxu0 0.0
    %3820 = vmatpush.xpose.msra.mxu0 0.0
    %3821 = vmatpush.xpose.msra.mxu0 0.0
    %3822 = vmatpush.xpose.msra.mxu0 0.0
    %3823 = vmatpush.xpose.msra.mxu0 0.0
    %3824 = vmatpush.xpose.msra.mxu0 0.0
    %3825 = vmatpush.xpose.msra.mxu0 0.0
    %3826 = vmatpush.xpose.msra.mxu0 0.0
    %3827 = vmatpush.xpose.msra.mxu0 %v3810
    %3828 = vmatmul.f32.gmra.mxu0 %v3808
    %v3829 = vpop.f32.mrf.mxu0
    %v3830 = vadd.f32 0.0, %v3829
    %3831 = vdwg.mxu0
    %v3832 = vsel %vm162, %v3830, -inf
    %3833 = vmax.xlane.f32.xlu0 %v3832
    %v3834 = vpop.xlane.xlu0 %3833
    %v3835 = vsub.f32 %v3830, %v3834
    %v3836 = vmul.f32 %v3835, 1.442695
    %v3837 = vpow.pop %v3836
    %v3838 = vsel %vm162, %v3837, 0.0
    %3839 = vadd.xlane.f32.xlu0 %v3838
    %v3840 = vpop.xlane.xlu0 %3839
    %v3841 = vrcp.pop %v3840
    %v3842 = vmul.f32 %v3840, %v3841
    %v3843 = vsub.f32 1.0, %v3842
    %v3844 = vmul.f32 %v3841, %v3843
    %v3845 = vadd.f32 %v3841, %v3844
    %vm3846 = vweird.f32 %v3840
    %vm3847 = vweird.f32 %v3841
    %vm3848 = vmor %vm3846, %vm3847
    %v3849 = vsel %vm3848, %v3841, %v3845
    %v3850 = vand.u32 2147483647, %v3840
    %vm3851 = vcmp.eq.f32.partialorder %v3850, 8.507059e+37
    %v3852 = vand.u32 %v3840, 2147483648
    %v3853 = vor.u32 1.1754944e-38, %v3852
    %v3854 = vsel %vm3851, %v3853, %v3849
    %v3855 = vmul.f32 %v3837, %v3854
    %3856 = vrot.lane.b32.xlu0 %v3601, 48
    %v3857 = vpop.permute.xlu0 %3856
    %v3860 = vsel %vm162, %v3855, 0
    %3862 = vmatpush.msra.mxu0 0.0
    %3863 = vmatpush.msra.mxu0 0.0
    %3864 = vmatpush.msra.mxu0 0.0
    %3865 = vmatpush.msra.mxu0 0.0
    %3866 = vmatpush.msra.mxu0 0.0
    %3867 = vmatpush.msra.mxu0 0.0
    %3868 = vmatpush.msra.mxu0 0.0
    %3869 = vmatpush.msra.mxu0 0.0
    %3870 = vmatpush.msra.mxu0 0.0
    %3871 = vmatpush.msra.mxu0 0.0
    %3872 = vmatpush.msra.mxu0 0.0
    %3873 = vmatpush.msra.mxu0 0.0
    %3874 = vmatpush.msra.mxu0 0.0
    %3875 = vmatpush.msra.mxu0 0.0
    %3876 = vmatpush.msra.mxu0 0.0
    %3877 = vmatpush.msra.mxu0 %v3857
    %3878 = vmatmul.f32.gmra.mxu0 %v3860
    %v3879 = vpop.f32.mrf.mxu0
    %v3880 = vadd.f32 0.0, %v3879
    %3881 = vdwg.mxu0
    %v3883 = vsel %vm162, %v3880, 0
    %3885 = vmatpush.msra.mxu0 0.0
    %3886 = vmatpush.msra.mxu0 0.0
    %3887 = vmatpush.msra.mxu0 0.0
    %3888 = vmatpush.msra.mxu0 0.0
    %3889 = vmatpush.msra.mxu0 0.0
    %3890 = vmatpush.msra.mxu0 0.0
    %3891 = vmatpush.msra.mxu0 0.0
    %3892 = vmatpush.msra.mxu0 0.0
    %3893 = vmatpush.msra.mxu0 0.0
    %3894 = vmatpush.msra.mxu0 0.0
    %3895 = vmatpush.msra.mxu0 0.0
    %3896 = vmatpush.msra.mxu0 0.0
    %3897 = vmatpush.msra.mxu0 0.0
    %3898 = vmatpush.msra.mxu0 0.0
    %3899 = vmatpush.msra.mxu0 0.0
    %3900 = vmatpush.msra.mxu0 %v3555
    %3901 = vmatmul.f32.gmra.mxu0 %v3883
    %v3902 = vpop.f32.mrf.mxu0
    %v3903 = vadd.f32 0.0, %v3902
    %3904 = vdwg.mxu0
    %v3905 = vadd.f32 %v3802, %v3903
    %3906 = vrot.lane.b32.xlu0 %v3601, 104
    %v3907 = vpop.permute.xlu0 %3906
    %3908 = vrot.lane.b32.xlu0 %v3601, 72
    %v3909 = vpop.permute.xlu0 %3908
    %v3910 = vsel %vm162, %v3907, 0
    %v3912 = vsel %vm162, %v3909, 0
    %3914 = vmatpush.xpose.msra.mxu0 0.0
    %3915 = vmatpush.xpose.msra.mxu0 0.0
    %3916 = vmatpush.xpose.msra.mxu0 0.0
    %3917 = vmatpush.xpose.msra.mxu0 0.0
    %3918 = vmatpush.xpose.msra.mxu0 0.0
    %3919 = vmatpush.xpose.msra.mxu0 0.0
    %3920 = vmatpush.xpose.msra.mxu0 0.0
    %3921 = vmatpush.xpose.msra.mxu0 0.0
    %3922 = vmatpush.xpose.msra.mxu0 0.0
    %3923 = vmatpush.xpose.msra.mxu0 0.0
    %3924 = vmatpush.xpose.msra.mxu0 0.0
    %3925 = vmatpush.xpose.msra.mxu0 0.0
    %3926 = vmatpush.xpose.msra.mxu0 0.0
    %3927 = vmatpush.xpose.msra.mxu0 0.0
    %3928 = vmatpush.xpose.msra.mxu0 0.0
    %3929 = vmatpush.xpose.msra.mxu0 %v3912
    %3930 = vmatmul.f32.gmra.mxu0 %v3910
    %v3931 = vpop.f32.mrf.mxu0
    %v3932 = vadd.f32 0.0, %v3931
    %3933 = vdwg.mxu0
    %v3934 = vsel %vm162, %v3932, -inf
    %3935 = vmax.xlane.f32.xlu0 %v3934
    %v3936 = vpop.xlane.xlu0 %3935
    %v3937 = vsub.f32 %v3932, %v3936
    %v3938 = vmul.f32 %v3937, 1.442695
    %v3939 = vpow.pop %v3938
    %v3940 = vsel %vm162, %v3939, 0.0
    %3941 = vadd.xlane.f32.xlu0 %v3940
    %v3942 = vpop.xlane.xlu0 %3941
    %v3943 = vrcp.pop %v3942
    %v3944 = vmul.f32 %v3942, %v3943
    %v3945 = vsub.f32 1.0, %v3944
    %v3946 = vmul.f32 %v3943, %v3945
    %v3947 = vadd.f32 %v3943, %v3946
    %vm3948 = vweird.f32 %v3942
    %vm3949 = vweird.f32 %v3943
    %vm3950 = vmor %vm3948, %vm3949
    %v3951 = vsel %vm3950, %v3943, %v3947
    %v3952 = vand.u32 2147483647, %v3942
    %vm3953 = vcmp.eq.f32.partialorder %v3952, 8.507059e+37
    %v3954 = vand.u32 %v3942, 2147483648
    %v3955 = vor.u32 1.1754944e-38, %v3954
    %v3956 = vsel %vm3953, %v3955, %v3951
    %v3957 = vmul.f32 %v3939, %v3956
    %3958 = vrot.lane.b32.xlu0 %v3601, 40
    %v3959 = vpop.permute.xlu0 %3958
    %v3962 = vsel %vm162, %v3957, 0
    %3964 = vmatpush.msra.mxu0 0.0
    %3965 = vmatpush.msra.mxu0 0.0
    %3966 = vmatpush.msra.mxu0 0.0
    %3967 = vmatpush.msra.mxu0 0.0
    %3968 = vmatpush.msra.mxu0 0.0
    %3969 = vmatpush.msra.mxu0 0.0
    %3970 = vmatpush.msra.mxu0 0.0
    %3971 = vmatpush.msra.mxu0 0.0
    %3972 = vmatpush.msra.mxu0 0.0
    %3973 = vmatpush.msra.mxu0 0.0
    %3974 = vmatpush.msra.mxu0 0.0
    %3975 = vmatpush.msra.mxu0 0.0
    %3976 = vmatpush.msra.mxu0 0.0
    %3977 = vmatpush.msra.mxu0 0.0
    %3978 = vmatpush.msra.mxu0 0.0
    %3979 = vmatpush.msra.mxu0 %v3959
    %3980 = vmatmul.f32.gmra.mxu0 %v3962
    %v3981 = vpop.f32.mrf.mxu0
    %v3982 = vadd.f32 0.0, %v3981
    %3983 = vdwg.mxu0
    %v3985 = vsel %vm162, %v3982, 0
    %3987 = vmatpush.msra.mxu0 0.0
    %3988 = vmatpush.msra.mxu0 0.0
    %3989 = vmatpush.msra.mxu0 0.0
    %3990 = vmatpush.msra.mxu0 0.0
    %3991 = vmatpush.msra.mxu0 0.0
    %3992 = vmatpush.msra.mxu0 0.0
    %3993 = vmatpush.msra.mxu0 0.0
    %3994 = vmatpush.msra.mxu0 0.0
    %3995 = vmatpush.msra.mxu0 0.0
    %3996 = vmatpush.msra.mxu0 0.0
    %3997 = vmatpush.msra.mxu0 0.0
    %3998 = vmatpush.msra.mxu0 0.0
    %3999 = vmatpush.msra.mxu0 0.0
    %4000 = vmatpush.msra.mxu0 0.0
    %4001 = vmatpush.msra.mxu0 0.0
    %4002 = vmatpush.msra.mxu0 %v3556
    %4003 = vmatmul.f32.gmra.mxu0 %v3985
    %v4004 = vpop.f32.mrf.mxu0
    %v4005 = vadd.f32 0.0, %v4004
    %4006 = vdwg.mxu0
    %v4007 = vadd.f32 %v3905, %v4005
    %v4008 = vperm.slane %v3557, 0
    %v4009 = vadd.f32 %v4007, %v4008
    %v4011 = vrot.slane %v4009, 1
    %v4012 = vrot.slane %v4009, 2
    %v4013 = vrot.slane %v4009, 3
    %v4014 = vrot.slane %v4009, 4
    %v4015 = vrot.slane %v4009, 5
    %v4016 = vrot.slane %v4009, 6
    %v4017 = vrot.slane %v4009, 7
    %v4026 = vadd.f32 %v3540, %v4009
    %v4027 = vadd.f32 %v3541, %v4011
    %v4028 = vadd.f32 %v3542, %v4012
    %v4029 = vadd.f32 %v3543, %v4013
    %v4030 = vadd.f32 %v3544, %v4014
    %v4031 = vadd.f32 %v3545, %v4015
    %v4032 = vadd.f32 %v3546, %v4016
    %v4033 = vadd.f32 %v3547, %v4017
    %v4034 = vld [vmem:[#allocation7 + $0x30] sm:$0x1]
    %v4035 = vld [vmem:[#allocation7 + $0x31] sm:$0x1]
    %v4044 = vrot.slane %v4027, 7
    %v4045 = vsel %vm116, %v4044, %v4026
    %v4046 = vrot.slane %v4028, 6
    %v4047 = vsel %vm119, %v4046, %v4045
    %v4048 = vrot.slane %v4029, 5
    %v4049 = vsel %vm122, %v4048, %v4047
    %v4050 = vrot.slane %v4030, 4
    %v4051 = vsel %vm125, %v4050, %v4049
    %v4052 = vrot.slane %v4031, 3
    %v4053 = vsel %vm128, %v4052, %v4051
    %v4054 = vrot.slane %v4032, 2
    %v4055 = vsel %vm131, %v4054, %v4053
    %v4056 = vrot.slane %v4033, 1
    %v4057 = vsel %vm134, %v4056, %v4055
    %v4059 = vsel %vm136, %v4057, 0.0
    %4060 = vadd.xlane.f32.xlu0 %v4059
    %v4061 = vpop.xlane.xlu0 %4060
    %v4062 = vmul.f32 %v4061, %v625
    %v4064 = vrot.slane %v4062, 1
    %v4065 = vrot.slane %v4062, 2
    %v4066 = vrot.slane %v4062, 3
    %v4067 = vrot.slane %v4062, 4
    %v4068 = vrot.slane %v4062, 5
    %v4069 = vrot.slane %v4062, 6
    %v4070 = vrot.slane %v4062, 7
    %v4079 = vsub.f32 %v4026, %v4062
    %v4080 = vsub.f32 %v4027, %v4064
    %v4081 = vsub.f32 %v4028, %v4065
    %v4082 = vsub.f32 %v4029, %v4066
    %v4083 = vsub.f32 %v4030, %v4067
    %v4084 = vsub.f32 %v4031, %v4068
    %v4085 = vsub.f32 %v4032, %v4069
    %v4086 = vsub.f32 %v4033, %v4070
    %v4087 = vmul.f32 %v4079, %v4079
    %v4088 = vmul.f32 %v4080, %v4080
    %v4089 = vmul.f32 %v4081, %v4081
    %v4090 = vmul.f32 %v4082, %v4082
    %v4091 = vmul.f32 %v4083, %v4083
    %v4092 = vmul.f32 %v4084, %v4084
    %v4093 = vmul.f32 %v4085, %v4085
    %v4094 = vmul.f32 %v4086, %v4086
    %v4103 = vrot.slane %v4088, 7
    %v4104 = vsel %vm116, %v4103, %v4087
    %v4105 = vrot.slane %v4089, 6
    %v4106 = vsel %vm119, %v4105, %v4104
    %v4107 = vrot.slane %v4090, 5
    %v4108 = vsel %vm122, %v4107, %v4106
    %v4109 = vrot.slane %v4091, 4
    %v4110 = vsel %vm125, %v4109, %v4108
    %v4111 = vrot.slane %v4092, 3
    %v4112 = vsel %vm128, %v4111, %v4110
    %v4113 = vrot.slane %v4093, 2
    %v4114 = vsel %vm131, %v4113, %v4112
    %v4115 = vrot.slane %v4094, 1
    %v4116 = vsel %vm134, %v4115, %v4114
    %v4118 = vsel %vm136, %v4116, 0.0
    %4119 = vadd.xlane.f32.xlu0 %v4118
    %v4120 = vpop.xlane.xlu0 %4119
    %v4121 = vmul.f32 %v4120, %v625
    %v4122 = vadd.f32 %v4121, 1e-05
    %v4123 = vrsqrt.pop %v4122
    %v4124 = vmul.f32 %v4123, %v4122
    %v4125 = vmul.f32 %v4124, %v4123
    %v4126 = vmul.f32 0.5, %v4125
    %v4127 = vsub.f32 1.5, %v4126
    %v4128 = vmul.f32 %v4123, %v4127
    %vm4129 = vweird.f32 %v4122
    %vm4130 = vweird.f32 %v4123
    %vm4131 = vmor %vm4129, %vm4130
    %v4132 = vsel %vm4131, %v4123, %v4128
    %v4134 = vrot.slane %v4132, 1
    %v4135 = vrot.slane %v4132, 2
    %v4136 = vrot.slane %v4132, 3
    %v4137 = vrot.slane %v4132, 4
    %v4138 = vrot.slane %v4132, 5
    %v4139 = vrot.slane %v4132, 6
    %v4140 = vrot.slane %v4132, 7
    %v4149 = vmul.f32 %v4079, %v4132
    %v4150 = vmul.f32 %v4080, %v4134
    %v4151 = vmul.f32 %v4081, %v4135
    %v4152 = vmul.f32 %v4082, %v4136
    %v4153 = vmul.f32 %v4083, %v4137
    %v4154 = vmul.f32 %v4084, %v4138
    %v4155 = vmul.f32 %v4085, %v4139
    %v4156 = vmul.f32 %v4086, %v4140
    %v4157 = vperm.slane %v4034, 0
    %v4158 = vmul.f32 %v4149, %v4157
    %v4159 = vmul.f32 %v4150, %v4157
    %v4160 = vmul.f32 %v4151, %v4157
    %v4161 = vmul.f32 %v4152, %v4157
    %v4162 = vmul.f32 %v4153, %v4157
    %v4163 = vmul.f32 %v4154, %v4157
    %v4164 = vmul.f32 %v4155, %v4157
    %v4165 = vmul.f32 %v4156, %v4157
    %v4166 = vperm.slane %v4035, 0
    %v4167 = vadd.f32 %v4158, %v4166
    %v4168 = vadd.f32 %v4159, %v4166
    %v4169 = vadd.f32 %v4160, %v4166
    %v4170 = vadd.f32 %v4161, %v4166
    %v4171 = vadd.f32 %v4162, %v4166
    %v4172 = vadd.f32 %v4163, %v4166
    %v4173 = vadd.f32 %v4164, %v4166
    %v4174 = vadd.f32 %v4165, %v4166
    %v4175 = vld [vmem:[#allocation5 + $0x260] sm:$0xff]
    %v4176 = vld [vmem:[#allocation5 + $0x268] sm:$0xff]
    %v4177 = vld [vmem:[#allocation5 + $0x270] sm:$0xff]
    %v4178 = vld [vmem:[#allocation5 + $0x278] sm:$0xff]
    %v4179 = vld [vmem:[#allocation7 + $0x32] sm:$0x1]
    %v4180 = vld [vmem:[#allocation5 + $0x280] sm:$0xff]
    %v4181 = vld [vmem:[#allocation5 + $0x288] sm:$0xff]
    %v4182 = vld [vmem:[#allocation5 + $0x290] sm:$0xff]
    %v4183 = vld [vmem:[#allocation5 + $0x298] sm:$0xff]
    %v4184 = vld [vmem:[#allocation7 + $0x33] sm:$0x1]
    %v4185 = vperm.slane %v4179, 0
    %v4194 = vrot.slane %v4168, 7
    %v4195 = vsel %vm116, %v4194, %v4167
    %v4196 = vrot.slane %v4169, 6
    %v4197 = vsel %vm119, %v4196, %v4195
    %v4198 = vrot.slane %v4170, 5
    %v4199 = vsel %vm122, %v4198, %v4197
    %v4200 = vrot.slane %v4171, 4
    %v4201 = vsel %vm125, %v4200, %v4199
    %v4202 = vrot.slane %v4172, 3
    %v4203 = vsel %vm128, %v4202, %v4201
    %v4204 = vrot.slane %v4173, 2
    %v4205 = vsel %vm131, %v4204, %v4203
    %v4206 = vrot.slane %v4174, 1
    %v4207 = vsel %vm134, %v4206, %v4205
    %v4208 = vsel %vm136, %v4207, 0
    %4210 = vmatpush.msra.mxu0 0.0
    %4211 = vmatpush.msra.mxu0 0.0
    %4212 = vmatpush.msra.mxu0 0.0
    %4213 = vmatpush.msra.mxu0 0.0
    %4214 = vmatpush.msra.mxu0 0.0
    %4215 = vmatpush.msra.mxu0 0.0
    %4216 = vmatpush.msra.mxu0 0.0
    %4217 = vmatpush.msra.mxu0 0.0
    %4218 = vmatpush.msra.mxu0 0.0
    %4219 = vmatpush.msra.mxu0 0.0
    %4220 = vmatpush.msra.mxu0 0.0
    %4221 = vmatpush.msra.mxu0 0.0
    %4222 = vmatpush.msra.mxu0 %v4178
    %4223 = vmatpush.msra.mxu0 %v4177
    %4224 = vmatpush.msra.mxu0 %v4176
    %4225 = vmatpush.msra.mxu0 %v4175
    %4226 = vmatmul.f32.gmra.mxu0 %v4208
    %v4227 = vpop.f32.mrf.mxu0
    %v4228 = vadd.f32 %v4185, %v4227
    %4229 = vdwg.mxu0
    %4234 = vrot.lane.b32.xlu0 %v4175, 96
    %v4235 = vpop.permute.xlu0 %4234
    %4236 = vrot.lane.b32.xlu0 %v4176, 96
    %v4237 = vpop.permute.xlu0 %4236
    %4238 = vrot.lane.b32.xlu0 %v4177, 96
    %v4239 = vpop.permute.xlu0 %4238
    %4240 = vrot.lane.b32.xlu0 %v4178, 96
    %v4241 = vpop.permute.xlu0 %4240
    %4247 = vrot.lane.b32.xlu0 %v4185, 96
    %v4248 = vpop.permute.xlu0 %4247
    %4250 = vmatpush.msra.mxu0 0.0
    %4251 = vmatpush.msra.mxu0 0.0
    %4252 = vmatpush.msra.mxu0 0.0
    %4253 = vmatpush.msra.mxu0 0.0
    %4254 = vmatpush.msra.mxu0 0.0
    %4255 = vmatpush.msra.mxu0 0.0
    %4256 = vmatpush.msra.mxu0 0.0
    %4257 = vmatpush.msra.mxu0 0.0
    %4258 = vmatpush.msra.mxu0 0.0
    %4259 = vmatpush.msra.mxu0 0.0
    %4260 = vmatpush.msra.mxu0 0.0
    %4261 = vmatpush.msra.mxu0 0.0
    %4262 = vmatpush.msra.mxu0 %v4241
    %4263 = vmatpush.msra.mxu0 %v4239
    %4264 = vmatpush.msra.mxu0 %v4237
    %4265 = vmatpush.msra.mxu0 %v4235
    %4266 = vmatmul.f32.gmra.mxu0 %v2706
    %v4267 = vpop.f32.mrf.mxu0
    %v4268 = vadd.f32 %v4248, %v4267
    %4269 = vdwg.mxu0
    %v4271 = vsel %vm162, %v4228, 0
    %v4274 = vsel %vm162, %v4268, 0
    %4276 = vmatpush.xpose.msra.mxu0 0.0
    %4277 = vmatpush.xpose.msra.mxu0 0.0
    %4278 = vmatpush.xpose.msra.mxu0 0.0
    %4279 = vmatpush.xpose.msra.mxu0 0.0
    %4280 = vmatpush.xpose.msra.mxu0 0.0
    %4281 = vmatpush.xpose.msra.mxu0 0.0
    %4282 = vmatpush.xpose.msra.mxu0 0.0
    %4283 = vmatpush.xpose.msra.mxu0 0.0
    %4284 = vmatpush.xpose.msra.mxu0 0.0
    %4285 = vmatpush.xpose.msra.mxu0 0.0
    %4286 = vmatpush.xpose.msra.mxu0 0.0
    %4287 = vmatpush.xpose.msra.mxu0 0.0
    %4288 = vmatpush.xpose.msra.mxu0 0.0
    %4289 = vmatpush.xpose.msra.mxu0 0.0
    %4290 = vmatpush.xpose.msra.mxu0 0.0
    %4291 = vmatpush.xpose.msra.mxu0 %v4274
    %4292 = vmatmul.f32.gmra.mxu0 %v4271
    %v4293 = vpop.f32.mrf.mxu0
    %v4294 = vadd.f32 0.0, %v4293
    %4295 = vdwg.mxu0
    %v4296 = vsel %vm162, %v4294, -inf
    %4297 = vmax.xlane.f32.xlu0 %v4296
    %v4298 = vpop.xlane.xlu0 %4297
    %v4299 = vsub.f32 %v4294, %v4298
    %v4300 = vmul.f32 %v4299, 1.442695
    %v4301 = vpow.pop %v4300
    %v4302 = vsel %vm162, %v4301, 0.0
    %4303 = vadd.xlane.f32.xlu0 %v4302
    %v4304 = vpop.xlane.xlu0 %4303
    %v4305 = vrcp.pop %v4304
    %v4306 = vmul.f32 %v4304, %v4305
    %v4307 = vsub.f32 1.0, %v4306
    %v4308 = vmul.f32 %v4305, %v4307
    %v4309 = vadd.f32 %v4305, %v4308
    %vm4310 = vweird.f32 %v4304
    %vm4311 = vweird.f32 %v4305
    %vm4312 = vmor %vm4310, %vm4311
    %v4313 = vsel %vm4312, %v4305, %v4309
    %v4314 = vand.u32 2147483647, %v4304
    %vm4315 = vcmp.eq.f32.partialorder %v4314, 8.507059e+37
    %v4316 = vand.u32 %v4304, 2147483648
    %v4317 = vor.u32 1.1754944e-38, %v4316
    %v4318 = vsel %vm4315, %v4317, %v4313
    %v4319 = vmul.f32 %v4301, %v4318
    %4320 = vrot.lane.b32.xlu0 %v4268, 96
    %v4321 = vpop.permute.xlu0 %4320
    %v4324 = vsel %vm162, %v4319, 0
    %4326 = vmatpush.msra.mxu0 0.0
    %4327 = vmatpush.msra.mxu0 0.0
    %4328 = vmatpush.msra.mxu0 0.0
    %4329 = vmatpush.msra.mxu0 0.0
    %4330 = vmatpush.msra.mxu0 0.0
    %4331 = vmatpush.msra.mxu0 0.0
    %4332 = vmatpush.msra.mxu0 0.0
    %4333 = vmatpush.msra.mxu0 0.0
    %4334 = vmatpush.msra.mxu0 0.0
    %4335 = vmatpush.msra.mxu0 0.0
    %4336 = vmatpush.msra.mxu0 0.0
    %4337 = vmatpush.msra.mxu0 0.0
    %4338 = vmatpush.msra.mxu0 0.0
    %4339 = vmatpush.msra.mxu0 0.0
    %4340 = vmatpush.msra.mxu0 0.0
    %4341 = vmatpush.msra.mxu0 %v4321
    %4342 = vmatmul.f32.gmra.mxu0 %v4324
    %v4343 = vpop.f32.mrf.mxu0
    %v4344 = vadd.f32 0.0, %v4343
    %4345 = vdwg.mxu0
    %4346 = vrot.lane.b32.xlu0 %v4228, 120
    %v4347 = vpop.permute.xlu0 %4346
    %4348 = vrot.lane.b32.xlu0 %v4268, 120
    %v4349 = vpop.permute.xlu0 %4348
    %v4350 = vsel %vm162, %v4347, 0
    %v4352 = vsel %vm162, %v4349, 0
    %4354 = vmatpush.xpose.msra.mxu0 0.0
    %4355 = vmatpush.xpose.msra.mxu0 0.0
    %4356 = vmatpush.xpose.msra.mxu0 0.0
    %4357 = vmatpush.xpose.msra.mxu0 0.0
    %4358 = vmatpush.xpose.msra.mxu0 0.0
    %4359 = vmatpush.xpose.msra.mxu0 0.0
    %4360 = vmatpush.xpose.msra.mxu0 0.0
    %4361 = vmatpush.xpose.msra.mxu0 0.0
    %4362 = vmatpush.xpose.msra.mxu0 0.0
    %4363 = vmatpush.xpose.msra.mxu0 0.0
    %4364 = vmatpush.xpose.msra.mxu0 0.0
    %4365 = vmatpush.xpose.msra.mxu0 0.0
    %4366 = vmatpush.xpose.msra.mxu0 0.0
    %4367 = vmatpush.xpose.msra.mxu0 0.0
    %4368 = vmatpush.xpose.msra.mxu0 0.0
    %4369 = vmatpush.xpose.msra.mxu0 %v4352
    %4370 = vmatmul.f32.gmra.mxu0 %v4350
    %v4371 = vpop.f32.mrf.mxu0
    %v4372 = vadd.f32 0.0, %v4371
    %4373 = vdwg.mxu0
    %v4374 = vsel %vm162, %v4372, -inf
    %4375 = vmax.xlane.f32.xlu0 %v4374
    %v4376 = vpop.xlane.xlu0 %4375
    %v4377 = vsub.f32 %v4372, %v4376
    %v4378 = vmul.f32 %v4377, 1.442695
    %v4379 = vpow.pop %v4378
    %v4380 = vsel %vm162, %v4379, 0.0
    %4381 = vadd.xlane.f32.xlu0 %v4380
    %v4382 = vpop.xlane.xlu0 %4381
    %v4383 = vrcp.pop %v4382
    %v4384 = vmul.f32 %v4382, %v4383
    %v4385 = vsub.f32 1.0, %v4384
    %v4386 = vmul.f32 %v4383, %v4385
    %v4387 = vadd.f32 %v4383, %v4386
    %vm4388 = vweird.f32 %v4382
    %vm4389 = vweird.f32 %v4383
    %vm4390 = vmor %vm4388, %vm4389
    %v4391 = vsel %vm4390, %v4383, %v4387
    %v4392 = vand.u32 2147483647, %v4382
    %vm4393 = vcmp.eq.f32.partialorder %v4392, 8.507059e+37
    %v4394 = vand.u32 %v4382, 2147483648
    %v4395 = vor.u32 1.1754944e-38, %v4394
    %v4396 = vsel %vm4393, %v4395, %v4391
    %v4397 = vmul.f32 %v4379, %v4396
    %4398 = vrot.lane.b32.xlu0 %v4268, 88
    %v4399 = vpop.permute.xlu0 %4398
    %v4402 = vsel %vm162, %v4397, 0
    %4404 = vmatpush.msra.mxu0 0.0
    %4405 = vmatpush.msra.mxu0 0.0
    %4406 = vmatpush.msra.mxu0 0.0
    %4407 = vmatpush.msra.mxu0 0.0
    %4408 = vmatpush.msra.mxu0 0.0
    %4409 = vmatpush.msra.mxu0 0.0
    %4410 = vmatpush.msra.mxu0 0.0
    %4411 = vmatpush.msra.mxu0 0.0
    %4412 = vmatpush.msra.mxu0 0.0
    %4413 = vmatpush.msra.mxu0 0.0
    %4414 = vmatpush.msra.mxu0 0.0
    %4415 = vmatpush.msra.mxu0 0.0
    %4416 = vmatpush.msra.mxu0 0.0
    %4417 = vmatpush.msra.mxu0 0.0
    %4418 = vmatpush.msra.mxu0 0.0
    %4419 = vmatpush.msra.mxu0 %v4399
    %4420 = vmatmul.f32.gmra.mxu0 %v4402
    %v4421 = vpop.f32.mrf.mxu0
    %v4422 = vadd.f32 0.0, %v4421
    %4423 = vdwg.mxu0
    %v4425 = vsel %vm162, %v4422, 0
    %4427 = vmatpush.msra.mxu0 0.0
    %4428 = vmatpush.msra.mxu0 0.0
    %4429 = vmatpush.msra.mxu0 0.0
    %4430 = vmatpush.msra.mxu0 0.0
    %4431 = vmatpush.msra.mxu0 0.0
    %4432 = vmatpush.msra.mxu0 0.0
    %4433 = vmatpush.msra.mxu0 0.0
    %4434 = vmatpush.msra.mxu0 0.0
    %4435 = vmatpush.msra.mxu0 0.0
    %4436 = vmatpush.msra.mxu0 0.0
    %4437 = vmatpush.msra.mxu0 0.0
    %4438 = vmatpush.msra.mxu0 0.0
    %4439 = vmatpush.msra.mxu0 0.0
    %4440 = vmatpush.msra.mxu0 0.0
    %4441 = vmatpush.msra.mxu0 0.0
    %4442 = vmatpush.msra.mxu0 %v4181
    %4443 = vmatmul.f32.gmra.mxu0 %v4425
    %v4444 = vpop.f32.mrf.mxu0
    %v4445 = vadd.f32 0.0, %v4444
    %4446 = vdwg.mxu0
    %v4448 = vsel %vm162, %v4344, 0
    %4450 = vmatpush.msra.mxu0 0.0
    %4451 = vmatpush.msra.mxu0 0.0
    %4452 = vmatpush.msra.mxu0 0.0
    %4453 = vmatpush.msra.mxu0 0.0
    %4454 = vmatpush.msra.mxu0 0.0
    %4455 = vmatpush.msra.mxu0 0.0
    %4456 = vmatpush.msra.mxu0 0.0
    %4457 = vmatpush.msra.mxu0 0.0
    %4458 = vmatpush.msra.mxu0 0.0
    %4459 = vmatpush.msra.mxu0 0.0
    %4460 = vmatpush.msra.mxu0 0.0
    %4461 = vmatpush.msra.mxu0 0.0
    %4462 = vmatpush.msra.mxu0 0.0
    %4463 = vmatpush.msra.mxu0 0.0
    %4464 = vmatpush.msra.mxu0 0.0
    %4465 = vmatpush.msra.mxu0 %v4180
    %4466 = vmatmul.f32.gmra.mxu0 %v4448
    %v4467 = vpop.f32.mrf.mxu0
    %v4468 = vadd.f32 %v4445, %v4467
    %4469 = vdwg.mxu0
    %4470 = vrot.lane.b32.xlu0 %v4228, 112
    %v4471 = vpop.permute.xlu0 %4470
    %4472 = vrot.lane.b32.xlu0 %v4268, 112
    %v4473 = vpop.permute.xlu0 %4472
    %v4474 = vsel %vm162, %v4471, 0
    %v4476 = vsel %vm162, %v4473, 0
    %4478 = vmatpush.xpose.msra.mxu0 0.0
    %4479 = vmatpush.xpose.msra.mxu0 0.0
    %4480 = vmatpush.xpose.msra.mxu0 0.0
    %4481 = vmatpush.xpose.msra.mxu0 0.0
    %4482 = vmatpush.xpose.msra.mxu0 0.0
    %4483 = vmatpush.xpose.msra.mxu0 0.0
    %4484 = vmatpush.xpose.msra.mxu0 0.0
    %4485 = vmatpush.xpose.msra.mxu0 0.0
    %4486 = vmatpush.xpose.msra.mxu0 0.0
    %4487 = vmatpush.xpose.msra.mxu0 0.0
    %4488 = vmatpush.xpose.msra.mxu0 0.0
    %4489 = vmatpush.xpose.msra.mxu0 0.0
    %4490 = vmatpush.xpose.msra.mxu0 0.0
    %4491 = vmatpush.xpose.msra.mxu0 0.0
    %4492 = vmatpush.xpose.msra.mxu0 0.0
    %4493 = vmatpush.xpose.msra.mxu0 %v4476
    %4494 = vmatmul.f32.gmra.mxu0 %v4474
    %v4495 = vpop.f32.mrf.mxu0
    %v4496 = vadd.f32 0.0, %v4495
    %4497 = vdwg.mxu0
    %v4498 = vsel %vm162, %v4496, -inf
    %4499 = vmax.xlane.f32.xlu0 %v4498
    %v4500 = vpop.xlane.xlu0 %4499
    %v4501 = vsub.f32 %v4496, %v4500
    %v4502 = vmul.f32 %v4501, 1.442695
    %v4503 = vpow.pop %v4502
    %v4504 = vsel %vm162, %v4503, 0.0
    %4505 = vadd.xlane.f32.xlu0 %v4504
    %v4506 = vpop.xlane.xlu0 %4505
    %v4507 = vrcp.pop %v4506
    %v4508 = vmul.f32 %v4506, %v4507
    %v4509 = vsub.f32 1.0, %v4508
    %v4510 = vmul.f32 %v4507, %v4509
    %v4511 = vadd.f32 %v4507, %v4510
    %vm4512 = vweird.f32 %v4506
    %vm4513 = vweird.f32 %v4507
    %vm4514 = vmor %vm4512, %vm4513
    %v4515 = vsel %vm4514, %v4507, %v4511
    %v4516 = vand.u32 2147483647, %v4506
    %vm4517 = vcmp.eq.f32.partialorder %v4516, 8.507059e+37
    %v4518 = vand.u32 %v4506, 2147483648
    %v4519 = vor.u32 1.1754944e-38, %v4518
    %v4520 = vsel %vm4517, %v4519, %v4515
    %v4521 = vmul.f32 %v4503, %v4520
    %4522 = vrot.lane.b32.xlu0 %v4268, 80
    %v4523 = vpop.permute.xlu0 %4522
    %v4526 = vsel %vm162, %v4521, 0
    %4528 = vmatpush.msra.mxu0 0.0
    %4529 = vmatpush.msra.mxu0 0.0
    %4530 = vmatpush.msra.mxu0 0.0
    %4531 = vmatpush.msra.mxu0 0.0
    %4532 = vmatpush.msra.mxu0 0.0
    %4533 = vmatpush.msra.mxu0 0.0
    %4534 = vmatpush.msra.mxu0 0.0
    %4535 = vmatpush.msra.mxu0 0.0
    %4536 = vmatpush.msra.mxu0 0.0
    %4537 = vmatpush.msra.mxu0 0.0
    %4538 = vmatpush.msra.mxu0 0.0
    %4539 = vmatpush.msra.mxu0 0.0
    %4540 = vmatpush.msra.mxu0 0.0
    %4541 = vmatpush.msra.mxu0 0.0
    %4542 = vmatpush.msra.mxu0 0.0
    %4543 = vmatpush.msra.mxu0 %v4523
    %4544 = vmatmul.f32.gmra.mxu0 %v4526
    %v4545 = vpop.f32.mrf.mxu0
    %v4546 = vadd.f32 0.0, %v4545
    %4547 = vdwg.mxu0
    %v4549 = vsel %vm162, %v4546, 0
    %4551 = vmatpush.msra.mxu0 0.0
    %4552 = vmatpush.msra.mxu0 0.0
    %4553 = vmatpush.msra.mxu0 0.0
    %4554 = vmatpush.msra.mxu0 0.0
    %4555 = vmatpush.msra.mxu0 0.0
    %4556 = vmatpush.msra.mxu0 0.0
    %4557 = vmatpush.msra.mxu0 0.0
    %4558 = vmatpush.msra.mxu0 0.0
    %4559 = vmatpush.msra.mxu0 0.0
    %4560 = vmatpush.msra.mxu0 0.0
    %4561 = vmatpush.msra.mxu0 0.0
    %4562 = vmatpush.msra.mxu0 0.0
    %4563 = vmatpush.msra.mxu0 0.0
    %4564 = vmatpush.msra.mxu0 0.0
    %4565 = vmatpush.msra.mxu0 0.0
    %4566 = vmatpush.msra.mxu0 %v4182
    %4567 = vmatmul.f32.gmra.mxu0 %v4549
    %v4568 = vpop.f32.mrf.mxu0
    %v4569 = vadd.f32 0.0, %v4568
    %4570 = vdwg.mxu0
    %v4571 = vadd.f32 %v4468, %v4569
    %4572 = vrot.lane.b32.xlu0 %v4228, 104
    %v4573 = vpop.permute.xlu0 %4572
    %4574 = vrot.lane.b32.xlu0 %v4268, 104
    %v4575 = vpop.permute.xlu0 %4574
    %v4576 = vsel %vm162, %v4573, 0
    %v4578 = vsel %vm162, %v4575, 0
    %4580 = vmatpush.xpose.msra.mxu0 0.0
    %4581 = vmatpush.xpose.msra.mxu0 0.0
    %4582 = vmatpush.xpose.msra.mxu0 0.0
    %4583 = vmatpush.xpose.msra.mxu0 0.0
    %4584 = vmatpush.xpose.msra.mxu0 0.0
    %4585 = vmatpush.xpose.msra.mxu0 0.0
    %4586 = vmatpush.xpose.msra.mxu0 0.0
    %4587 = vmatpush.xpose.msra.mxu0 0.0
    %4588 = vmatpush.xpose.msra.mxu0 0.0
    %4589 = vmatpush.xpose.msra.mxu0 0.0
    %4590 = vmatpush.xpose.msra.mxu0 0.0
    %4591 = vmatpush.xpose.msra.mxu0 0.0
    %4592 = vmatpush.xpose.msra.mxu0 0.0
    %4593 = vmatpush.xpose.msra.mxu0 0.0
    %4594 = vmatpush.xpose.msra.mxu0 0.0
    %4595 = vmatpush.xpose.msra.mxu0 %v4578
    %4596 = vmatmul.f32.gmra.mxu0 %v4576
    %v4597 = vpop.f32.mrf.mxu0
    %v4598 = vadd.f32 0.0, %v4597
    %4599 = vdwg.mxu0
    %v4600 = vsel %vm162, %v4598, -inf
    %4601 = vmax.xlane.f32.xlu0 %v4600
    %v4602 = vpop.xlane.xlu0 %4601
    %v4603 = vsub.f32 %v4598, %v4602
    %v4604 = vmul.f32 %v4603, 1.442695
    %v4605 = vpow.pop %v4604
    %v4606 = vsel %vm162, %v4605, 0.0
    %4607 = vadd.xlane.f32.xlu0 %v4606
    %v4608 = vpop.xlane.xlu0 %4607
    %v4609 = vrcp.pop %v4608
    %v4610 = vmul.f32 %v4608, %v4609
    %v4611 = vsub.f32 1.0, %v4610
    %v4612 = vmul.f32 %v4609, %v4611
    %v4613 = vadd.f32 %v4609, %v4612
    %vm4614 = vweird.f32 %v4608
    %vm4615 = vweird.f32 %v4609
    %vm4616 = vmor %vm4614, %vm4615
    %v4617 = vsel %vm4616, %v4609, %v4613
    %v4618 = vand.u32 2147483647, %v4608
    %vm4619 = vcmp.eq.f32.partialorder %v4618, 8.507059e+37
    %v4620 = vand.u32 %v4608, 2147483648
    %v4621 = vor.u32 1.1754944e-38, %v4620
    %v4622 = vsel %vm4619, %v4621, %v4617
    %v4623 = vmul.f32 %v4605, %v4622
    %4624 = vrot.lane.b32.xlu0 %v4268, 72
    %v4625 = vpop.permute.xlu0 %4624
    %v4628 = vsel %vm162, %v4623, 0
    %4630 = vmatpush.msra.mxu0 0.0
    %4631 = vmatpush.msra.mxu0 0.0
    %4632 = vmatpush.msra.mxu0 0.0
    %4633 = vmatpush.msra.mxu0 0.0
    %4634 = vmatpush.msra.mxu0 0.0
    %4635 = vmatpush.msra.mxu0 0.0
    %4636 = vmatpush.msra.mxu0 0.0
    %4637 = vmatpush.msra.mxu0 0.0
    %4638 = vmatpush.msra.mxu0 0.0
    %4639 = vmatpush.msra.mxu0 0.0
    %4640 = vmatpush.msra.mxu0 0.0
    %4641 = vmatpush.msra.mxu0 0.0
    %4642 = vmatpush.msra.mxu0 0.0
    %4643 = vmatpush.msra.mxu0 0.0
    %4644 = vmatpush.msra.mxu0 0.0
    %4645 = vmatpush.msra.mxu0 %v4625
    %4646 = vmatmul.f32.gmra.mxu0 %v4628
    %v4647 = vpop.f32.mrf.mxu0
    %v4648 = vadd.f32 0.0, %v4647
    %4649 = vdwg.mxu0
    %v4651 = vsel %vm162, %v4648, 0
    %4653 = vmatpush.msra.mxu0 0.0
    %4654 = vmatpush.msra.mxu0 0.0
    %4655 = vmatpush.msra.mxu0 0.0
    %4656 = vmatpush.msra.mxu0 0.0
    %4657 = vmatpush.msra.mxu0 0.0
    %4658 = vmatpush.msra.mxu0 0.0
    %4659 = vmatpush.msra.mxu0 0.0
    %4660 = vmatpush.msra.mxu0 0.0
    %4661 = vmatpush.msra.mxu0 0.0
    %4662 = vmatpush.msra.mxu0 0.0
    %4663 = vmatpush.msra.mxu0 0.0
    %4664 = vmatpush.msra.mxu0 0.0
    %4665 = vmatpush.msra.mxu0 0.0
    %4666 = vmatpush.msra.mxu0 0.0
    %4667 = vmatpush.msra.mxu0 0.0
    %4668 = vmatpush.msra.mxu0 %v4183
    %4669 = vmatmul.f32.gmra.mxu0 %v4651
    %v4670 = vpop.f32.mrf.mxu0
    %v4671 = vadd.f32 0.0, %v4670
    %4672 = vdwg.mxu0
    %v4673 = vadd.f32 %v4571, %v4671
    %v4674 = vperm.slane %v4184, 0
    %v4675 = vadd.f32 %v4673, %v4674
    %v4677 = vrot.slane %v4675, 1
    %v4678 = vrot.slane %v4675, 2
    %v4679 = vrot.slane %v4675, 3
    %v4680 = vrot.slane %v4675, 4
    %v4681 = vrot.slane %v4675, 5
    %v4682 = vrot.slane %v4675, 6
    %v4683 = vrot.slane %v4675, 7
    %v4692 = vadd.f32 %v4167, %v4675
    %v4693 = vadd.f32 %v4168, %v4677
    %v4694 = vadd.f32 %v4169, %v4678
    %v4695 = vadd.f32 %v4170, %v4679
    %v4696 = vadd.f32 %v4171, %v4680
    %v4697 = vadd.f32 %v4172, %v4681
    %v4698 = vadd.f32 %v4173, %v4682
    %v4699 = vadd.f32 %v4174, %v4683
    %v4700 = vld [vmem:[#allocation7 + $0x34] sm:$0x1]
    %v4701 = vld [vmem:[#allocation7 + $0x35] sm:$0x1]
    %v4710 = vrot.slane %v4693, 7
    %v4711 = vsel %vm116, %v4710, %v4692
    %v4712 = vrot.slane %v4694, 6
    %v4713 = vsel %vm119, %v4712, %v4711
    %v4714 = vrot.slane %v4695, 5
    %v4715 = vsel %vm122, %v4714, %v4713
    %v4716 = vrot.slane %v4696, 4
    %v4717 = vsel %vm125, %v4716, %v4715
    %v4718 = vrot.slane %v4697, 3
    %v4719 = vsel %vm128, %v4718, %v4717
    %v4720 = vrot.slane %v4698, 2
    %v4721 = vsel %vm131, %v4720, %v4719
    %v4722 = vrot.slane %v4699, 1
    %v4723 = vsel %vm134, %v4722, %v4721
    %v4725 = vsel %vm136, %v4723, 0.0
    %4726 = vadd.xlane.f32.xlu0 %v4725
    %v4727 = vpop.xlane.xlu0 %4726
    %v4728 = vmul.f32 %v4727, %v625
    %v4730 = vrot.slane %v4728, 1
    %v4731 = vrot.slane %v4728, 2
    %v4732 = vrot.slane %v4728, 3
    %v4733 = vrot.slane %v4728, 4
    %v4734 = vrot.slane %v4728, 5
    %v4735 = vrot.slane %v4728, 6
    %v4736 = vrot.slane %v4728, 7
    %v4745 = vsub.f32 %v4692, %v4728
    %v4746 = vsub.f32 %v4693, %v4730
    %v4747 = vsub.f32 %v4694, %v4731
    %v4748 = vsub.f32 %v4695, %v4732
    %v4749 = vsub.f32 %v4696, %v4733
    %v4750 = vsub.f32 %v4697, %v4734
    %v4751 = vsub.f32 %v4698, %v4735
    %v4752 = vsub.f32 %v4699, %v4736
    %v4753 = vmul.f32 %v4745, %v4745
    %v4754 = vmul.f32 %v4746, %v4746
    %v4755 = vmul.f32 %v4747, %v4747
    %v4756 = vmul.f32 %v4748, %v4748
    %v4757 = vmul.f32 %v4749, %v4749
    %v4758 = vmul.f32 %v4750, %v4750
    %v4759 = vmul.f32 %v4751, %v4751
    %v4760 = vmul.f32 %v4752, %v4752
    %v4769 = vrot.slane %v4754, 7
    %v4770 = vsel %vm116, %v4769, %v4753
    %v4771 = vrot.slane %v4755, 6
    %v4772 = vsel %vm119, %v4771, %v4770
    %v4773 = vrot.slane %v4756, 5
    %v4774 = vsel %vm122, %v4773, %v4772
    %v4775 = vrot.slane %v4757, 4
    %v4776 = vsel %vm125, %v4775, %v4774
    %v4777 = vrot.slane %v4758, 3
    %v4778 = vsel %vm128, %v4777, %v4776
    %v4779 = vrot.slane %v4759, 2
    %v4780 = vsel %vm131, %v4779, %v4778
    %v4781 = vrot.slane %v4760, 1
    %v4782 = vsel %vm134, %v4781, %v4780
    %v4784 = vsel %vm136, %v4782, 0.0
    %4785 = vadd.xlane.f32.xlu0 %v4784
    %v4786 = vpop.xlane.xlu0 %4785
    %v4787 = vmul.f32 %v4786, %v625
    %v4788 = vadd.f32 %v4787, 1e-05
    %v4789 = vrsqrt.pop %v4788
    %v4790 = vmul.f32 %v4789, %v4788
    %v4791 = vmul.f32 %v4790, %v4789
    %v4792 = vmul.f32 0.5, %v4791
    %v4793 = vsub.f32 1.5, %v4792
    %v4794 = vmul.f32 %v4789, %v4793
    %vm4795 = vweird.f32 %v4788
    %vm4796 = vweird.f32 %v4789
    %vm4797 = vmor %vm4795, %vm4796
    %v4798 = vsel %vm4797, %v4789, %v4794
    %v4800 = vrot.slane %v4798, 1
    %v4801 = vrot.slane %v4798, 2
    %v4802 = vrot.slane %v4798, 3
    %v4803 = vrot.slane %v4798, 4
    %v4804 = vrot.slane %v4798, 5
    %v4805 = vrot.slane %v4798, 6
    %v4806 = vrot.slane %v4798, 7
    %v4815 = vmul.f32 %v4745, %v4798
    %v4816 = vmul.f32 %v4746, %v4800
    %v4817 = vmul.f32 %v4747, %v4801
    %v4818 = vmul.f32 %v4748, %v4802
    %v4819 = vmul.f32 %v4749, %v4803
    %v4820 = vmul.f32 %v4750, %v4804
    %v4821 = vmul.f32 %v4751, %v4805
    %v4822 = vmul.f32 %v4752, %v4806
    %v4823 = vperm.slane %v4700, 0
    %v4824 = vmul.f32 %v4815, %v4823
    %v4825 = vmul.f32 %v4816, %v4823
    %v4826 = vmul.f32 %v4817, %v4823
    %v4827 = vmul.f32 %v4818, %v4823
    %v4828 = vmul.f32 %v4819, %v4823
    %v4829 = vmul.f32 %v4820, %v4823
    %v4830 = vmul.f32 %v4821, %v4823
    %v4831 = vmul.f32 %v4822, %v4823
    %v4832 = vperm.slane %v4701, 0
    %v4833 = vadd.f32 %v4824, %v4832
    %v4834 = vadd.f32 %v4825, %v4832
    %v4835 = vadd.f32 %v4826, %v4832
    %v4836 = vadd.f32 %v4827, %v4832
    %v4837 = vadd.f32 %v4828, %v4832
    %v4838 = vadd.f32 %v4829, %v4832
    %v4839 = vadd.f32 %v4830, %v4832
    %v4840 = vadd.f32 %v4831, %v4832
    %v4841 = vld [vmem:[#allocation5 + $0x2a0] sm:$0xff]
    %v4842 = vld [vmem:[#allocation5 + $0x2a8] sm:$0xff]
    %v4843 = vld [vmem:[#allocation5 + $0x2b0] sm:$0xff]
    %v4844 = vld [vmem:[#allocation5 + $0x2b8] sm:$0xff]
    %v4845 = vld [vmem:[#allocation7 + $0x36] sm:$0x1]
    %v4846 = vld [vmem:[#allocation5 + $0x2c0] sm:$0xff]
    %v4847 = vld [vmem:[#allocation5 + $0x2c8] sm:$0xff]
    %v4848 = vld [vmem:[#allocation5 + $0x2d0] sm:$0xff]
    %v4849 = vld [vmem:[#allocation5 + $0x2d8] sm:$0xff]
    %v4850 = vld [vmem:[#allocation5 + $0x2e0] sm:$0xff]
    %v4851 = vld [vmem:[#allocation5 + $0x2e8] sm:$0xff]
    %v4852 = vld [vmem:[#allocation5 + $0x2f0] sm:$0xff]
    %v4853 = vld [vmem:[#allocation5 + $0x2f8] sm:$0xff]
    %v4854 = vld [vmem:[#allocation7 + $0x37] sm:$0x1]
    %v4855 = vperm.slane %v4845, 0
    %v4864 = vrot.slane %v4834, 7
    %v4865 = vsel %vm116, %v4864, %v4833
    %v4866 = vrot.slane %v4835, 6
    %v4867 = vsel %vm119, %v4866, %v4865
    %v4868 = vrot.slane %v4836, 5
    %v4869 = vsel %vm122, %v4868, %v4867
    %v4870 = vrot.slane %v4837, 4
    %v4871 = vsel %vm125, %v4870, %v4869
    %v4872 = vrot.slane %v4838, 3
    %v4873 = vsel %vm128, %v4872, %v4871
    %v4874 = vrot.slane %v4839, 2
    %v4875 = vsel %vm131, %v4874, %v4873
    %v4876 = vrot.slane %v4840, 1
    %v4877 = vsel %vm134, %v4876, %v4875
    %v4878 = vsel %vm136, %v4877, 0
    %4880 = vmatpush.msra.mxu0 0.0
    %4881 = vmatpush.msra.mxu0 0.0
    %4882 = vmatpush.msra.mxu0 0.0
    %4883 = vmatpush.msra.mxu0 0.0
    %4884 = vmatpush.msra.mxu0 0.0
    %4885 = vmatpush.msra.mxu0 0.0
    %4886 = vmatpush.msra.mxu0 0.0
    %4887 = vmatpush.msra.mxu0 0.0
    %4888 = vmatpush.msra.mxu0 0.0
    %4889 = vmatpush.msra.mxu0 0.0
    %4890 = vmatpush.msra.mxu0 0.0
    %4891 = vmatpush.msra.mxu0 0.0
    %4892 = vmatpush.msra.mxu0 %v4844
    %4893 = vmatpush.msra.mxu0 %v4843
    %4894 = vmatpush.msra.mxu0 %v4842
    %4895 = vmatpush.msra.mxu0 %v4841
    %4896 = vmatmul.f32.gmra.mxu0 %v4878
    %v4897 = vpop.f32.mrf.mxu0
    %v4898 = vadd.f32 %v4855, %v4897
    %4899 = vdwg.mxu0
    %v4900 = vmax.f32 %v4898, 0.0
    %v4901 = vperm.slane %v4854, 0
    %v4903 = vsel %vm800, %v4900, 0
    %4905 = vmatpush.msra.mxu0 0.0
    %4906 = vmatpush.msra.mxu0 0.0
    %4907 = vmatpush.msra.mxu0 0.0
    %4908 = vmatpush.msra.mxu0 0.0
    %4909 = vmatpush.msra.mxu0 0.0
    %4910 = vmatpush.msra.mxu0 0.0
    %4911 = vmatpush.msra.mxu0 0.0
    %4912 = vmatpush.msra.mxu0 0.0
    %4913 = vmatpush.msra.mxu0 %v4853
    %4914 = vmatpush.msra.mxu0 %v4852
    %4915 = vmatpush.msra.mxu0 %v4851
    %4916 = vmatpush.msra.mxu0 %v4850
    %4917 = vmatpush.msra.mxu0 %v4849
    %4918 = vmatpush.msra.mxu0 %v4848
    %4919 = vmatpush.msra.mxu0 %v4847
    %4920 = vmatpush.msra.mxu0 %v4846
    %4921 = vmatmul.f32.gmra.mxu0 %v4903
    %v4922 = vpop.f32.mrf.mxu0
    %v4923 = vadd.f32 %v4901, %v4922
    %4924 = vdwg.mxu0
    %v4926 = vrot.slane %v4923, 1
    %v4927 = vrot.slane %v4923, 2
    %v4928 = vrot.slane %v4923, 3
    %v4929 = vrot.slane %v4923, 4
    %v4930 = vrot.slane %v4923, 5
    %v4931 = vrot.slane %v4923, 6
    %v4932 = vrot.slane %v4923, 7
    %v4941 = vadd.f32 %v4833, %v4923
    %v4942 = vadd.f32 %v4834, %v4926
    %v4943 = vadd.f32 %v4835, %v4927
    %v4944 = vadd.f32 %v4836, %v4928
    %v4945 = vadd.f32 %v4837, %v4929
    %v4946 = vadd.f32 %v4838, %v4930
    %v4947 = vadd.f32 %v4839, %v4931
    %v4948 = vadd.f32 %v4840, %v4932
    %v4949 = vld [vmem:[#allocation7 + $0x38] sm:$0x1]
    %v4950 = vld [vmem:[#allocation7 + $0x39] sm:$0x1]
    %v4959 = vrot.slane %v4942, 7
    %v4960 = vsel %vm116, %v4959, %v4941
    %v4961 = vrot.slane %v4943, 6
    %v4962 = vsel %vm119, %v4961, %v4960
    %v4963 = vrot.slane %v4944, 5
    %v4964 = vsel %vm122, %v4963, %v4962
    %v4965 = vrot.slane %v4945, 4
    %v4966 = vsel %vm125, %v4965, %v4964
    %v4967 = vrot.slane %v4946, 3
    %v4968 = vsel %vm128, %v4967, %v4966
    %v4969 = vrot.slane %v4947, 2
    %v4970 = vsel %vm131, %v4969, %v4968
    %v4971 = vrot.slane %v4948, 1
    %v4972 = vsel %vm134, %v4971, %v4970
    %v4974 = vsel %vm136, %v4972, 0.0
    %4975 = vadd.xlane.f32.xlu0 %v4974
    %v4976 = vpop.xlane.xlu0 %4975
    %v4977 = vmul.f32 %v4976, %v625
    %v4979 = vrot.slane %v4977, 1
    %v4980 = vrot.slane %v4977, 2
    %v4981 = vrot.slane %v4977, 3
    %v4982 = vrot.slane %v4977, 4
    %v4983 = vrot.slane %v4977, 5
    %v4984 = vrot.slane %v4977, 6
    %v4985 = vrot.slane %v4977, 7
    %v4994 = vsub.f32 %v4941, %v4977
    %v4995 = vsub.f32 %v4942, %v4979
    %v4996 = vsub.f32 %v4943, %v4980
    %v4997 = vsub.f32 %v4944, %v4981
    %v4998 = vsub.f32 %v4945, %v4982
    %v4999 = vsub.f32 %v4946, %v4983
    %v5000 = vsub.f32 %v4947, %v4984
    %v5001 = vsub.f32 %v4948, %v4985
    %v5002 = vmul.f32 %v4994, %v4994
    %v5003 = vmul.f32 %v4995, %v4995
    %v5004 = vmul.f32 %v4996, %v4996
    %v5005 = vmul.f32 %v4997, %v4997
    %v5006 = vmul.f32 %v4998, %v4998
    %v5007 = vmul.f32 %v4999, %v4999
    %v5008 = vmul.f32 %v5000, %v5000
    %v5009 = vmul.f32 %v5001, %v5001
    %v5018 = vrot.slane %v5003, 7
    %v5019 = vsel %vm116, %v5018, %v5002
    %v5020 = vrot.slane %v5004, 6
    %v5021 = vsel %vm119, %v5020, %v5019
    %v5022 = vrot.slane %v5005, 5
    %v5023 = vsel %vm122, %v5022, %v5021
    %v5024 = vrot.slane %v5006, 4
    %v5025 = vsel %vm125, %v5024, %v5023
    %v5026 = vrot.slane %v5007, 3
    %v5027 = vsel %vm128, %v5026, %v5025
    %v5028 = vrot.slane %v5008, 2
    %v5029 = vsel %vm131, %v5028, %v5027
    %v5030 = vrot.slane %v5009, 1
    %v5031 = vsel %vm134, %v5030, %v5029
    %v5033 = vsel %vm136, %v5031, 0.0
    %5034 = vadd.xlane.f32.xlu0 %v5033
    %v5035 = vpop.xlane.xlu0 %5034
    %v5036 = vmul.f32 %v5035, %v625
    %v5037 = vadd.f32 %v5036, 1e-05
    %v5038 = vrsqrt.pop %v5037
    %v5039 = vmul.f32 %v5038, %v5037
    %v5040 = vmul.f32 %v5039, %v5038
    %v5041 = vmul.f32 0.5, %v5040
    %v5042 = vsub.f32 1.5, %v5041
    %v5043 = vmul.f32 %v5038, %v5042
    %vm5044 = vweird.f32 %v5037
    %vm5045 = vweird.f32 %v5038
    %vm5046 = vmor %vm5044, %vm5045
    %v5047 = vsel %vm5046, %v5038, %v5043
    %v5049 = vrot.slane %v5047, 1
    %v5050 = vrot.slane %v5047, 2
    %v5051 = vrot.slane %v5047, 3
    %v5052 = vrot.slane %v5047, 4
    %v5053 = vrot.slane %v5047, 5
    %v5054 = vrot.slane %v5047, 6
    %v5055 = vrot.slane %v5047, 7
    %v5064 = vmul.f32 %v4994, %v5047
    %v5065 = vmul.f32 %v4995, %v5049
    %v5066 = vmul.f32 %v4996, %v5050
    %v5067 = vmul.f32 %v4997, %v5051
    %v5068 = vmul.f32 %v4998, %v5052
    %v5069 = vmul.f32 %v4999, %v5053
    %v5070 = vmul.f32 %v5000, %v5054
    %v5071 = vmul.f32 %v5001, %v5055
    %v5072 = vperm.slane %v4949, 0
    %v5073 = vmul.f32 %v5064, %v5072
    %v5074 = vmul.f32 %v5065, %v5072
    %v5075 = vmul.f32 %v5066, %v5072
    %v5076 = vmul.f32 %v5067, %v5072
    %v5077 = vmul.f32 %v5068, %v5072
    %v5078 = vmul.f32 %v5069, %v5072
    %v5079 = vmul.f32 %v5070, %v5072
    %v5080 = vmul.f32 %v5071, %v5072
    %v5081 = vperm.slane %v4950, 0
    %v5082 = vadd.f32 %v5073, %v5081
    %v5083 = vadd.f32 %v5074, %v5081
    %v5084 = vadd.f32 %v5075, %v5081
    %v5085 = vadd.f32 %v5076, %v5081
    %v5086 = vadd.f32 %v5077, %v5081
    %v5087 = vadd.f32 %v5078, %v5081
    %v5088 = vadd.f32 %v5079, %v5081
    %v5089 = vadd.f32 %v5080, %v5081
    %v5090 = vld [vmem:[#allocation7 + $0x3a] sm:$0x1]
    %v5091 = vld [vmem:[#allocation7 + $0x3b] sm:$0x1]
    %v5100 = vrot.slane %v5083, 7
    %v5101 = vsel %vm116, %v5100, %v5082
    %v5102 = vrot.slane %v5084, 6
    %v5103 = vsel %vm119, %v5102, %v5101
    %v5104 = vrot.slane %v5085, 5
    %v5105 = vsel %vm122, %v5104, %v5103
    %v5106 = vrot.slane %v5086, 4
    %v5107 = vsel %vm125, %v5106, %v5105
    %v5108 = vrot.slane %v5087, 3
    %v5109 = vsel %vm128, %v5108, %v5107
    %v5110 = vrot.slane %v5088, 2
    %v5111 = vsel %vm131, %v5110, %v5109
    %v5112 = vrot.slane %v5089, 1
    %v5113 = vsel %vm134, %v5112, %v5111
    %v5115 = vsel %vm136, %v5113, 0.0
    %5116 = vadd.xlane.f32.xlu0 %v5115
    %v5117 = vpop.xlane.xlu0 %5116
    %v5118 = vmul.f32 %v5117, %v625
    %v5120 = vrot.slane %v5118, 1
    %v5121 = vrot.slane %v5118, 2
    %v5122 = vrot.slane %v5118, 3
    %v5123 = vrot.slane %v5118, 4
    %v5124 = vrot.slane %v5118, 5
    %v5125 = vrot.slane %v5118, 6
    %v5126 = vrot.slane %v5118, 7
    %v5135 = vsub.f32 %v5082, %v5118
    %v5136 = vsub.f32 %v5083, %v5120
    %v5137 = vsub.f32 %v5084, %v5121
    %v5138 = vsub.f32 %v5085, %v5122
    %v5139 = vsub.f32 %v5086, %v5123
    %v5140 = vsub.f32 %v5087, %v5124
    %v5141 = vsub.f32 %v5088, %v5125
    %v5142 = vsub.f32 %v5089, %v5126
    %v5143 = vmul.f32 %v5135, %v5135
    %v5144 = vmul.f32 %v5136, %v5136
    %v5145 = vmul.f32 %v5137, %v5137
    %v5146 = vmul.f32 %v5138, %v5138
    %v5147 = vmul.f32 %v5139, %v5139
    %v5148 = vmul.f32 %v5140, %v5140
    %v5149 = vmul.f32 %v5141, %v5141
    %v5150 = vmul.f32 %v5142, %v5142
    %v5159 = vrot.slane %v5144, 7
    %v5160 = vsel %vm116, %v5159, %v5143
    %v5161 = vrot.slane %v5145, 6
    %v5162 = vsel %vm119, %v5161, %v5160
    %v5163 = vrot.slane %v5146, 5
    %v5164 = vsel %vm122, %v5163, %v5162
    %v5165 = vrot.slane %v5147, 4
    %v5166 = vsel %vm125, %v5165, %v5164
    %v5167 = vrot.slane %v5148, 3
    %v5168 = vsel %vm128, %v5167, %v5166
    %v5169 = vrot.slane %v5149, 2
    %v5170 = vsel %vm131, %v5169, %v5168
    %v5171 = vrot.slane %v5150, 1
    %v5172 = vsel %vm134, %v5171, %v5170
    %v5174 = vsel %vm136, %v5172, 0.0
    %5175 = vadd.xlane.f32.xlu0 %v5174
    %v5176 = vpop.xlane.xlu0 %5175
    %v5177 = vmul.f32 %v5176, %v625
    %v5178 = vadd.f32 %v5177, 1e-05
    %v5179 = vrsqrt.pop %v5178
    %v5180 = vmul.f32 %v5179, %v5178
    %v5181 = vmul.f32 %v5180, %v5179
    %v5182 = vmul.f32 0.5, %v5181
    %v5183 = vsub.f32 1.5, %v5182
    %v5184 = vmul.f32 %v5179, %v5183
    %vm5185 = vweird.f32 %v5178
    %vm5186 = vweird.f32 %v5179
    %vm5187 = vmor %vm5185, %vm5186
    %v5188 = vsel %vm5187, %v5179, %v5184
    %v5190 = vrot.slane %v5188, 1
    %v5191 = vrot.slane %v5188, 2
    %v5192 = vrot.slane %v5188, 3
    %v5193 = vrot.slane %v5188, 4
    %v5194 = vrot.slane %v5188, 5
    %v5195 = vrot.slane %v5188, 6
    %v5196 = vrot.slane %v5188, 7
    %v5205 = vmul.f32 %v5135, %v5188
    %v5206 = vmul.f32 %v5136, %v5190
    %v5207 = vmul.f32 %v5137, %v5191
    %v5208 = vmul.f32 %v5138, %v5192
    %v5209 = vmul.f32 %v5139, %v5193
    %v5210 = vmul.f32 %v5140, %v5194
    %v5211 = vmul.f32 %v5141, %v5195
    %v5212 = vmul.f32 %v5142, %v5196
    %v5213 = vperm.slane %v5090, 0
    %v5214 = vmul.f32 %v5205, %v5213
    %v5215 = vmul.f32 %v5206, %v5213
    %v5216 = vmul.f32 %v5207, %v5213
    %v5217 = vmul.f32 %v5208, %v5213
    %v5218 = vmul.f32 %v5209, %v5213
    %v5219 = vmul.f32 %v5210, %v5213
    %v5220 = vmul.f32 %v5211, %v5213
    %v5221 = vmul.f32 %v5212, %v5213
    %v5222 = vperm.slane %v5091, 0
    %v5223 = vadd.f32 %v5214, %v5222
    %v5224 = vadd.f32 %v5215, %v5222
    %v5225 = vadd.f32 %v5216, %v5222
    %v5226 = vadd.f32 %v5217, %v5222
    %v5227 = vadd.f32 %v5218, %v5222
    %v5228 = vadd.f32 %v5219, %v5222
    %v5229 = vadd.f32 %v5220, %v5222
    %v5230 = vadd.f32 %v5221, %v5222
    %v5231 = vld [vmem:[#allocation5 + $0x300] sm:$0xff]
    %v5232 = vld [vmem:[#allocation5 + $0x308] sm:$0xff]
    %v5233 = vld [vmem:[#allocation5 + $0x310] sm:$0xff]
    %v5234 = vld [vmem:[#allocation5 + $0x318] sm:$0xff]
    %v5235 = vld [vmem:[#allocation7 + $0x3c] sm:$0x1]
    %v5236 = vperm.slane %v5235, 0
    %v5245 = vrot.slane %v5224, 7
    %v5246 = vsel %vm116, %v5245, %v5223
    %v5247 = vrot.slane %v5225, 6
    %v5248 = vsel %vm119, %v5247, %v5246
    %v5249 = vrot.slane %v5226, 5
    %v5250 = vsel %vm122, %v5249, %v5248
    %v5251 = vrot.slane %v5227, 4
    %v5252 = vsel %vm125, %v5251, %v5250
    %v5253 = vrot.slane %v5228, 3
    %v5254 = vsel %vm128, %v5253, %v5252
    %v5255 = vrot.slane %v5229, 2
    %v5256 = vsel %vm131, %v5255, %v5254
    %v5257 = vrot.slane %v5230, 1
    %v5258 = vsel %vm134, %v5257, %v5256
    %v5259 = vsel %vm136, %v5258, 0
    %5261 = vmatpush.msra.mxu0 0.0
    %5262 = vmatpush.msra.mxu0 0.0
    %5263 = vmatpush.msra.mxu0 0.0
    %5264 = vmatpush.msra.mxu0 0.0
    %5265 = vmatpush.msra.mxu0 0.0
    %5266 = vmatpush.msra.mxu0 0.0
    %5267 = vmatpush.msra.mxu0 0.0
    %5268 = vmatpush.msra.mxu0 0.0
    %5269 = vmatpush.msra.mxu0 0.0
    %5270 = vmatpush.msra.mxu0 0.0
    %5271 = vmatpush.msra.mxu0 0.0
    %5272 = vmatpush.msra.mxu0 0.0
    %5273 = vmatpush.msra.mxu0 %v5234
    %5274 = vmatpush.msra.mxu0 %v5233
    %5275 = vmatpush.msra.mxu0 %v5232
    %5276 = vmatpush.msra.mxu0 %v5231
    %5277 = vmatmul.f32.gmra.mxu0 %v5259
    %v5278 = vpop.f32.mrf.mxu0
    %v5279 = vadd.f32 %v5236, %v5278
    %5280 = vdwg.mxu0
    %vm5281 = vcmask 80896
    %5282 = vst.msk [vmem:[#allocation8] sm:$0xff] %vm5281, %v5279
    // Predicated region
    $region26: #{tpu_custom_call.1} parent=1 // pred_check
      _
    $region27: #{tpu_custom_call.1} parent=1 // pred_check_branch
      %5284 = sbr.rel (0) target = $region29
    $region28: #{tpu_custom_call.1} parent=1 // pred_region
      %5286 = vsyncadd [#allocation4], 0
      %s5288 = sshll.u32 [#allocation8], 4
      %s5289 = int_to_ptr.vmem [resolvable:$true] %s5288
      %s5290 = sshll.u32 %s3, 4
      %s5291 = int_to_ptr.hbm [resolvable:$true] %s5290
      %5293 = dma.vmem_to_hbm [thread:$0]  %s5289, 128, %s5291, [#allocation4]
    $region29: #{tpu_custom_call.1} parent=1 // pred_fallthru
      _
    // Predicated region
    $region30: #{tpu_custom_call.1} parent=1 // pred_check
      _
    $region31: #{tpu_custom_call.1} parent=1 // pred_check_branch
      %5295 = sbr.rel (0) target = $region33
    $region32: #{tpu_custom_call.1} parent=1 // pred_region
      %5297 = dma.done [#allocation4], 128
    $region33: #{tpu_custom_call.1} parent=1 // pred_fallthru
      _
    %5298 = vsyncpa [#allocation3], 1
    %5299 = vsyncpa [#allocation6], 1
    %5300 = vsyncpa [#allocation4], 1

</llo_original>
